<compile_context>
chip_gen: v5e
topology: v5e:2x2
jax: 0.10.0
libtpu: 0.0.40
codegen_flags: <defaults>
</compile_context>

<pallas_src>
import math
from functools import partial

import jax
import jax.numpy as jnp
from jax import lax
from jax.experimental import pallas as pl
from jax.experimental.pallas import tpu as pltpu


_NEG = -1e30                      # additive mask bias (kept in the f32 score path)
_MXU_INPUT_DTYPE = jnp.bfloat16   # MXU operand dtype; accumulation stays f32
_WEIGHT_DTYPE = jnp.bfloat16      # matmul weights stored in HBM as bf16


def _vmem_limit_bytes():
    """Generation-aware scoped-VMEM request (~55% of physical capacity)."""
    try:
        cap = pltpu.get_tpu_info().vmem_capacity_bytes
    except Exception:
        cap = 64 * 1024 * 1024    # conservative (v7x-sized) fallback
    return int(cap * 0.55)


_VMEM_LIMIT = _vmem_limit_bytes()
_FFN_RESIDENT_BUDGET = _VMEM_LIMIT // 3   # resident-weight budget for fused FFN


def _cparams(dimension_semantics):
    return pltpu.CompilerParams(dimension_semantics=dimension_semantics,
                                vmem_limit_bytes=_VMEM_LIMIT)


def _pick_tile(dim, max_tile, aligns):
    """Largest tile <= max_tile dividing `dim`, preferring the first alignment
    in `aligns` (256 keeps the 2x256x256 MXUs on v6e/v7x full).  Falls back to
    the full dim (always a legal block) when dim is small or has no aligned
    divisor.  TODO(synk): in production pad d_model / hidden_d / vocab to
    multiples of 128 so this fallback never produces a lane-sparse block."""
    if dim <= max_tile:
        return dim
    for a in aligns:
        t = (max_tile // a) * a
        while t >= a:
            if dim % t == 0:
                return t
            t -= a
    return dim


def _probe_single_buffering():
    """Verify that pipeline_mode=pl.Buffered(1) lowers on this jax/libtpu by
    compiling a tiny kernel once at import; fall back gracefully otherwise."""
    try:
        def _k(x_ref, o_ref):
            o_ref[...] = x_ref[...] + 1.0
        spec = pl.BlockSpec((8, 128), lambda i: (0, 0),
                            pipeline_mode=pl.Buffered(1))
        out = pl.pallas_call(
            _k,
            out_shape=jax.ShapeDtypeStruct((8, 128), jnp.float32),
            grid=(2,),
            in_specs=[spec],
            out_specs=pl.BlockSpec((8, 128), lambda i: (0, 0)),
        )(jnp.zeros((8, 128), jnp.float32))
        jax.block_until_ready(out)
        return True
    except Exception:
        return False


_SINGLE_BUFFER_OK = _probe_single_buffering()


def _resident_spec(block_shape, index_map):
    """BlockSpec for grid-invariant (resident) operands: single-buffered when
    supported — a constant index_map makes double buffering pure VMEM waste."""
    if _SINGLE_BUFFER_OK:
        return pl.BlockSpec(block_shape, index_map, pipeline_mode=pl.Buffered(1))
    return pl.BlockSpec(block_shape, index_map)


# ----------------------------------------------------------------------------
# Kernel 1: tiled fused linear  (out = act(x @ w + b)),  M/N parallel, K reduce
# ----------------------------------------------------------------------------
def _linear_kernel(x_ref, w_ref, b_ref, o_ref, acc_ref, *, activation):
    @pl.when(pl.program_id(2) == 0)
    def _():
        acc_ref[...] = jnp.zeros_like(acc_ref)

    acc_ref[...] += jnp.dot(
        x_ref[...].astype(_MXU_INPUT_DTYPE),
        w_ref[...].astype(_MXU_INPUT_DTYPE),
        preferred_element_type=jnp.float32,
    )

    @pl.when(pl.program_id(2) == pl.num_programs(2) - 1)
    def _():
        y = acc_ref[...] + b_ref[...]
        if activation == "relu":
            y = jnp.maximum(y, 0.0)
        o_ref[...] = y.astype(o_ref.dtype)


def linear(x, w, b, activation=None, *, tm_max=256, tn_max=256, tk_max=512):
    """x: (M, K), w: (K, N), b: (N,) -> (M, N) float32."""
    M, K = x.shape
    N = w.shape[1]
    tm = _pick_tile(M, tm_max, (256, 8))
    tn = _pick_tile(N, tn_max, (256, 128))
    tk = _pick_tile(K, tk_max, (256, 128))
    grid = (M // tm, N // tn, K // tk)
    return pl.pallas_call(
        partial(_linear_kernel, activation=activation),
        out_shape=jax.ShapeDtypeStruct((M, N), jnp.float32),
        grid_spec=pltpu.PrefetchScalarGridSpec(
            num_scalar_prefetch=0,
            grid=grid,
            in_specs=[
                pl.BlockSpec((tm, tk), lambda i, j, k: (i, k)),
                pl.BlockSpec((tk, tn), lambda i, j, k: (k, j)),
                pl.BlockSpec((1, tn), lambda i, j, k: (0, j)),
            ],
            out_specs=pl.BlockSpec((tm, tn), lambda i, j, k: (i, j)),
            scratch_shapes=[pltpu.VMEM((tm, tn), jnp.float32)],
        ),
        compiler_params=_cparams(("parallel", "parallel", "arbitrary")),
    )(x, w, b.reshape(1, N))


# ----------------------------------------------------------------------------
# Kernel 2: multi-output projection — x read once, Q/K/V (or K/V) written as
#           separate lane-dense outputs; no (M, 3D) slab through HBM.
# ----------------------------------------------------------------------------
def _multi_proj_kernel(*refs, n_out):
    x_ref = refs[0]
    w_refs = refs[1:1 + n_out]
    b_refs = refs[1 + n_out:1 + 2 * n_out]
    o_refs = refs[1 + 2 * n_out:1 + 3 * n_out]
    acc_refs = refs[1 + 3 * n_out:]

    @pl.when(pl.program_id(1) == 0)
    def _():
        for acc in acc_refs:
            acc[...] = jnp.zeros_like(acc)

    xb = x_ref[...].astype(_MXU_INPUT_DTYPE)
    for w_ref, acc in zip(w_refs, acc_refs):
        acc[...] += jnp.dot(xb, w_ref[...].astype(_MXU_INPUT_DTYPE),
                            preferred_element_type=jnp.float32)

    @pl.when(pl.program_id(1) == pl.num_programs(1) - 1)
    def _():
        for b_ref, o_ref, acc in zip(b_refs, o_refs, acc_refs):
            o_ref[...] = (acc[...] + b_ref[...]).astype(o_ref.dtype)


def multi_proj(x, ws, bs, *, tm_max=256, tk_max=512):
    """x: (M, K); ws[i]: (K, N); bs[i]: (N,) -> tuple of (M, N) float32."""
    M, K = x.shape
    N = ws[0].shape[1]
    n_out = len(ws)
    tm = _pick_tile(M, tm_max, (256, 8))
    tk = _pick_tile(K, tk_max, (256, 128))
    grid = (M // tm, K // tk)
    in_specs = [pl.BlockSpec((tm, tk), lambda i, k: (i, k))]
    in_specs += [pl.BlockSpec((tk, N), lambda i, k: (k, 0)) for _ in range(n_out)]
    in_specs += [_resident_spec((1, N), lambda i, k: (0, 0)) for _ in range(n_out)]
    out_specs = [pl.BlockSpec((tm, N), lambda i, k: (i, 0)) for _ in range(n_out)]
    return pl.pallas_call(
        partial(_multi_proj_kernel, n_out=n_out),
        out_shape=tuple(jax.ShapeDtypeStruct((M, N), jnp.float32)
                        for _ in range(n_out)),
        grid_spec=pltpu.PrefetchScalarGridSpec(
            num_scalar_prefetch=0,
            grid=grid,
            in_specs=in_specs,
            out_specs=out_specs,
            scratch_shapes=[pltpu.VMEM((tm, N), jnp.float32)
                            for _ in range(n_out)],
        ),
        compiler_params=_cparams(("parallel", "arbitrary")),
    )(x, *ws, *[b.reshape(1, N) for b in bs])


# ----------------------------------------------------------------------------
# Kernel 3: tiled matmul + bias + residual add + LayerNorm epilogue
#           (full-feature output block so mean/var span the whole d_model)
# ----------------------------------------------------------------------------
def _linear_add_ln_kernel(x_ref, w_ref, b_ref, r_ref, g_ref, bt_ref, o_ref,
                          acc_ref, *, eps):
    @pl.when(pl.program_id(1) == 0)
    def _():
        acc_ref[...] = jnp.zeros_like(acc_ref)

    acc_ref[...] += jnp.dot(
        x_ref[...].astype(_MXU_INPUT_DTYPE),
        w_ref[...].astype(_MXU_INPUT_DTYPE),
        preferred_element_type=jnp.float32,
    )

    @pl.when(pl.program_id(1) == pl.num_programs(1) - 1)
    def _():
        h = acc_ref[...] + b_ref[...] + r_ref[...]
        mean = jnp.mean(h, axis=-1, keepdims=True)
        var = jnp.mean(jnp.square(h - mean), axis=-1, keepdims=True)
        norm = (h - mean) * lax.rsqrt(var + eps)
        o_ref[...] = (norm * g_ref[...] + bt_ref[...]).astype(o_ref.dtype)


def linear_add_ln(x, w, b, residual, gamma, beta, eps=1e-5,
                  *, tm_max=256, tk_max=512):
    """LayerNorm(residual + (x @ w + b)).  x:(M,K), w:(K,D), residual:(M,D)."""
    M, K = x.shape
    D = w.shape[1]
    tm = _pick_tile(M, tm_max, (256, 8))
    tk = _pick_tile(K, tk_max, (256, 128))
    grid = (M // tm, K // tk)
    return pl.pallas_call(
        partial(_linear_add_ln_kernel, eps=eps),
        out_shape=jax.ShapeDtypeStruct((M, D), jnp.float32),
        grid_spec=pltpu.PrefetchScalarGridSpec(
            num_scalar_prefetch=0,
            grid=grid,
            in_specs=[
                pl.BlockSpec((tm, tk), lambda i, k: (i, k)),
                pl.BlockSpec((tk, D), lambda i, k: (k, 0)),
                _resident_spec((1, D), lambda i, k: (0, 0)),
                pl.BlockSpec((tm, D), lambda i, k: (i, 0)),
                _resident_spec((1, D), lambda i, k: (0, 0)),
                _resident_spec((1, D), lambda i, k: (0, 0)),
            ],
            out_specs=pl.BlockSpec((tm, D), lambda i, k: (i, 0)),
            scratch_shapes=[pltpu.VMEM((tm, D), jnp.float32)],
        ),
        compiler_params=_cparams(("parallel", "arbitrary")),
    )(x, w, b.reshape(1, D), residual, gamma.reshape(1, D), beta.reshape(1, D))


# ----------------------------------------------------------------------------
# Kernel 4: fused position-wise FFN + residual + LayerNorm
#           out = LN(x + relu(x@w1+b1)@w2 + b2); hidden never leaves VMEM and
#           the resident weights are single-buffered.
# ----------------------------------------------------------------------------
def _ffn_ln_kernel(x_ref, w1_ref, b1_ref, w2_ref, b2_ref, g_ref, bt_ref, o_ref,
                   *, eps):
    x = x_ref[...]
    h = jnp.dot(x.astype(_MXU_INPUT_DTYPE), w1_ref[...].astype(_MXU_INPUT_DTYPE),
                preferred_element_type=jnp.float32) + b1_ref[...]
    h = jnp.maximum(h, 0.0)
    y = jnp.dot(h.astype(_MXU_INPUT_DTYPE), w2_ref[...].astype(_MXU_INPUT_DTYPE),
                preferred_element_type=jnp.float32) + b2_ref[...]
    r = x + y                      # residual is the kernel's own input tile
    mean = jnp.mean(r, axis=-1, keepdims=True)
    var = jnp.mean(jnp.square(r - mean), axis=-1, keepdims=True)
    norm = (r - mean) * lax.rsqrt(var + eps)
    o_ref[...] = (norm * g_ref[...] + bt_ref[...]).astype(o_ref.dtype)


def ffn_add_ln(x, p, gamma, beta, eps=1e-5):
    """x: (B, S, D) -> LayerNorm(x + FFN(x)) : (B, S, D)."""
    B, S, D = x.shape
    Hd = p["w1"].shape[1]
    M = B * S
    x2 = x.reshape(M, D)

    resident_bytes = (D * Hd + Hd * D) * jnp.dtype(_WEIGHT_DTYPE).itemsize
    if resident_bytes > _FFN_RESIDENT_BUDGET:
        # Weights too large to keep resident on this generation: two tiled
        # matmuls, Add&LayerNorm fused into the second one's epilogue.
        h = linear(x2, p["w1"], p["b1"], activation="relu")
        out = linear_add_ln(h, p["w2"], p["b2"], x2, gamma, beta, eps)
        return out.reshape(B, S, D)

    tm = _pick_tile(M, 256, (256, 8))
    out = pl.pallas_call(
        partial(_ffn_ln_kernel, eps=eps),
        out_shape=jax.ShapeDtypeStruct((M, D), jnp.float32),
        grid_spec=pltpu.PrefetchScalarGridSpec(
            num_scalar_prefetch=0,
            grid=(M // tm,),
            in_specs=[
                pl.BlockSpec((tm, D), lambda i: (i, 0)),
                _resident_spec((D, Hd), lambda i: (0, 0)),
                _resident_spec((1, Hd), lambda i: (0, 0)),
                _resident_spec((Hd, D), lambda i: (0, 0)),
                _resident_spec((1, D), lambda i: (0, 0)),
                _resident_spec((1, D), lambda i: (0, 0)),
                _resident_spec((1, D), lambda i: (0, 0)),
            ],
            out_specs=pl.BlockSpec((tm, D), lambda i: (i, 0)),
        ),
        compiler_params=_cparams(("parallel",)),
    )(x2, p["w1"], p["b1"].reshape(1, Hd), p["w2"], p["b2"].reshape(1, D),
      gamma.reshape(1, D), beta.reshape(1, D))
    return out.reshape(B, S, D)


# ----------------------------------------------------------------------------
# Kernel 5: flash attention, grid (B, heads, kv-tiles), online softmax.
#           Heads are a grid axis (contiguous Dh blocks) so the kernel has no
#           sub-128-lane head slices or concatenation; only one (Sq, tk) score
#           tile is ever materialized.
# ----------------------------------------------------------------------------
def _flash_attn_kernel(qb_ref, kb_ref, q_ref, k_ref, v_ref, o_ref,
                       m_sc, l_sc, acc_sc, *, scale, causal, kv_tile):
    kv = pl.program_id(2)

    @pl.when(kv == 0)
    def _():
        m_sc[...] = jnp.full_like(m_sc, -jnp.inf)
        l_sc[...] = jnp.zeros_like(l_sc)
        acc_sc[...] = jnp.zeros_like(acc_sc)

    s = lax.dot_general(
        q_ref[...].astype(_MXU_INPUT_DTYPE),
        k_ref[...].astype(_MXU_INPUT_DTYPE),
        (((1,), (1,)), ((), ())),
        preferred_element_type=jnp.float32,
    ) * scale                                             # (Sq, tk) f32

    bias = qb_ref[...] + kb_ref[...]                      # (Sq,1)+(1,tk)->(Sq,tk)
    if causal:
        Sq = q_ref.shape[0]
        qi = lax.broadcasted_iota(jnp.int32, (Sq, kv_tile), 0)
        ki = lax.broadcasted_iota(jnp.int32, (Sq, kv_tile), 1) + kv * kv_tile
        bias = jnp.where(ki <= qi, bias, _NEG)
    s = s + bias

    m_prev = m_sc[...]
    m_new = jnp.maximum(m_prev, jnp.max(s, axis=-1, keepdims=True))
    alpha = jnp.exp(m_prev - m_new)
    p = jnp.exp(s - m_new)
    l_sc[...] = alpha * l_sc[...] + jnp.sum(p, axis=-1, keepdims=True)
    acc_sc[...] = alpha * acc_sc[...] + jnp.dot(
        p.astype(_MXU_INPUT_DTYPE), v_ref[...].astype(_MXU_INPUT_DTYPE),
        preferred_element_type=jnp.float32)
    m_sc[...] = m_new

    @pl.when(kv == pl.num_programs(2) - 1)
    def _():
        # exact division (not approx reciprocal) for closer parity with torch
        o_ref[...] = (acc_sc[...] / l_sc[...]).astype(o_ref.dtype)


def attention_core(q, k, v, qbias, kbias, causal):
    """q: (B,H,Sq,Dh), k/v: (B,H,Sk,Dh), qbias: (B,Sq,1), kbias: (B,1,Sk)."""
    B, H, Sq, Dh = q.shape
    Sk = k.shape[2]
    scale = 1.0 / math.sqrt(Dh)
    tk = _pick_tile(Sk, 512, (128, 8))
    grid = (B, H, Sk // tk)
    # TODO(synk): for very long Sq also tile the query axis (4th grid dim).
    return pl.pallas_call(
        partial(_flash_attn_kernel, scale=scale, causal=causal, kv_tile=tk),
        out_shape=jax.ShapeDtypeStruct((B, H, Sq, Dh), jnp.float32),
        grid_spec=pltpu.PrefetchScalarGridSpec(
            num_scalar_prefetch=0,
            grid=grid,
            in_specs=[
                pl.BlockSpec((None, Sq, 1), lambda b, h, kv: (b, 0, 0)),
                pl.BlockSpec((None, 1, tk), lambda b, h, kv: (b, 0, kv)),
                pl.BlockSpec((None, None, Sq, Dh), lambda b, h, kv: (b, h, 0, 0)),
                pl.BlockSpec((None, None, tk, Dh), lambda b, h, kv: (b, h, kv, 0)),
                pl.BlockSpec((None, None, tk, Dh), lambda b, h, kv: (b, h, kv, 0)),
            ],
            out_specs=pl.BlockSpec((None, None, Sq, Dh),
                                   lambda b, h, kv: (b, h, 0, 0)),
            scratch_shapes=[
                pltpu.VMEM((Sq, 1), jnp.float32),
                pltpu.VMEM((Sq, 1), jnp.float32),
                pltpu.VMEM((Sq, Dh), jnp.float32),
            ],
        ),
        compiler_params=_cparams(("parallel", "parallel", "arbitrary")),
    )(qbias, kbias, q, k, v)


# ----------------------------------------------------------------------------
# Module pieces
# ----------------------------------------------------------------------------
def _split_heads(x2d, B, S, H):
    D = x2d.shape[-1]
    return x2d.reshape(B, S, H, D // H).transpose(0, 2, 1, 3)   # (B,H,S,Dh)


def _merge_heads(x4d):
    B, H, S, Dh = x4d.shape
    return x4d.transpose(0, 2, 1, 3).reshape(B * S, H * Dh)


def multihead_attention(x_q, x_kv, p, num_heads, qbias, kbias, causal,
                        norm_g, norm_b):
    """nn.MultiheadAttention (batch_first=True) + the surrounding sub-layer's
    residual + LayerNorm (fused into the out-projection kernel's epilogue).
    Returns LayerNorm(x_q + attn(x_q, x_kv, x_kv))."""
    B, Sq, D = x_q.shape
    Sk = x_kv.shape[1]
    xq2 = x_q.reshape(B * Sq, D)
    if x_kv is x_q:
        q2, k2, v2 = multi_proj(xq2, [p["wq"], p["wk"], p["wv"]],
                                [p["bq"], p["bk"], p["bv"]])
    else:
        xkv2 = x_kv.reshape(B * Sk, D)
        q2 = linear(xq2, p["wq"], p["bq"])
        k2, v2 = multi_proj(xkv2, [p["wk"], p["wv"]], [p["bk"], p["bv"]])
    q = _split_heads(q2, B, Sq, num_heads)
    k = _split_heads(k2, B, Sk, num_heads)
    v = _split_heads(v2, B, Sk, num_heads)
    o = attention_core(q, k, v, qbias, kbias, causal)            # (B,H,Sq,Dh)
    o2 = _merge_heads(o)                                         # (B*Sq, D)
    out = linear_add_ln(o2, p["wo"], p["bo"], xq2, norm_g, norm_b)
    return out.reshape(B, Sq, D)


def encoder_layer(x, p, num_heads, qbias, kbias):
    x = multihead_attention(x, x, p["attn"], num_heads, qbias, kbias,
                            causal=False,
                            norm_g=p["norm1_g"], norm_b=p["norm1_b"])
    x = ffn_add_ln(x, p["ffn"], p["norm2_g"], p["norm2_b"])
    return x


def decoder_layer(x, enc_out, p, num_heads,
                  self_qbias, self_kbias, cross_qbias, cross_kbias):
    x = multihead_attention(x, x, p["self_attn"], num_heads,
                            self_qbias, self_kbias, causal=True,
                            norm_g=p["norm1_g"], norm_b=p["norm1_b"])
    x = multihead_attention(x, enc_out, p["cross_attn"], num_heads,
                            cross_qbias, cross_kbias, causal=False,
                            norm_g=p["norm2_g"], norm_b=p["norm2_b"])
    x = ffn_add_ln(x, p["ffn"], p["norm3_g"], p["norm3_b"])
    return x


def positional_encoding_table(d_model, max_len):
    position = jnp.arange(max_len, dtype=jnp.float32)[:, None]
    div = jnp.arange(0, d_model, 2, dtype=jnp.float32)
    div_term = jnp.exp(div * (-math.log(10000.0) / d_model))
    pe = jnp.zeros((max_len, d_model), jnp.float32)
    pe = pe.at[:, 0::2].set(jnp.sin(position * div_term))
    pe = pe.at[:, 1::2].set(jnp.cos(position * div_term))
    return pe


@partial(jax.jit, static_argnames=("num_heads",))
def transformer_forward(params, src, tgt, num_heads):
    # TODO(synk): all nn.Dropout layers are identity (eval-mode semantics).
    # TODO(synk): the reference generate_mask assumes int token ids; with dense
    # (B, S, vocab) inputs implied by the nn.Linear embeddings, per-position
    # validity is derived as "any nonzero feature".  Masks are applied as
    # additive attention biases matching the generated masks' intent
    # (encoder / cross: key-side src validity; decoder self: query-side tgt
    # validity AND causal) — the reference's mask plumbing into
    # nn.MultiheadAttention does not type-check as written.
    B, Ss, Vs = src.shape
    _, St, Vt = tgt.shape
    D = params["enc_emb"]["w"].shape[1]
    pe = params["pe"]

    src_valid = jnp.any(src != 0, axis=-1)                        # (B, Ss)
    tgt_valid = jnp.any(tgt != 0, axis=-1)                        # (B, St)
    src_kbias = jnp.where(src_valid, 0.0, _NEG).astype(jnp.float32)[:, None, :]
    tgt_qbias = jnp.where(tgt_valid, 0.0, _NEG).astype(jnp.float32)[:, :, None]
    zero_q_src = jnp.zeros((B, Ss, 1), jnp.float32)
    zero_q_tgt = jnp.zeros((B, St, 1), jnp.float32)
    zero_k_tgt = jnp.zeros((B, 1, St), jnp.float32)

    src_emb = linear(src.reshape(B * Ss, Vs),
                     params["enc_emb"]["w"], params["enc_emb"]["b"]
                     ).reshape(B, Ss, D)
    tgt_emb = linear(tgt.reshape(B * St, Vt),
                     params["dec_emb"]["w"], params["dec_emb"]["b"]
                     ).reshape(B, St, D)
    src_emb = src_emb + pe[None, :Ss, :]
    tgt_emb = tgt_emb + pe[None, :St, :]

    enc_out = src_emb
    for lp in params["encoder"]:
        enc_out = encoder_layer(enc_out, lp, num_heads, zero_q_src, src_kbias)

    dec_out = tgt_emb
    for lp in params["decoder"]:
        dec_out = decoder_layer(dec_out, enc_out, lp, num_heads,
                                tgt_qbias, zero_k_tgt, zero_q_tgt, src_kbias)

    out = linear(dec_out.reshape(B * St, D), params["fc"]["w"], params["fc"]["b"])
    return out.reshape(B, St, Vt)


# ----------------------------------------------------------------------------
# Deterministic parameter init (shapes match the PyTorch module __init__;
# matmul weights stored in bf16, biases / LayerNorm params in f32).
# ----------------------------------------------------------------------------
def _init_linear(key, fan_in, fan_out):
    k1, k2 = jax.random.split(key)
    bound = 1.0 / math.sqrt(fan_in)
    return {
        "w": jax.random.uniform(k1, (fan_in, fan_out), jnp.float32,
                                -bound, bound).astype(_WEIGHT_DTYPE),
        "b": jax.random.uniform(k2, (fan_out,), jnp.float32, -bound, bound),
    }


def _init_mha(key, d_model):
    keys = jax.random.split(key, 8)
    bound = 1.0 / math.sqrt(d_model)

    def w(k):
        return jax.random.uniform(k, (d_model, d_model), jnp.float32,
                                  -bound, bound).astype(_WEIGHT_DTYPE)

    def b(k):
        return jax.random.uniform(k, (d_model,), jnp.float32, -bound, bound)

    return {"wq": w(keys[0]), "bq": b(keys[1]),
            "wk": w(keys[2]), "bk": b(keys[3]),
            "wv": w(keys[4]), "bv": b(keys[5]),
            "wo": w(keys[6]), "bo": b(keys[7])}


def _init_ffn(key, d_model, hidden_d):
    k1, k2 = jax.random.split(key)
    l1 = _init_linear(k1, d_model, hidden_d)
    l2 = _init_linear(k2, hidden_d, d_model)
    return {"w1": l1["w"], "b1": l1["b"], "w2": l2["w"], "b2": l2["b"]}


def _init_encoder_layer(key, d_model, hidden_d):
    k1, k2 = jax.random.split(key)
    return {
        "attn": _init_mha(k1, d_model),
        "ffn": _init_ffn(k2, d_model, hidden_d),
        "norm1_g": jnp.ones((d_model,), jnp.float32),
        "norm1_b": jnp.zeros((d_model,), jnp.float32),
        "norm2_g": jnp.ones((d_model,), jnp.float32),
        "norm2_b": jnp.zeros((d_model,), jnp.float32),
    }


def _init_decoder_layer(key, d_model, hidden_d):
    k1, k2, k3 = jax.random.split(key, 3)
    return {
        "self_attn": _init_mha(k1, d_model),
        "cross_attn": _init_mha(k2, d_model),
        "ffn": _init_ffn(k3, d_model, hidden_d),
        "norm1_g": jnp.ones((d_model,), jnp.float32),
        "norm1_b": jnp.zeros((d_model,), jnp.float32),
        "norm2_g": jnp.ones((d_model,), jnp.float32),
        "norm2_b": jnp.zeros((d_model,), jnp.float32),
        "norm3_g": jnp.ones((d_model,), jnp.float32),
        "norm3_b": jnp.zeros((d_model,), jnp.float32),
    }


def init_params(key, src_vocab, tgt_vocab, d_model, hidden_d, num_layers,
                max_len):
    keys = jax.random.split(key, 3 + 2 * num_layers)
    return {
        "enc_emb": _init_linear(keys[0], src_vocab, d_model),
        "dec_emb": _init_linear(keys[1], tgt_vocab, d_model),
        "fc": _init_linear(keys[2], d_model, tgt_vocab),
        "encoder": [_init_encoder_layer(keys[3 + i], d_model, hidden_d)
                    for i in range(num_layers)],
        "decoder": [_init_decoder_layer(keys[3 + num_layers + i], d_model,
                                        hidden_d)
                    for i in range(num_layers)],
        "pe": positional_encoding_table(d_model, max_len),
    }


# ----------------------------------------------------------------------------
if __name__ == "__main__":
    B, Ss, St = 2, 8, 8
    src_vocab, tgt_vocab = 16, 16
    d_model, num_heads, hidden_d = 32, 4, 64
    num_layers, max_len = 2, 16

    key = jax.random.PRNGKey(0)
    kp, ks, kt = jax.random.split(key, 3)
    params = init_params(kp, src_vocab, tgt_vocab, d_model, hidden_d,
                         num_layers, max_len)
    src = jax.random.normal(ks, (B, Ss, src_vocab), jnp.float32)
    tgt = jax.random.normal(kt, (B, St, tgt_vocab), jnp.float32)

    out = transformer_forward(params, src, tgt, num_heads=num_heads)
    out = jax.block_until_ready(out)
    assert out.shape == (B, St, tgt_vocab), out.shape
    assert out.dtype == jnp.float32
    assert bool(jnp.all(jnp.isfinite(out)))
    print("KERNEL_OK")
</pallas_src>

<mosaic_0001>
module attributes {stable_mosaic.version = 11 : i64} {
  func.func @_k(%arg0: i32, %arg1: memref<8x128xf32, #tpu.memory_space<vmem>>, %arg2: memref<8x128xf32, #tpu.memory_space<vmem>>) attributes {dimension_semantics = [#tpu.dimension_semantics<arbitrary>], iteration_bounds = array<i64: 2>, scalar_prefetch = 0 : i64, scratch_operands = 0 : i64, tpu.core_type = #tpu.core_type<tc>, window_params = [{pipeline_mode = #tpu.pipeline_mode<synchronous>, transform_indices = @transform_0, window_bounds = array<i64: 8, 128>}, {pipeline_mode = #tpu.pipeline_mode<synchronous>, transform_indices = @transform_1, window_bounds = array<i64: 8, 128>}]} {
    %c0 = arith.constant 0 : index
    %c0_0 = arith.constant 0 : index
    %0 = vector.load %arg1[%c0, %c0_0] : memref<8x128xf32, #tpu.memory_space<vmem>>, vector<8x128xf32>
    %cst = arith.constant 1.000000e+00 : f32
    %1 = vector.broadcast %cst : f32 to vector<8x128xf32>
    %2 = arith.addf %0, %1 : vector<8x128xf32>
    %c0_1 = arith.constant 0 : index
    %c0_2 = arith.constant 0 : index
    %3 = vector.load %arg2[%c0_1, %c0_2] : memref<8x128xf32, #tpu.memory_space<vmem>>, vector<8x128xf32>
    tpu.vector_store %arg2[%c0_1, %c0_2], %2 {strides = array<i32>} : memref<8x128xf32, #tpu.memory_space<vmem>>, vector<8x128xf32>,
    return
  }
  func.func @transform_0(%arg0: i32) -> (i32, i32) {
    %c0_i32 = arith.constant 0 : i32
    %c0_i32_0 = arith.constant 0 : i32
    %c0_i32_1 = arith.constant 0 : i32
    return %c0_i32, %c0_i32_0 : i32, i32
  }
  func.func @transform_1(%arg0: i32) -> (i32, i32) {
    %c0_i32 = arith.constant 0 : i32
    %c0_i32_0 = arith.constant 0 : i32
    %c0_i32_1 = arith.constant 0 : i32
    return %c0_i32, %c0_i32_0 : i32, i32
  }
}

module attributes {stable_mosaic.version = 11 : i64} {
  func.func @_multi_proj_kernel(%arg0: i32, %arg1: i32, %arg2: memref<16x32xf32, #tpu.memory_space<vmem>>, %arg3: memref<32x32xbf16, #tpu.memory_space<vmem>>, %arg4: memref<32x32xbf16, #tpu.memory_space<vmem>>, %arg5: memref<32x32xbf16, #tpu.memory_space<vmem>>, %arg6: memref<1x32xf32, #tpu.memory_space<vmem>>, %arg7: memref<1x32xf32, #tpu.memory_space<vmem>>, %arg8: memref<1x32xf32, #tpu.memory_space<vmem>>, %arg9: memref<16x32xf32, #tpu.memory_space<vmem>>, %arg10: memref<16x32xf32, #tpu.memory_space<vmem>>, %arg11: memref<16x32xf32, #tpu.memory_space<vmem>>, %arg12: memref<16x32xf32, #tpu.memory_space<vmem>>, %arg13: memref<16x32xf32, #tpu.memory_space<vmem>>, %arg14: memref<16x32xf32, #tpu.memory_space<vmem>>) attributes {dimension_semantics = [#tpu.dimension_semantics<parallel>, #tpu.dimension_semantics<arbitrary>], iteration_bounds = array<i64: 1, 1>, scalar_prefetch = 0 : i64, scratch_operands = 3 : i64, tpu.core_type = #tpu.core_type<tc>, window_params = [{transform_indices = @transform_0, window_bounds = array<i64: 16, 32>}, {transform_indices = @transform_1, window_bounds = array<i64: 32, 32>}, {transform_indices = @transform_2, window_bounds = array<i64: 32, 32>}, {transform_indices = @transform_3, window_bounds = array<i64: 32, 32>}, {pipeline_mode = #tpu.pipeline_mode<synchronous>, transform_indices = @transform_4, window_bounds = array<i64: 1, 32>}, {pipeline_mode = #tpu.pipeline_mode<synchronous>, transform_indices = @transform_5, window_bounds = array<i64: 1, 32>}, {pipeline_mode = #tpu.pipeline_mode<synchronous>, transform_indices = @transform_6, window_bounds = array<i64: 1, 32>}, {transform_indices = @transform_7, window_bounds = array<i64: 16, 32>}, {transform_indices = @transform_8, window_bounds = array<i64: 16, 32>}, {transform_indices = @transform_9, window_bounds = array<i64: 16, 32>}]} {
    %c0_i32 = arith.constant 0 : i32
    %0 = arith.cmpi eq, %arg1, %c0_i32 : i32
    %1 = arith.extui %0 : i1 to i32
    %c0_i32_0 = arith.constant 0 : i32
    %2 = arith.cmpi ne, %1, %c0_i32_0 : i32
    scf.if %2 {
      %cst_24 = arith.constant 0.000000e+00 : f32
      %23 = vector.broadcast %cst_24 : f32 to vector<16x32xf32>
      %c0_25 = arith.constant 0 : index
      %c0_26 = arith.constant 0 : index
      %24 = vector.load %arg12[%c0_25, %c0_26] : memref<16x32xf32, #tpu.memory_space<vmem>>, vector<16x32xf32>
      tpu.vector_store %arg12[%c0_25, %c0_26], %23 {strides = array<i32>} : memref<16x32xf32, #tpu.memory_space<vmem>>, vector<16x32xf32>,
      %cst_27 = arith.constant 0.000000e+00 : f32
      %25 = vector.broadcast %cst_27 : f32 to vector<16x32xf32>
      %c0_28 = arith.constant 0 : index
      %c0_29 = arith.constant 0 : index
      %26 = vector.load %arg13[%c0_28, %c0_29] : memref<16x32xf32, #tpu.memory_space<vmem>>, vector<16x32xf32>
      tpu.vector_store %arg13[%c0_28, %c0_29], %25 {strides = array<i32>} : memref<16x32xf32, #tpu.memory_space<vmem>>, vector<16x32xf32>,
      %cst_30 = arith.constant 0.000000e+00 : f32
      %27 = vector.broadcast %cst_30 : f32 to vector<16x32xf32>
      %c0_31 = arith.constant 0 : index
      %c0_32 = arith.constant 0 : index
      %28 = vector.load %arg14[%c0_31, %c0_32] : memref<16x32xf32, #tpu.memory_space<vmem>>, vector<16x32xf32>
      tpu.vector_store %arg14[%c0_31, %c0_32], %27 {strides = array<i32>} : memref<16x32xf32, #tpu.memory_space<vmem>>, vector<16x32xf32>,
    } else {
    }
    %c0 = arith.constant 0 : index
    %c0_1 = arith.constant 0 : index
    %3 = vector.load %arg2[%c0, %c0_1] : memref<16x32xf32, #tpu.memory_space<vmem>>, vector<16x32xf32>
    %4 = arith.truncf %3 : vector<16x32xf32> to vector<16x32xbf16>
    %c0_2 = arith.constant 0 : index
    %c0_3 = arith.constant 0 : index
    %5 = vector.load %arg12[%c0_2, %c0_3] : memref<16x32xf32, #tpu.memory_space<vmem>>, vector<16x32xf32>
    %c0_4 = arith.constant 0 : index
    %c0_5 = arith.constant 0 : index
    %6 = vector.load %arg3[%c0_4, %c0_5] : memref<32x32xbf16, #tpu.memory_space<vmem>>, vector<32x32xbf16>
    %cst = arith.constant dense<0.000000e+00> : vector<16x32xf32>
    %7 = tpu.matmul %4, %6, %cst {dimension_numbers = #tpu.dot_dimension_numbers<[1], [0], [0], [1], [0, 0, 1, 1], [], []>} : vector<16x32xbf16>, vector<32x32xbf16>, vector<16x32xf32> -> vector<16x32xf32>
    %8 = arith.addf %5, %7 : vector<16x32xf32>
    %c0_6 = arith.constant 0 : index
    %c0_7 = arith.constant 0 : index
    %9 = vector.load %arg12[%c0_6, %c0_7] : memref<16x32xf32, #tpu.memory_space<vmem>>, vector<16x32xf32>
    tpu.vector_store %arg12[%c0_6, %c0_7], %8 {strides = array<i32>} : memref<16x32xf32, #tpu.memory_space<vmem>>, vector<16x32xf32>,
    %c0_8 = arith.constant 0 : index
    %c0_9 = arith.constant 0 : index
    %10 = vector.load %arg13[%c0_8, %c0_9] : memref<16x32xf32, #tpu.memory_space<vmem>>, vector<16x32xf32>
    %c0_10 = arith.constant 0 : index
    %c0_11 = arith.constant 0 : index
    %11 = vector.load %arg4[%c0_10, %c0_11] : memref<32x32xbf16, #tpu.memory_space<vmem>>, vector<32x32xbf16>
    %cst_12 = arith.constant dense<0.000000e+00> : vector<16x32xf32>
    %12 = tpu.matmul %4, %11, %cst_12 {dimension_numbers = #tpu.dot_dimension_numbers<[1], [0], [0], [1], [0, 0, 1, 1], [], []>} : vector<16x32xbf16>, vector<32x32xbf16>, vector<16x32xf32> -> vector<16x32xf32>
    %13 = arith.addf %10, %12 : vector<16x32xf32>
    %c0_13 = arith.constant 0 : index
    %c0_14 = arith.constant 0 : index
    %14 = vector.load %arg13[%c0_13, %c0_14] : memref<16x32xf32, #tpu.memory_space<vmem>>, vector<16x32xf32>
    tpu.vector_store %arg13[%c0_13, %c0_14], %13 {strides = array<i32>} : memref<16x32xf32, #tpu.memory_space<vmem>>, vector<16x32xf32>,
    %c0_15 = arith.constant 0 : index
    %c0_16 = arith.constant 0 : index
    %15 = vector.load %arg14[%c0_15, %c0_16] : memref<16x32xf32, #tpu.memory_space<vmem>>, vector<16x32xf32>
    %c0_17 = arith.constant 0 : index
    %c0_18 = arith.constant 0 : index
    %16 = vector.load %arg5[%c0_17, %c0_18] : memref<32x32xbf16, #tpu.memory_space<vmem>>, vector<32x32xbf16>
    %cst_19 = arith.constant dense<0.000000e+00> : vector<16x32xf32>
    %17 = tpu.matmul %4, %16, %cst_19 {dimension_numbers = #tpu.dot_dimension_numbers<[1], [0], [0], [1], [0, 0, 1, 1], [], []>} : vector<16x32xbf16>, vector<32x32xbf16>, vector<16x32xf32> -> vector<16x32xf32>
    %18 = arith.addf %15, %17 : vector<16x32xf32>
    %c0_20 = arith.constant 0 : index
    %c0_21 = arith.constant 0 : index
    %19 = vector.load %arg14[%c0_20, %c0_21] : memref<16x32xf32, #tpu.memory_space<vmem>>, vector<16x32xf32>
    tpu.vector_store %arg14[%c0_20, %c0_21], %18 {strides = array<i32>} : memref<16x32xf32, #tpu.memory_space<vmem>>, vector<16x32xf32>,
    %c0_i32_22 = arith.constant 0 : i32
    %20 = arith.cmpi eq, %arg1, %c0_i32_22 : i32
    %21 = arith.extui %20 : i1 to i32
    %c0_i32_23 = arith.constant 0 : i32
    %22 = arith.cmpi ne, %21, %c0_i32_23 : i32
    scf.if %22 {
      %c0_24 = arith.constant 0 : index
      %c0_25 = arith.constant 0 : index
      %23 = vector.load %arg12[%c0_24, %c0_25] : memref<16x32xf32, #tpu.memory_space<vmem>>, vector<16x32xf32>
      %c0_26 = arith.constant 0 : index
      %c0_27 = arith.constant 0 : index
      %24 = vector.load %arg6[%c0_26, %c0_27] : memref<1x32xf32, #tpu.memory_space<vmem>>, vector<1x32xf32>
      %25 = vector.broadcast %24 : vector<1x32xf32> to vector<16x32xf32>
      %26 = arith.addf %23, %25 : vector<16x32xf32>
      %c0_28 = arith.constant 0 : index
      %c0_29 = arith.constant 0 : index
      %27 = vector.load %arg9[%c0_28, %c0_29] : memref<16x32xf32, #tpu.memory_space<vmem>>, vector<16x32xf32>
      tpu.vector_store %arg9[%c0_28, %c0_29], %26 {strides = array<i32>} : memref<16x32xf32, #tpu.memory_space<vmem>>, vector<16x32xf32>,
      %c0_30 = arith.constant 0 : index
      %c0_31 = arith.constant 0 : index
      %28 = vector.load %arg13[%c0_30, %c0_31] : memref<16x32xf32, #tpu.memory_space<vmem>>, vector<16x32xf32>
      %c0_32 = arith.constant 0 : index
      %c0_33 = arith.constant 0 : index
      %29 = vector.load %arg7[%c0_32, %c0_33] : memref<1x32xf32, #tpu.memory_space<vmem>>, vector<1x32xf32>
      %30 = vector.broadcast %29 : vector<1x32xf32> to vector<16x32xf32>
      %31 = arith.addf %28, %30 : vector<16x32xf32>
      %c0_34 = arith.constant 0 : index
      %c0_35 = arith.constant 0 : index
      %32 = vector.load %arg10[%c0_34, %c0_35] : memref<16x32xf32, #tpu.memory_space<vmem>>, vector<16x32xf32>
      tpu.vector_store %arg10[%c0_34, %c0_35], %31 {strides = array<i32>} : memref<16x32xf32, #tpu.memory_space<vmem>>, vector<16x32xf32>,
      %c0_36 = arith.constant 0 : index
      %c0_37 = arith.constant 0 : index
      %33 = vector.load %arg14[%c0_36, %c0_37] : memref<16x32xf32, #tpu.memory_space<vmem>>, vector<16x32xf32>
      %c0_38 = arith.constant 0 : index
      %c0_39 = arith.constant 0 : index
      %34 = vector.load %arg8[%c0_38, %c0_39] : memref<1x32xf32, #tpu.memory_space<vmem>>, vector<1x32xf32>
      %35 = vector.broadcast %34 : vector<1x32xf32> to vector<16x32xf32>
      %36 = arith.addf %33, %35 : vector<16x32xf32>
      %c0_40 = arith.constant 0 : index
      %c0_41 = arith.constant 0 : index
      %37 = vector.load %arg11[%c0_40, %c0_41] : memref<16x32xf32, #tpu.memory_space<vmem>>, vector<16x32xf32>
      tpu.vector_store %arg11[%c0_40, %c0_41], %36 {strides = array<i32>} : memref<16x32xf32, #tpu.memory_space<vmem>>, vector<16x32xf32>,
    } else {
    }
    return
  }
  func.func @transform_0(%arg0: i32, %arg1: i32) -> (i32, i32) {
    %c0_i32 = arith.constant 0 : i32
    return %arg0, %arg1 : i32, i32
  }
  func.func @transform_1(%arg0: i32, %arg1: i32) -> (i32, i32) {
    %c0_i32 = arith.constant 0 : i32
    %c0_i32_0 = arith.constant 0 : i32
    return %arg1, %c0_i32 : i32, i32
  }
  func.func @transform_2(%arg0: i32, %arg1: i32) -> (i32, i32) {
    %c0_i32 = arith.constant 0 : i32
    %c0_i32_0 = arith.constant 0 : i32
    return %arg1, %c0_i32 : i32, i32
  }
  func.func @transform_3(%arg0: i32, %arg1: i32) -> (i32, i32) {
    %c0_i32 = arith.constant 0 : i32
    %c0_i32_0 = arith.constant 0 : i32
    return %arg1, %c0_i32 : i32, i32
  }
  func.func @transform_4(%arg0: i32, %arg1: i32) -> (i32, i32) {
    %c0_i32 = arith.constant 0 : i32
    %c0_i32_0 = arith.constant 0 : i32
    %c0_i32_1 = arith.constant 0 : i32
    return %c0_i32, %c0_i32_0 : i32, i32
  }
  func.func @transform_5(%arg0: i32, %arg1: i32) -> (i32, i32) {
    %c0_i32 = arith.constant 0 : i32
    %c0_i32_0 = arith.constant 0 : i32
    %c0_i32_1 = arith.constant 0 : i32
    return %c0_i32, %c0_i32_0 : i32, i32
  }
  func.func @transform_6(%arg0: i32, %arg1: i32) -> (i32, i32) {
    %c0_i32 = arith.constant 0 : i32
    %c0_i32_0 = arith.constant 0 : i32
    %c0_i32_1 = arith.constant 0 : i32
    return %c0_i32, %c0_i32_0 : i32, i32
  }
  func.func @transform_7(%arg0: i32, %arg1: i32) -> (i32, i32) {
    %c0_i32 = arith.constant 0 : i32
    %c0_i32_0 = arith.constant 0 : i32
    return %arg0, %c0_i32 : i32, i32
  }
  func.func @transform_8(%arg0: i32, %arg1: i32) -> (i32, i32) {
    %c0_i32 = arith.constant 0 : i32
    %c0_i32_0 = arith.constant 0 : i32
    return %arg0, %c0_i32 : i32, i32
  }
  func.func @transform_9(%arg0: i32, %arg1: i32) -> (i32, i32) {
    %c0_i32 = arith.constant 0 : i32
    %c0_i32_0 = arith.constant 0 : i32
    return %arg0, %c0_i32 : i32, i32
  }
}

module attributes {stable_mosaic.version = 11 : i64} {
  func.func @_linear_kernel(%arg0: i32, %arg1: i32, %arg2: i32, %arg3: memref<16x16xf32, #tpu.memory_space<vmem>>, %arg4: memref<16x32xbf16, #tpu.memory_space<vmem>>, %arg5: memref<1x32xf32, #tpu.memory_space<vmem>>, %arg6: memref<16x32xf32, #tpu.memory_space<vmem>>, %arg7: memref<16x32xf32, #tpu.memory_space<vmem>>) attributes {dimension_semantics = [#tpu.dimension_semantics<parallel>, #tpu.dimension_semantics<parallel>, #tpu.dimension_semantics<arbitrary>], iteration_bounds = array<i64: 1, 1, 1>, scalar_prefetch = 0 : i64, scratch_operands = 1 : i64, tpu.core_type = #tpu.core_type<tc>, window_params = [{transform_indices = @transform_0, window_bounds = array<i64: 16, 16>}, {transform_indices = @transform_1, window_bounds = array<i64: 16, 32>}, {transform_indices = @transform_2, window_bounds = array<i64: 1, 32>}, {transform_indices = @transform_3, window_bounds = array<i64: 16, 32>}]} {
    %c0_i32 = arith.constant 0 : i32
    %0 = arith.cmpi eq, %arg2, %c0_i32 : i32
    %1 = arith.extui %0 : i1 to i32
    %c0_i32_0 = arith.constant 0 : i32
    %2 = arith.cmpi ne, %1, %c0_i32_0 : i32
    scf.if %2 {
      %cst_10 = arith.constant 0.000000e+00 : f32
      %13 = vector.broadcast %cst_10 : f32 to vector<16x32xf32>
      %c0_11 = arith.constant 0 : index
      %c0_12 = arith.constant 0 : index
      %14 = vector.load %arg7[%c0_11, %c0_12] : memref<16x32xf32, #tpu.memory_space<vmem>>, vector<16x32xf32>
      tpu.vector_store %arg7[%c0_11, %c0_12], %13 {strides = array<i32>} : memref<16x32xf32, #tpu.memory_space<vmem>>, vector<16x32xf32>,
    } else {
    }
    %c0 = arith.constant 0 : index
    %c0_1 = arith.constant 0 : index
    %3 = vector.load %arg7[%c0, %c0_1] : memref<16x32xf32, #tpu.memory_space<vmem>>, vector<16x32xf32>
    %c0_2 = arith.constant 0 : index
    %c0_3 = arith.constant 0 : index
    %4 = vector.load %arg3[%c0_2, %c0_3] : memref<16x16xf32, #tpu.memory_space<vmem>>, vector<16x16xf32>
    %5 = arith.truncf %4 : vector<16x16xf32> to vector<16x16xbf16>
    %c0_4 = arith.constant 0 : index
    %c0_5 = arith.constant 0 : index
    %6 = vector.load %arg4[%c0_4, %c0_5] : memref<16x32xbf16, #tpu.memory_space<vmem>>, vector<16x32xbf16>
    %cst = arith.constant dense<0.000000e+00> : vector<16x32xf32>
    %7 = tpu.matmul %5, %6, %cst {dimension_numbers = #tpu.dot_dimension_numbers<[1], [0], [0], [1], [0, 0, 1, 1], [], []>} : vector<16x16xbf16>, vector<16x32xbf16>, vector<16x32xf32> -> vector<16x32xf32>
    %8 = arith.addf %3, %7 : vector<16x32xf32>
    %c0_6 = arith.constant 0 : index
    %c0_7 = arith.constant 0 : index
    %9 = vector.load %arg7[%c0_6, %c0_7] : memref<16x32xf32, #tpu.memory_space<vmem>>, vector<16x32xf32>
    tpu.vector_store %arg7[%c0_6, %c0_7], %8 {strides = array<i32>} : memref<16x32xf32, #tpu.memory_space<vmem>>, vector<16x32xf32>,
    %c0_i32_8 = arith.constant 0 : i32
    %10 = arith.cmpi eq, %arg2, %c0_i32_8 : i32
    %11 = arith.extui %10 : i1 to i32
    %c0_i32_9 = arith.constant 0 : i32
    %12 = arith.cmpi ne, %11, %c0_i32_9 : i32
    scf.if %12 {
      %c0_10 = arith.constant 0 : index
      %c0_11 = arith.constant 0 : index
      %13 = vector.load %arg7[%c0_10, %c0_11] : memref<16x32xf32, #tpu.memory_space<vmem>>, vector<16x32xf32>
      %c0_12 = arith.constant 0 : index
      %c0_13 = arith.constant 0 : index
      %14 = vector.load %arg5[%c0_12, %c0_13] : memref<1x32xf32, #tpu.memory_space<vmem>>, vector<1x32xf32>
      %15 = vector.broadcast %14 : vector<1x32xf32> to vector<16x32xf32>
      %16 = arith.addf %13, %15 : vector<16x32xf32>
      %c0_14 = arith.constant 0 : index
      %c0_15 = arith.constant 0 : index
      %17 = vector.load %arg6[%c0_14, %c0_15] : memref<16x32xf32, #tpu.memory_space<vmem>>, vector<16x32xf32>
      tpu.vector_store %arg6[%c0_14, %c0_15], %16 {strides = array<i32>} : memref<16x32xf32, #tpu.memory_space<vmem>>, vector<16x32xf32>,
    } else {
    }
    return
  }
  func.func @transform_0(%arg0: i32, %arg1: i32, %arg2: i32) -> (i32, i32) {
    %c0_i32 = arith.constant 0 : i32
    return %arg0, %arg2 : i32, i32
  }
  func.func @transform_1(%arg0: i32, %arg1: i32, %arg2: i32) -> (i32, i32) {
    %c0_i32 = arith.constant 0 : i32
    return %arg2, %arg1 : i32, i32
  }
  func.func @transform_2(%arg0: i32, %arg1: i32, %arg2: i32) -> (i32, i32) {
    %c0_i32 = arith.constant 0 : i32
    %c0_i32_0 = arith.constant 0 : i32
    return %c0_i32, %arg1 : i32, i32
  }
  func.func @transform_3(%arg0: i32, %arg1: i32, %arg2: i32) -> (i32, i32) {
    %c0_i32 = arith.constant 0 : i32
    return %arg0, %arg1 : i32, i32
  }
}

module attributes {stable_mosaic.version = 11 : i64} {
  func.func @_flash_attn_kernel(%arg0: i32, %arg1: i32, %arg2: i32, %arg3: memref<1x8x1xf32, #tpu.memory_space<vmem>>, %arg4: memref<1x1x8xf32, #tpu.memory_space<vmem>>, %arg5: memref<1x1x8x8xf32, #tpu.memory_space<vmem>>, %arg6: memref<1x1x8x8xf32, #tpu.memory_space<vmem>>, %arg7: memref<1x1x8x8xf32, #tpu.memory_space<vmem>>, %arg8: memref<1x1x8x8xf32, #tpu.memory_space<vmem>>, %arg9: memref<8x1xf32, #tpu.memory_space<vmem>>, %arg10: memref<8x1xf32, #tpu.memory_space<vmem>>, %arg11: memref<8x8xf32, #tpu.memory_space<vmem>>) attributes {dimension_semantics = [#tpu.dimension_semantics<parallel>, #tpu.dimension_semantics<parallel>, #tpu.dimension_semantics<arbitrary>], iteration_bounds = array<i64: 2, 4, 1>, scalar_prefetch = 0 : i64, scratch_operands = 3 : i64, tpu.core_type = #tpu.core_type<tc>, window_params = [{transform_indices = @transform_0, window_bounds = array<i64: 1, 8, 1>}, {transform_indices = @transform_1, window_bounds = array<i64: 1, 1, 8>}, {transform_indices = @transform_2, window_bounds = array<i64: 1, 1, 8, 8>}, {transform_indices = @transform_3, window_bounds = array<i64: 1, 1, 8, 8>}, {transform_indices = @transform_4, window_bounds = array<i64: 1, 1, 8, 8>}, {transform_indices = @transform_5, window_bounds = array<i64: 1, 1, 8, 8>}]} {
    %c0_i32 = arith.constant 0 : i32
    %0 = arith.cmpi eq, %arg2, %c0_i32 : i32
    %1 = arith.extui %0 : i1 to i32
    %c0_i32_0 = arith.constant 0 : i32
    %2 = arith.cmpi ne, %1, %c0_i32_0 : i32
    scf.if %2 {
      %cst_37 = arith.constant 0xFF800000 : f32
      %57 = vector.broadcast %cst_37 : f32 to vector<8x1xf32>
      %c0_38 = arith.constant 0 : index
      %c0_39 = arith.constant 0 : index
      %58 = vector.load %arg9[%c0_38, %c0_39] : memref<8x1xf32, #tpu.memory_space<vmem>>, vector<8x1xf32>
      tpu.vector_store %arg9[%c0_38, %c0_39], %57 {strides = array<i32>} : memref<8x1xf32, #tpu.memory_space<vmem>>, vector<8x1xf32>,
      %cst_40 = arith.constant 0.000000e+00 : f32
      %59 = vector.broadcast %cst_40 : f32 to vector<8x1xf32>
      %c0_41 = arith.constant 0 : index
      %c0_42 = arith.constant 0 : index
      %60 = vector.load %arg10[%c0_41, %c0_42] : memref<8x1xf32, #tpu.memory_space<vmem>>, vector<8x1xf32>
      tpu.vector_store %arg10[%c0_41, %c0_42], %59 {strides = array<i32>} : memref<8x1xf32, #tpu.memory_space<vmem>>, vector<8x1xf32>,
      %cst_43 = arith.constant 0.000000e+00 : f32
      %61 = vector.broadcast %cst_43 : f32 to vector<8x8xf32>
      %c0_44 = arith.constant 0 : index
      %c0_45 = arith.constant 0 : index
      %62 = vector.load %arg11[%c0_44, %c0_45] : memref<8x8xf32, #tpu.memory_space<vmem>>, vector<8x8xf32>
      tpu.vector_store %arg11[%c0_44, %c0_45], %61 {strides = array<i32>} : memref<8x8xf32, #tpu.memory_space<vmem>>, vector<8x8xf32>,
    } else {
    }
    %c0 = arith.constant 0 : index
    %c0_1 = arith.constant 0 : index
    %c0_2 = arith.constant 0 : index
    %c0_3 = arith.constant 0 : index
    %3 = vector.load %arg5[%c0, %c0_1, %c0_2, %c0_3] : memref<1x1x8x8xf32, #tpu.memory_space<vmem>>, vector<1x1x8x8xf32>
    %4 = vector.shape_cast %3 : vector<1x1x8x8xf32> to vector<8x8xf32>
    %5 = arith.truncf %4 : vector<8x8xf32> to vector<8x8xbf16>
    %c0_4 = arith.constant 0 : index
    %c0_5 = arith.constant 0 : index
    %c0_6 = arith.constant 0 : index
    %c0_7 = arith.constant 0 : index
    %6 = vector.load %arg6[%c0_4, %c0_5, %c0_6, %c0_7] : memref<1x1x8x8xf32, #tpu.memory_space<vmem>>, vector<1x1x8x8xf32>
    %7 = vector.shape_cast %6 : vector<1x1x8x8xf32> to vector<8x8xf32>
    %8 = arith.truncf %7 : vector<8x8xf32> to vector<8x8xbf16>
    %cst = arith.constant dense<0.000000e+00> : vector<8x8xf32>
    %9 = tpu.matmul %5, %8, %cst {dimension_numbers = #tpu.dot_dimension_numbers<[1], [1], [0], [0], [0, 0, 1, 0], [], []>} : vector<8x8xbf16>, vector<8x8xbf16>, vector<8x8xf32> -> vector<8x8xf32>
    %cst_8 = arith.constant 0.353553385 : f32
    %10 = vector.broadcast %cst_8 : f32 to vector<8x8xf32>
    %11 = arith.mulf %9, %10 : vector<8x8xf32>
    %c0_9 = arith.constant 0 : index
    %c0_10 = arith.constant 0 : index
    %c0_11 = arith.constant 0 : index
    %12 = vector.load %arg3[%c0_9, %c0_10, %c0_11] : memref<1x8x1xf32, #tpu.memory_space<vmem>>, vector<1x8x1xf32>
    %13 = vector.shape_cast %12 : vector<1x8x1xf32> to vector<8x1xf32>
    %c0_12 = arith.constant 0 : index
    %c0_13 = arith.constant 0 : index
    %c0_14 = arith.constant 0 : index
    %14 = vector.load %arg4[%c0_12, %c0_13, %c0_14] : memref<1x1x8xf32, #tpu.memory_space<vmem>>, vector<1x1x8xf32>
    %15 = vector.shape_cast %14 : vector<1x1x8xf32> to vector<1x8xf32>
    %16 = vector.broadcast %13 : vector<8x1xf32> to vector<8x8xf32>
    %17 = vector.broadcast %15 : vector<1x8xf32> to vector<8x8xf32>
    %18 = arith.addf %16, %17 : vector<8x8xf32>
    %19 = tpu.iota {dimensions = array<i32: 0>} : vector<8x8xi32>
    %20 = tpu.iota {dimensions = array<i32: 1>} : vector<8x8xi32>
    %c8_i32 = arith.constant 8 : i32
    %21 = arith.muli %arg2, %c8_i32 : i32
    %22 = vector.broadcast %21 : i32 to vector<8x8xi32>
    %23 = arith.addi %20, %22 : vector<8x8xi32>
    %24 = arith.cmpi sle, %23, %19 : vector<8x8xi32>
    %cst_15 = arith.constant -1.000000e+30 : f32
    %25 = vector.broadcast %cst_15 : f32 to vector<8x8xf32>
    %26 = arith.select %24, %18, %25 : vector<8x8xi1>, vector<8x8xf32>
    %27 = arith.addf %11, %26 : vector<8x8xf32>
    %c0_16 = arith.constant 0 : index
    %c0_17 = arith.constant 0 : index
    %28 = vector.load %arg9[%c0_16, %c0_17] : memref<8x1xf32, #tpu.memory_space<vmem>>, vector<8x1xf32>
    %cst_18 = arith.constant dense<0xFF800000> : vector<8xf32>
    %29 = vector.multi_reduction <maximumf>, %27, %cst_18 [1] : vector<8x8xf32> to vector<8xf32>
    %30 = vector.shape_cast %29 : vector<8xf32> to vector<8x1xf32>
    %31 = arith.maximumf %28, %30 : vector<8x1xf32>
    %32 = arith.subf %28, %31 : vector<8x1xf32>
    %33 = math.exp %32 : vector<8x1xf32>
    %34 = vector.broadcast %31 : vector<8x1xf32> to vector<8x8xf32>
    %35 = arith.subf %27, %34 : vector<8x8xf32>
    %36 = math.exp %35 : vector<8x8xf32>
    %c0_19 = arith.constant 0 : index
    %c0_20 = arith.constant 0 : index
    %37 = vector.load %arg10[%c0_19, %c0_20] : memref<8x1xf32, #tpu.memory_space<vmem>>, vector<8x1xf32>
    %38 = arith.mulf %33, %37 : vector<8x1xf32>
    %cst_21 = arith.constant dense<0.000000e+00> : vector<8xf32>
    %39 = vector.multi_reduction <add>, %36, %cst_21 [1] : vector<8x8xf32> to vector<8xf32>
    %40 = vector.shape_cast %39 : vector<8xf32> to vector<8x1xf32>
    %41 = arith.addf %38, %40 : vector<8x1xf32>
    %c0_22 = arith.constant 0 : index
    %c0_23 = arith.constant 0 : index
    %42 = vector.load %arg10[%c0_22, %c0_23] : memref<8x1xf32, #tpu.memory_space<vmem>>, vector<8x1xf32>
    tpu.vector_store %arg10[%c0_22, %c0_23], %41 {strides = array<i32>} : memref<8x1xf32, #tpu.memory_space<vmem>>, vector<8x1xf32>,
    %c0_24 = arith.constant 0 : index
    %c0_25 = arith.constant 0 : index
    %43 = vector.load %arg11[%c0_24, %c0_25] : memref<8x8xf32, #tpu.memory_space<vmem>>, vector<8x8xf32>
    %44 = vector.broadcast %33 : vector<8x1xf32> to vector<8x8xf32>
    %45 = arith.mulf %44, %43 : vector<8x8xf32>
    %46 = arith.truncf %36 : vector<8x8xf32> to vector<8x8xbf16>
    %c0_26 = arith.constant 0 : index
    %c0_27 = arith.constant 0 : index
    %c0_28 = arith.constant 0 : index
    %c0_29 = arith.constant 0 : index
    %47 = vector.load %arg7[%c0_26, %c0_27, %c0_28, %c0_29] : memref<1x1x8x8xf32, #tpu.memory_space<vmem>>, vector<1x1x8x8xf32>
    %48 = vector.shape_cast %47 : vector<1x1x8x8xf32> to vector<8x8xf32>
    %49 = arith.truncf %48 : vector<8x8xf32> to vector<8x8xbf16>
    %cst_30 = arith.constant dense<0.000000e+00> : vector<8x8xf32>
    %50 = tpu.matmul %46, %49, %cst_30 {dimension_numbers = #tpu.dot_dimension_numbers<[1], [0], [0], [1], [0, 0, 1, 1], [], []>} : vector<8x8xbf16>, vector<8x8xbf16>, vector<8x8xf32> -> vector<8x8xf32>
    %51 = arith.addf %45, %50 : vector<8x8xf32>
    %c0_31 = arith.constant 0 : index
    %c0_32 = arith.constant 0 : index
    %52 = vector.load %arg11[%c0_31, %c0_32] : memref<8x8xf32, #tpu.memory_space<vmem>>, vector<8x8xf32>
    tpu.vector_store %arg11[%c0_31, %c0_32], %51 {strides = array<i32>} : memref<8x8xf32, #tpu.memory_space<vmem>>, vector<8x8xf32>,
    %c0_33 = arith.constant 0 : index
    %c0_34 = arith.constant 0 : index
    %53 = vector.load %arg9[%c0_33, %c0_34] : memref<8x1xf32, #tpu.memory_space<vmem>>, vector<8x1xf32>
    tpu.vector_store %arg9[%c0_33, %c0_34], %31 {strides = array<i32>} : memref<8x1xf32, #tpu.memory_space<vmem>>, vector<8x1xf32>,
    %c0_i32_35 = arith.constant 0 : i32
    %54 = arith.cmpi eq, %arg2, %c0_i32_35 : i32
    %55 = arith.extui %54 : i1 to i32
    %c0_i32_36 = arith.constant 0 : i32
    %56 = arith.cmpi ne, %55, %c0_i32_36 : i32
    scf.if %56 {
      %c0_37 = arith.constant 0 : index
      %c0_38 = arith.constant 0 : index
      %57 = vector.load %arg11[%c0_37, %c0_38] : memref<8x8xf32, #tpu.memory_space<vmem>>, vector<8x8xf32>
      %c0_39 = arith.constant 0 : index
      %c0_40 = arith.constant 0 : index
      %58 = vector.load %arg10[%c0_39, %c0_40] : memref<8x1xf32, #tpu.memory_space<vmem>>, vector<8x1xf32>
      %59 = vector.broadcast %58 : vector<8x1xf32> to vector<8x8xf32>
      %60 = arith.divf %57, %59 : vector<8x8xf32>
      %c0_41 = arith.constant 0 : index
      %c0_42 = arith.constant 0 : index
      %c0_43 = arith.constant 0 : index
      %c0_44 = arith.constant 0 : index
      %61 = vector.load %arg8[%c0_41, %c0_42, %c0_43, %c0_44] : memref<1x1x8x8xf32, #tpu.memory_space<vmem>>, vector<1x1x8x8xf32>
      %62 = vector.shape_cast %61 : vector<1x1x8x8xf32> to vector<8x8xf32>
      %63 = vector.shape_cast %60 : vector<8x8xf32> to vector<1x1x8x8xf32>
      tpu.vector_store %arg8[%c0_41, %c0_42, %c0_43, %c0_44], %63 {strides = array<i32>} : memref<1x1x8x8xf32, #tpu.memory_space<vmem>>, vector<1x1x8x8xf32>,
    } else {
    }
    return
  }
  func.func @transform_0(%arg0: i32, %arg1: i32, %arg2: i32) -> (i32, i32, i32) {
    %c0_i32 = arith.constant 0 : i32
    %c0_i32_0 = arith.constant 0 : i32
    %c0_i32_1 = arith.constant 0 : i32
    return %arg0, %c0_i32, %c0_i32_0 : i32, i32, i32
  }
  func.func @transform_1(%arg0: i32, %arg1: i32, %arg2: i32) -> (i32, i32, i32) {
    %c0_i32 = arith.constant 0 : i32
    %c0_i32_0 = arith.constant 0 : i32
    return %arg0, %c0_i32, %arg2 : i32, i32, i32
  }
  func.func @transform_2(%arg0: i32, %arg1: i32, %arg2: i32) -> (i32, i32, i32, i32) {
    %c0_i32 = arith.constant 0 : i32
    %c0_i32_0 = arith.constant 0 : i32
    %c0_i32_1 = arith.constant 0 : i32
    return %arg0, %arg1, %c0_i32, %c0_i32_0 : i32, i32, i32, i32
  }
  func.func @transform_3(%arg0: i32, %arg1: i32, %arg2: i32) -> (i32, i32, i32, i32) {
    %c0_i32 = arith.constant 0 : i32
    %c0_i32_0 = arith.constant 0 : i32
    return %arg0, %arg1, %arg2, %c0_i32 : i32, i32, i32, i32
  }
  func.func @transform_4(%arg0: i32, %arg1: i32, %arg2: i32) -> (i32, i32, i32, i32) {
    %c0_i32 = arith.constant 0 : i32
    %c0_i32_0 = arith.constant 0 : i32
    return %arg0, %arg1, %arg2, %c0_i32 : i32, i32, i32, i32
  }
  func.func @transform_5(%arg0: i32, %arg1: i32, %arg2: i32) -> (i32, i32, i32, i32) {
    %c0_i32 = arith.constant 0 : i32
    %c0_i32_0 = arith.constant 0 : i32
    %c0_i32_1 = arith.constant 0 : i32
    return %arg0, %arg1, %c0_i32, %c0_i32_0 : i32, i32, i32, i32
  }
}

module attributes {stable_mosaic.version = 11 : i64} {
  func.func @_linear_add_ln_kernel(%arg0: i32, %arg1: i32, %arg2: memref<16x32xf32, #tpu.memory_space<vmem>>, %arg3: memref<32x32xbf16, #tpu.memory_space<vmem>>, %arg4: memref<1x32xf32, #tpu.memory_space<vmem>>, %arg5: memref<16x32xf32, #tpu.memory_space<vmem>>, %arg6: memref<1x32xf32, #tpu.memory_space<vmem>>, %arg7: memref<1x32xf32, #tpu.memory_space<vmem>>, %arg8: memref<16x32xf32, #tpu.memory_space<vmem>>, %arg9: memref<16x32xf32, #tpu.memory_space<vmem>>) attributes {dimension_semantics = [#tpu.dimension_semantics<parallel>, #tpu.dimension_semantics<arbitrary>], iteration_bounds = array<i64: 1, 1>, scalar_prefetch = 0 : i64, scratch_operands = 1 : i64, tpu.core_type = #tpu.core_type<tc>, window_params = [{transform_indices = @transform_0, window_bounds = array<i64: 16, 32>}, {transform_indices = @transform_1, window_bounds = array<i64: 32, 32>}, {pipeline_mode = #tpu.pipeline_mode<synchronous>, transform_indices = @transform_2, window_bounds = array<i64: 1, 32>}, {transform_indices = @transform_3, window_bounds = array<i64: 16, 32>}, {pipeline_mode = #tpu.pipeline_mode<synchronous>, transform_indices = @transform_4, window_bounds = array<i64: 1, 32>}, {pipeline_mode = #tpu.pipeline_mode<synchronous>, transform_indices = @transform_5, window_bounds = array<i64: 1, 32>}, {transform_indices = @transform_6, window_bounds = array<i64: 16, 32>}]} {
    %c0_i32 = arith.constant 0 : i32
    %0 = arith.cmpi eq, %arg1, %c0_i32 : i32
    %1 = arith.extui %0 : i1 to i32
    %c0_i32_0 = arith.constant 0 : i32
    %2 = arith.cmpi ne, %1, %c0_i32_0 : i32
    scf.if %2 {
      %cst_10 = arith.constant 0.000000e+00 : f32
      %13 = vector.broadcast %cst_10 : f32 to vector<16x32xf32>
      %c0_11 = arith.constant 0 : index
      %c0_12 = arith.constant 0 : index
      %14 = vector.load %arg9[%c0_11, %c0_12] : memref<16x32xf32, #tpu.memory_space<vmem>>, vector<16x32xf32>
      tpu.vector_store %arg9[%c0_11, %c0_12], %13 {strides = array<i32>} : memref<16x32xf32, #tpu.memory_space<vmem>>, vector<16x32xf32>,
    } else {
    }
    %c0 = arith.constant 0 : index
    %c0_1 = arith.constant 0 : index
    %3 = vector.load %arg9[%c0, %c0_1] : memref<16x32xf32, #tpu.memory_space<vmem>>, vector<16x32xf32>
    %c0_2 = arith.constant 0 : index
    %c0_3 = arith.constant 0 : index
    %4 = vector.load %arg2[%c0_2, %c0_3] : memref<16x32xf32, #tpu.memory_space<vmem>>, vector<16x32xf32>
    %5 = arith.truncf %4 : vector<16x32xf32> to vector<16x32xbf16>
    %c0_4 = arith.constant 0 : index
    %c0_5 = arith.constant 0 : index
    %6 = vector.load %arg3[%c0_4, %c0_5] : memref<32x32xbf16, #tpu.memory_space<vmem>>, vector<32x32xbf16>
    %cst = arith.constant dense<0.000000e+00> : vector<16x32xf32>
    %7 = tpu.matmul %5, %6, %cst {dimension_numbers = #tpu.dot_dimension_numbers<[1], [0], [0], [1], [0, 0, 1, 1], [], []>} : vector<16x32xbf16>, vector<32x32xbf16>, vector<16x32xf32> -> vector<16x32xf32>
    %8 = arith.addf %3, %7 : vector<16x32xf32>
    %c0_6 = arith.constant 0 : index
    %c0_7 = arith.constant 0 : index
    %9 = vector.load %arg9[%c0_6, %c0_7] : memref<16x32xf32, #tpu.memory_space<vmem>>, vector<16x32xf32>
    tpu.vector_store %arg9[%c0_6, %c0_7], %8 {strides = array<i32>} : memref<16x32xf32, #tpu.memory_space<vmem>>, vector<16x32xf32>,
    %c0_i32_8 = arith.constant 0 : i32
    %10 = arith.cmpi eq, %arg1, %c0_i32_8 : i32
    %11 = arith.extui %10 : i1 to i32
    %c0_i32_9 = arith.constant 0 : i32
    %12 = arith.cmpi ne, %11, %c0_i32_9 : i32
    scf.if %12 {
      %c0_10 = arith.constant 0 : index
      %c0_11 = arith.constant 0 : index
      %13 = vector.load %arg9[%c0_10, %c0_11] : memref<16x32xf32, #tpu.memory_space<vmem>>, vector<16x32xf32>
      %c0_12 = arith.constant 0 : index
      %c0_13 = arith.constant 0 : index
      %14 = vector.load %arg4[%c0_12, %c0_13] : memref<1x32xf32, #tpu.memory_space<vmem>>, vector<1x32xf32>
      %15 = vector.broadcast %14 : vector<1x32xf32> to vector<16x32xf32>
      %16 = arith.addf %13, %15 : vector<16x32xf32>
      %c0_14 = arith.constant 0 : index
      %c0_15 = arith.constant 0 : index
      %17 = vector.load %arg5[%c0_14, %c0_15] : memref<16x32xf32, #tpu.memory_space<vmem>>, vector<16x32xf32>
      %18 = arith.addf %16, %17 : vector<16x32xf32>
      %cst_16 = arith.constant dense<0.000000e+00> : vector<16xf32>
      %19 = vector.multi_reduction <add>, %18, %cst_16 [1] : vector<16x32xf32> to vector<16xf32>
      %20 = vector.shape_cast %19 : vector<16xf32> to vector<16x1xf32>
      %cst_17 = arith.constant 3.200000e+01 : f32
      %21 = vector.broadcast %cst_17 : f32 to vector<16x1xf32>
      %22 = arith.divf %20, %21 : vector<16x1xf32>
      %23 = vector.broadcast %22 : vector<16x1xf32> to vector<16x32xf32>
      %24 = arith.subf %18, %23 : vector<16x32xf32>
      %25 = arith.mulf %24, %24 : vector<16x32xf32>
      %cst_18 = arith.constant dense<0.000000e+00> : vector<16xf32>
      %26 = vector.multi_reduction <add>, %25, %cst_18 [1] : vector<16x32xf32> to vector<16xf32>
      %27 = vector.shape_cast %26 : vector<16xf32> to vector<16x1xf32>
      %cst_19 = arith.constant 3.200000e+01 : f32
      %28 = vector.broadcast %cst_19 : f32 to vector<16x1xf32>
      %29 = arith.divf %27, %28 : vector<16x1xf32>
      %30 = vector.broadcast %22 : vector<16x1xf32> to vector<16x32xf32>
      %31 = arith.subf %18, %30 : vector<16x32xf32>
      %cst_20 = arith.constant 9.99999974E-6 : f32
      %32 = vector.broadcast %cst_20 : f32 to vector<16x1xf32>
      %33 = arith.addf %29, %32 : vector<16x1xf32>
      %34 = math.rsqrt %33 : vector<16x1xf32>
      %35 = vector.broadcast %34 : vector<16x1xf32> to vector<16x32xf32>
      %36 = arith.mulf %31, %35 : vector<16x32xf32>
      %c0_21 = arith.constant 0 : index
      %c0_22 = arith.constant 0 : index
      %37 = vector.load %arg6[%c0_21, %c0_22] : memref<1x32xf32, #tpu.memory_space<vmem>>, vector<1x32xf32>
      %38 = vector.broadcast %37 : vector<1x32xf32> to vector<16x32xf32>
      %39 = arith.mulf %36, %38 : vector<16x32xf32>
      %c0_23 = arith.constant 0 : index
      %c0_24 = arith.constant 0 : index
      %40 = vector.load %arg7[%c0_23, %c0_24] : memref<1x32xf32, #tpu.memory_space<vmem>>, vector<1x32xf32>
      %41 = vector.broadcast %40 : vector<1x32xf32> to vector<16x32xf32>
      %42 = arith.addf %39, %41 : vector<16x32xf32>
      %c0_25 = arith.constant 0 : index
      %c0_26 = arith.constant 0 : index
      %43 = vector.load %arg8[%c0_25, %c0_26] : memref<16x32xf32, #tpu.memory_space<vmem>>, vector<16x32xf32>
      tpu.vector_store %arg8[%c0_25, %c0_26], %42 {strides = array<i32>} : memref<16x32xf32, #tpu.memory_space<vmem>>, vector<16x32xf32>,
    } else {
    }
    return
  }
  func.func @transform_0(%arg0: i32, %arg1: i32) -> (i32, i32) {
    %c0_i32 = arith.constant 0 : i32
    return %arg0, %arg1 : i32, i32
  }
  func.func @transform_1(%arg0: i32, %arg1: i32) -> (i32, i32) {
    %c0_i32 = arith.constant 0 : i32
    %c0_i32_0 = arith.constant 0 : i32
    return %arg1, %c0_i32 : i32, i32
  }
  func.func @transform_2(%arg0: i32, %arg1: i32) -> (i32, i32) {
    %c0_i32 = arith.constant 0 : i32
    %c0_i32_0 = arith.constant 0 : i32
    %c0_i32_1 = arith.constant 0 : i32
    return %c0_i32, %c0_i32_0 : i32, i32
  }
  func.func @transform_3(%arg0: i32, %arg1: i32) -> (i32, i32) {
    %c0_i32 = arith.constant 0 : i32
    %c0_i32_0 = arith.constant 0 : i32
    return %arg0, %c0_i32 : i32, i32
  }
  func.func @transform_4(%arg0: i32, %arg1: i32) -> (i32, i32) {
    %c0_i32 = arith.constant 0 : i32
    %c0_i32_0 = arith.constant 0 : i32
    %c0_i32_1 = arith.constant 0 : i32
    return %c0_i32, %c0_i32_0 : i32, i32
  }
  func.func @transform_5(%arg0: i32, %arg1: i32) -> (i32, i32) {
    %c0_i32 = arith.constant 0 : i32
    %c0_i32_0 = arith.constant 0 : i32
    %c0_i32_1 = arith.constant 0 : i32
    return %c0_i32, %c0_i32_0 : i32, i32
  }
  func.func @transform_6(%arg0: i32, %arg1: i32) -> (i32, i32) {
    %c0_i32 = arith.constant 0 : i32
    %c0_i32_0 = arith.constant 0 : i32
    return %arg0, %c0_i32 : i32, i32
  }
}

module attributes {stable_mosaic.version = 11 : i64} {
  func.func @_linear_kernel(%arg0: i32, %arg1: i32, %arg2: i32, %arg3: memref<16x32xf32, #tpu.memory_space<vmem>>, %arg4: memref<32x32xbf16, #tpu.memory_space<vmem>>, %arg5: memref<1x32xf32, #tpu.memory_space<vmem>>, %arg6: memref<16x32xf32, #tpu.memory_space<vmem>>, %arg7: memref<16x32xf32, #tpu.memory_space<vmem>>) attributes {dimension_semantics = [#tpu.dimension_semantics<parallel>, #tpu.dimension_semantics<parallel>, #tpu.dimension_semantics<arbitrary>], iteration_bounds = array<i64: 1, 1, 1>, scalar_prefetch = 0 : i64, scratch_operands = 1 : i64, tpu.core_type = #tpu.core_type<tc>, window_params = [{transform_indices = @transform_0, window_bounds = array<i64: 16, 32>}, {transform_indices = @transform_1, window_bounds = array<i64: 32, 32>}, {transform_indices = @transform_2, window_bounds = array<i64: 1, 32>}, {transform_indices = @transform_3, window_bounds = array<i64: 16, 32>}]} {
    %c0_i32 = arith.constant 0 : i32
    %0 = arith.cmpi eq, %arg2, %c0_i32 : i32
    %1 = arith.extui %0 : i1 to i32
    %c0_i32_0 = arith.constant 0 : i32
    %2 = arith.cmpi ne, %1, %c0_i32_0 : i32
    scf.if %2 {
      %cst_10 = arith.constant 0.000000e+00 : f32
      %13 = vector.broadcast %cst_10 : f32 to vector<16x32xf32>
      %c0_11 = arith.constant 0 : index
      %c0_12 = arith.constant 0 : index
      %14 = vector.load %arg7[%c0_11, %c0_12] : memref<16x32xf32, #tpu.memory_space<vmem>>, vector<16x32xf32>
      tpu.vector_store %arg7[%c0_11, %c0_12], %13 {strides = array<i32>} : memref<16x32xf32, #tpu.memory_space<vmem>>, vector<16x32xf32>,
    } else {
    }
    %c0 = arith.constant 0 : index
    %c0_1 = arith.constant 0 : index
    %3 = vector.load %arg7[%c0, %c0_1] : memref<16x32xf32, #tpu.memory_space<vmem>>, vector<16x32xf32>
    %c0_2 = arith.constant 0 : index
    %c0_3 = arith.constant 0 : index
    %4 = vector.load %arg3[%c0_2, %c0_3] : memref<16x32xf32, #tpu.memory_space<vmem>>, vector<16x32xf32>
    %5 = arith.truncf %4 : vector<16x32xf32> to vector<16x32xbf16>
    %c0_4 = arith.constant 0 : index
    %c0_5 = arith.constant 0 : index
    %6 = vector.load %arg4[%c0_4, %c0_5] : memref<32x32xbf16, #tpu.memory_space<vmem>>, vector<32x32xbf16>
    %cst = arith.constant dense<0.000000e+00> : vector<16x32xf32>
    %7 = tpu.matmul %5, %6, %cst {dimension_numbers = #tpu.dot_dimension_numbers<[1], [0], [0], [1], [0, 0, 1, 1], [], []>} : vector<16x32xbf16>, vector<32x32xbf16>, vector<16x32xf32> -> vector<16x32xf32>
    %8 = arith.addf %3, %7 : vector<16x32xf32>
    %c0_6 = arith.constant 0 : index
    %c0_7 = arith.constant 0 : index
    %9 = vector.load %arg7[%c0_6, %c0_7] : memref<16x32xf32, #tpu.memory_space<vmem>>, vector<16x32xf32>
    tpu.vector_store %arg7[%c0_6, %c0_7], %8 {strides = array<i32>} : memref<16x32xf32, #tpu.memory_space<vmem>>, vector<16x32xf32>,
    %c0_i32_8 = arith.constant 0 : i32
    %10 = arith.cmpi eq, %arg2, %c0_i32_8 : i32
    %11 = arith.extui %10 : i1 to i32
    %c0_i32_9 = arith.constant 0 : i32
    %12 = arith.cmpi ne, %11, %c0_i32_9 : i32
    scf.if %12 {
      %c0_10 = arith.constant 0 : index
      %c0_11 = arith.constant 0 : index
      %13 = vector.load %arg7[%c0_10, %c0_11] : memref<16x32xf32, #tpu.memory_space<vmem>>, vector<16x32xf32>
      %c0_12 = arith.constant 0 : index
      %c0_13 = arith.constant 0 : index
      %14 = vector.load %arg5[%c0_12, %c0_13] : memref<1x32xf32, #tpu.memory_space<vmem>>, vector<1x32xf32>
      %15 = vector.broadcast %14 : vector<1x32xf32> to vector<16x32xf32>
      %16 = arith.addf %13, %15 : vector<16x32xf32>
      %c0_14 = arith.constant 0 : index
      %c0_15 = arith.constant 0 : index
      %17 = vector.load %arg6[%c0_14, %c0_15] : memref<16x32xf32, #tpu.memory_space<vmem>>, vector<16x32xf32>
      tpu.vector_store %arg6[%c0_14, %c0_15], %16 {strides = array<i32>} : memref<16x32xf32, #tpu.memory_space<vmem>>, vector<16x32xf32>,
    } else {
    }
    return
  }
  func.func @transform_0(%arg0: i32, %arg1: i32, %arg2: i32) -> (i32, i32) {
    %c0_i32 = arith.constant 0 : i32
    return %arg0, %arg2 : i32, i32
  }
  func.func @transform_1(%arg0: i32, %arg1: i32, %arg2: i32) -> (i32, i32) {
    %c0_i32 = arith.constant 0 : i32
    return %arg2, %arg1 : i32, i32
  }
  func.func @transform_2(%arg0: i32, %arg1: i32, %arg2: i32) -> (i32, i32) {
    %c0_i32 = arith.constant 0 : i32
    %c0_i32_0 = arith.constant 0 : i32
    return %c0_i32, %arg1 : i32, i32
  }
  func.func @transform_3(%arg0: i32, %arg1: i32, %arg2: i32) -> (i32, i32) {
    %c0_i32 = arith.constant 0 : i32
    return %arg0, %arg1 : i32, i32
  }
}

module attributes {stable_mosaic.version = 11 : i64} {
  func.func @_flash_attn_kernel(%arg0: i32, %arg1: i32, %arg2: i32, %arg3: memref<1x8x1xf32, #tpu.memory_space<vmem>>, %arg4: memref<1x1x8xf32, #tpu.memory_space<vmem>>, %arg5: memref<1x1x8x8xf32, #tpu.memory_space<vmem>>, %arg6: memref<1x1x8x8xf32, #tpu.memory_space<vmem>>, %arg7: memref<1x1x8x8xf32, #tpu.memory_space<vmem>>, %arg8: memref<1x1x8x8xf32, #tpu.memory_space<vmem>>, %arg9: memref<8x1xf32, #tpu.memory_space<vmem>>, %arg10: memref<8x1xf32, #tpu.memory_space<vmem>>, %arg11: memref<8x8xf32, #tpu.memory_space<vmem>>) attributes {dimension_semantics = [#tpu.dimension_semantics<parallel>, #tpu.dimension_semantics<parallel>, #tpu.dimension_semantics<arbitrary>], iteration_bounds = array<i64: 2, 4, 1>, scalar_prefetch = 0 : i64, scratch_operands = 3 : i64, tpu.core_type = #tpu.core_type<tc>, window_params = [{transform_indices = @transform_0, window_bounds = array<i64: 1, 8, 1>}, {transform_indices = @transform_1, window_bounds = array<i64: 1, 1, 8>}, {transform_indices = @transform_2, window_bounds = array<i64: 1, 1, 8, 8>}, {transform_indices = @transform_3, window_bounds = array<i64: 1, 1, 8, 8>}, {transform_indices = @transform_4, window_bounds = array<i64: 1, 1, 8, 8>}, {transform_indices = @transform_5, window_bounds = array<i64: 1, 1, 8, 8>}]} {
    %c0_i32 = arith.constant 0 : i32
    %0 = arith.cmpi eq, %arg2, %c0_i32 : i32
    %1 = arith.extui %0 : i1 to i32
    %c0_i32_0 = arith.constant 0 : i32
    %2 = arith.cmpi ne, %1, %c0_i32_0 : i32
    scf.if %2 {
      %cst_36 = arith.constant 0xFF800000 : f32
      %49 = vector.broadcast %cst_36 : f32 to vector<8x1xf32>
      %c0_37 = arith.constant 0 : index
      %c0_38 = arith.constant 0 : index
      %50 = vector.load %arg9[%c0_37, %c0_38] : memref<8x1xf32, #tpu.memory_space<vmem>>, vector<8x1xf32>
      tpu.vector_store %arg9[%c0_37, %c0_38], %49 {strides = array<i32>} : memref<8x1xf32, #tpu.memory_space<vmem>>, vector<8x1xf32>,
      %cst_39 = arith.constant 0.000000e+00 : f32
      %51 = vector.broadcast %cst_39 : f32 to vector<8x1xf32>
      %c0_40 = arith.constant 0 : index
      %c0_41 = arith.constant 0 : index
      %52 = vector.load %arg10[%c0_40, %c0_41] : memref<8x1xf32, #tpu.memory_space<vmem>>, vector<8x1xf32>
      tpu.vector_store %arg10[%c0_40, %c0_41], %51 {strides = array<i32>} : memref<8x1xf32, #tpu.memory_space<vmem>>, vector<8x1xf32>,
      %cst_42 = arith.constant 0.000000e+00 : f32
      %53 = vector.broadcast %cst_42 : f32 to vector<8x8xf32>
      %c0_43 = arith.constant 0 : index
      %c0_44 = arith.constant 0 : index
      %54 = vector.load %arg11[%c0_43, %c0_44] : memref<8x8xf32, #tpu.memory_space<vmem>>, vector<8x8xf32>
      tpu.vector_store %arg11[%c0_43, %c0_44], %53 {strides = array<i32>} : memref<8x8xf32, #tpu.memory_space<vmem>>, vector<8x8xf32>,
    } else {
    }
    %c0 = arith.constant 0 : index
    %c0_1 = arith.constant 0 : index
    %c0_2 = arith.constant 0 : index
    %c0_3 = arith.constant 0 : index
    %3 = vector.load %arg5[%c0, %c0_1, %c0_2, %c0_3] : memref<1x1x8x8xf32, #tpu.memory_space<vmem>>, vector<1x1x8x8xf32>
    %4 = vector.shape_cast %3 : vector<1x1x8x8xf32> to vector<8x8xf32>
    %5 = arith.truncf %4 : vector<8x8xf32> to vector<8x8xbf16>
    %c0_4 = arith.constant 0 : index
    %c0_5 = arith.constant 0 : index
    %c0_6 = arith.constant 0 : index
    %c0_7 = arith.constant 0 : index
    %6 = vector.load %arg6[%c0_4, %c0_5, %c0_6, %c0_7] : memref<1x1x8x8xf32, #tpu.memory_space<vmem>>, vector<1x1x8x8xf32>
    %7 = vector.shape_cast %6 : vector<1x1x8x8xf32> to vector<8x8xf32>
    %8 = arith.truncf %7 : vector<8x8xf32> to vector<8x8xbf16>
    %cst = arith.constant dense<0.000000e+00> : vector<8x8xf32>
    %9 = tpu.matmul %5, %8, %cst {dimension_numbers = #tpu.dot_dimension_numbers<[1], [1], [0], [0], [0, 0, 1, 0], [], []>} : vector<8x8xbf16>, vector<8x8xbf16>, vector<8x8xf32> -> vector<8x8xf32>
    %cst_8 = arith.constant 0.353553385 : f32
    %10 = vector.broadcast %cst_8 : f32 to vector<8x8xf32>
    %11 = arith.mulf %9, %10 : vector<8x8xf32>
    %c0_9 = arith.constant 0 : index
    %c0_10 = arith.constant 0 : index
    %c0_11 = arith.constant 0 : index
    %12 = vector.load %arg3[%c0_9, %c0_10, %c0_11] : memref<1x8x1xf32, #tpu.memory_space<vmem>>, vector<1x8x1xf32>
    %13 = vector.shape_cast %12 : vector<1x8x1xf32> to vector<8x1xf32>
    %c0_12 = arith.constant 0 : index
    %c0_13 = arith.constant 0 : index
    %c0_14 = arith.constant 0 : index
    %14 = vector.load %arg4[%c0_12, %c0_13, %c0_14] : memref<1x1x8xf32, #tpu.memory_space<vmem>>, vector<1x1x8xf32>
    %15 = vector.shape_cast %14 : vector<1x1x8xf32> to vector<1x8xf32>
    %16 = vector.broadcast %13 : vector<8x1xf32> to vector<8x8xf32>
    %17 = vector.broadcast %15 : vector<1x8xf32> to vector<8x8xf32>
    %18 = arith.addf %16, %17 : vector<8x8xf32>
    %19 = arith.addf %11, %18 : vector<8x8xf32>
    %c0_15 = arith.constant 0 : index
    %c0_16 = arith.constant 0 : index
    %20 = vector.load %arg9[%c0_15, %c0_16] : memref<8x1xf32, #tpu.memory_space<vmem>>, vector<8x1xf32>
    %cst_17 = arith.constant dense<0xFF800000> : vector<8xf32>
    %21 = vector.multi_reduction <maximumf>, %19, %cst_17 [1] : vector<8x8xf32> to vector<8xf32>
    %22 = vector.shape_cast %21 : vector<8xf32> to vector<8x1xf32>
    %23 = arith.maximumf %20, %22 : vector<8x1xf32>
    %24 = arith.subf %20, %23 : vector<8x1xf32>
    %25 = math.exp %24 : vector<8x1xf32>
    %26 = vector.broadcast %23 : vector<8x1xf32> to vector<8x8xf32>
    %27 = arith.subf %19, %26 : vector<8x8xf32>
    %28 = math.exp %27 : vector<8x8xf32>
    %c0_18 = arith.constant 0 : index
    %c0_19 = arith.constant 0 : index
    %29 = vector.load %arg10[%c0_18, %c0_19] : memref<8x1xf32, #tpu.memory_space<vmem>>, vector<8x1xf32>
    %30 = arith.mulf %25, %29 : vector<8x1xf32>
    %cst_20 = arith.constant dense<0.000000e+00> : vector<8xf32>
    %31 = vector.multi_reduction <add>, %28, %cst_20 [1] : vector<8x8xf32> to vector<8xf32>
    %32 = vector.shape_cast %31 : vector<8xf32> to vector<8x1xf32>
    %33 = arith.addf %30, %32 : vector<8x1xf32>
    %c0_21 = arith.constant 0 : index
    %c0_22 = arith.constant 0 : index
    %34 = vector.load %arg10[%c0_21, %c0_22] : memref<8x1xf32, #tpu.memory_space<vmem>>, vector<8x1xf32>
    tpu.vector_store %arg10[%c0_21, %c0_22], %33 {strides = array<i32>} : memref<8x1xf32, #tpu.memory_space<vmem>>, vector<8x1xf32>,
    %c0_23 = arith.constant 0 : index
    %c0_24 = arith.constant 0 : index
    %35 = vector.load %arg11[%c0_23, %c0_24] : memref<8x8xf32, #tpu.memory_space<vmem>>, vector<8x8xf32>
    %36 = vector.broadcast %25 : vector<8x1xf32> to vector<8x8xf32>
    %37 = arith.mulf %36, %35 : vector<8x8xf32>
    %38 = arith.truncf %28 : vector<8x8xf32> to vector<8x8xbf16>
    %c0_25 = arith.constant 0 : index
    %c0_26 = arith.constant 0 : index
    %c0_27 = arith.constant 0 : index
    %c0_28 = arith.constant 0 : index
    %39 = vector.load %arg7[%c0_25, %c0_26, %c0_27, %c0_28] : memref<1x1x8x8xf32, #tpu.memory_space<vmem>>, vector<1x1x8x8xf32>
    %40 = vector.shape_cast %39 : vector<1x1x8x8xf32> to vector<8x8xf32>
    %41 = arith.truncf %40 : vector<8x8xf32> to vector<8x8xbf16>
    %cst_29 = arith.constant dense<0.000000e+00> : vector<8x8xf32>
    %42 = tpu.matmul %38, %41, %cst_29 {dimension_numbers = #tpu.dot_dimension_numbers<[1], [0], [0], [1], [0, 0, 1, 1], [], []>} : vector<8x8xbf16>, vector<8x8xbf16>, vector<8x8xf32> -> vector<8x8xf32>
    %43 = arith.addf %37, %42 : vector<8x8xf32>
    %c0_30 = arith.constant 0 : index
    %c0_31 = arith.constant 0 : index
    %44 = vector.load %arg11[%c0_30, %c0_31] : memref<8x8xf32, #tpu.memory_space<vmem>>, vector<8x8xf32>
    tpu.vector_store %arg11[%c0_30, %c0_31], %43 {strides = array<i32>} : memref<8x8xf32, #tpu.memory_space<vmem>>, vector<8x8xf32>,
    %c0_32 = arith.constant 0 : index
    %c0_33 = arith.constant 0 : index
    %45 = vector.load %arg9[%c0_32, %c0_33] : memref<8x1xf32, #tpu.memory_space<vmem>>, vector<8x1xf32>
    tpu.vector_store %arg9[%c0_32, %c0_33], %23 {strides = array<i32>} : memref<8x1xf32, #tpu.memory_space<vmem>>, vector<8x1xf32>,
    %c0_i32_34 = arith.constant 0 : i32
    %46 = arith.cmpi eq, %arg2, %c0_i32_34 : i32
    %47 = arith.extui %46 : i1 to i32
    %c0_i32_35 = arith.constant 0 : i32
    %48 = arith.cmpi ne, %47, %c0_i32_35 : i32
    scf.if %48 {
      %c0_36 = arith.constant 0 : index
      %c0_37 = arith.constant 0 : index
      %49 = vector.load %arg11[%c0_36, %c0_37] : memref<8x8xf32, #tpu.memory_space<vmem>>, vector<8x8xf32>
      %c0_38 = arith.constant 0 : index
      %c0_39 = arith.constant 0 : index
      %50 = vector.load %arg10[%c0_38, %c0_39] : memref<8x1xf32, #tpu.memory_space<vmem>>, vector<8x1xf32>
      %51 = vector.broadcast %50 : vector<8x1xf32> to vector<8x8xf32>
      %52 = arith.divf %49, %51 : vector<8x8xf32>
      %c0_40 = arith.constant 0 : index
      %c0_41 = arith.constant 0 : index
      %c0_42 = arith.constant 0 : index
      %c0_43 = arith.constant 0 : index
      %53 = vector.load %arg8[%c0_40, %c0_41, %c0_42, %c0_43] : memref<1x1x8x8xf32, #tpu.memory_space<vmem>>, vector<1x1x8x8xf32>
      %54 = vector.shape_cast %53 : vector<1x1x8x8xf32> to vector<8x8xf32>
      %55 = vector.shape_cast %52 : vector<8x8xf32> to vector<1x1x8x8xf32>
      tpu.vector_store %arg8[%c0_40, %c0_41, %c0_42, %c0_43], %55 {strides = array<i32>} : memref<1x1x8x8xf32, #tpu.memory_space<vmem>>, vector<1x1x8x8xf32>,
    } else {
    }
    return
  }
  func.func @transform_0(%arg0: i32, %arg1: i32, %arg2: i32) -> (i32, i32, i32) {
    %c0_i32 = arith.constant 0 : i32
    %c0_i32_0 = arith.constant 0 : i32
    %c0_i32_1 = arith.constant 0 : i32
    return %arg0, %c0_i32, %c0_i32_0 : i32, i32, i32
  }
  func.func @transform_1(%arg0: i32, %arg1: i32, %arg2: i32) -> (i32, i32, i32) {
    %c0_i32 = arith.constant 0 : i32
    %c0_i32_0 = arith.constant 0 : i32
    return %arg0, %c0_i32, %arg2 : i32, i32, i32
  }
  func.func @transform_2(%arg0: i32, %arg1: i32, %arg2: i32) -> (i32, i32, i32, i32) {
    %c0_i32 = arith.constant 0 : i32
    %c0_i32_0 = arith.constant 0 : i32
    %c0_i32_1 = arith.constant 0 : i32
    return %arg0, %arg1, %c0_i32, %c0_i32_0 : i32, i32, i32, i32
  }
  func.func @transform_3(%arg0: i32, %arg1: i32, %arg2: i32) -> (i32, i32, i32, i32) {
    %c0_i32 = arith.constant 0 : i32
    %c0_i32_0 = arith.constant 0 : i32
    return %arg0, %arg1, %arg2, %c0_i32 : i32, i32, i32, i32
  }
  func.func @transform_4(%arg0: i32, %arg1: i32, %arg2: i32) -> (i32, i32, i32, i32) {
    %c0_i32 = arith.constant 0 : i32
    %c0_i32_0 = arith.constant 0 : i32
    return %arg0, %arg1, %arg2, %c0_i32 : i32, i32, i32, i32
  }
  func.func @transform_5(%arg0: i32, %arg1: i32, %arg2: i32) -> (i32, i32, i32, i32) {
    %c0_i32 = arith.constant 0 : i32
    %c0_i32_0 = arith.constant 0 : i32
    %c0_i32_1 = arith.constant 0 : i32
    return %arg0, %arg1, %c0_i32, %c0_i32_0 : i32, i32, i32, i32
  }
}

module attributes {stable_mosaic.version = 11 : i64} {
  func.func @_ffn_ln_kernel(%arg0: i32, %arg1: memref<16x32xf32, #tpu.memory_space<vmem>>, %arg2: memref<32x64xbf16, #tpu.memory_space<vmem>>, %arg3: memref<1x64xf32, #tpu.memory_space<vmem>>, %arg4: memref<64x32xbf16, #tpu.memory_space<vmem>>, %arg5: memref<1x32xf32, #tpu.memory_space<vmem>>, %arg6: memref<1x32xf32, #tpu.memory_space<vmem>>, %arg7: memref<1x32xf32, #tpu.memory_space<vmem>>, %arg8: memref<16x32xf32, #tpu.memory_space<vmem>>) attributes {dimension_semantics = [#tpu.dimension_semantics<parallel>], iteration_bounds = array<i64: 1>, scalar_prefetch = 0 : i64, scratch_operands = 0 : i64, tpu.core_type = #tpu.core_type<tc>, window_params = [{transform_indices = @transform_0, window_bounds = array<i64: 16, 32>}, {pipeline_mode = #tpu.pipeline_mode<synchronous>, transform_indices = @transform_1, window_bounds = array<i64: 32, 64>}, {pipeline_mode = #tpu.pipeline_mode<synchronous>, transform_indices = @transform_2, window_bounds = array<i64: 1, 64>}, {pipeline_mode = #tpu.pipeline_mode<synchronous>, transform_indices = @transform_3, window_bounds = array<i64: 64, 32>}, {pipeline_mode = #tpu.pipeline_mode<synchronous>, transform_indices = @transform_4, window_bounds = array<i64: 1, 32>}, {pipeline_mode = #tpu.pipeline_mode<synchronous>, transform_indices = @transform_5, window_bounds = array<i64: 1, 32>}, {pipeline_mode = #tpu.pipeline_mode<synchronous>, transform_indices = @transform_6, window_bounds = array<i64: 1, 32>}, {transform_indices = @transform_7, window_bounds = array<i64: 16, 32>}]} {
    %c0 = arith.constant 0 : index
    %c0_0 = arith.constant 0 : index
    %0 = vector.load %arg1[%c0, %c0_0] : memref<16x32xf32, #tpu.memory_space<vmem>>, vector<16x32xf32>
    %1 = arith.truncf %0 : vector<16x32xf32> to vector<16x32xbf16>
    %c0_1 = arith.constant 0 : index
    %c0_2 = arith.constant 0 : index
    %2 = vector.load %arg2[%c0_1, %c0_2] : memref<32x64xbf16, #tpu.memory_space<vmem>>, vector<32x64xbf16>
    %cst = arith.constant dense<0.000000e+00> : vector<16x64xf32>
    %3 = tpu.matmul %1, %2, %cst {dimension_numbers = #tpu.dot_dimension_numbers<[1], [0], [0], [1], [0, 0, 1, 1], [], []>} : vector<16x32xbf16>, vector<32x64xbf16>, vector<16x64xf32> -> vector<16x64xf32>
    %c0_3 = arith.constant 0 : index
    %c0_4 = arith.constant 0 : index
    %4 = vector.load %arg3[%c0_3, %c0_4] : memref<1x64xf32, #tpu.memory_space<vmem>>, vector<1x64xf32>
    %5 = vector.broadcast %4 : vector<1x64xf32> to vector<16x64xf32>
    %6 = arith.addf %3, %5 : vector<16x64xf32>
    %cst_5 = arith.constant 0.000000e+00 : f32
    %7 = vector.broadcast %cst_5 : f32 to vector<16x64xf32>
    %8 = arith.maximumf %6, %7 : vector<16x64xf32>
    %9 = arith.truncf %8 : vector<16x64xf32> to vector<16x64xbf16>
    %c0_6 = arith.constant 0 : index
    %c0_7 = arith.constant 0 : index
    %10 = vector.load %arg4[%c0_6, %c0_7] : memref<64x32xbf16, #tpu.memory_space<vmem>>, vector<64x32xbf16>
    %cst_8 = arith.constant dense<0.000000e+00> : vector<16x32xf32>
    %11 = tpu.matmul %9, %10, %cst_8 {dimension_numbers = #tpu.dot_dimension_numbers<[1], [0], [0], [1], [0, 0, 1, 1], [], []>} : vector<16x64xbf16>, vector<64x32xbf16>, vector<16x32xf32> -> vector<16x32xf32>
    %c0_9 = arith.constant 0 : index
    %c0_10 = arith.constant 0 : index
    %12 = vector.load %arg5[%c0_9, %c0_10] : memref<1x32xf32, #tpu.memory_space<vmem>>, vector<1x32xf32>
    %13 = vector.broadcast %12 : vector<1x32xf32> to vector<16x32xf32>
    %14 = arith.addf %11, %13 : vector<16x32xf32>
    %15 = arith.addf %0, %14 : vector<16x32xf32>
    %cst_11 = arith.constant dense<0.000000e+00> : vector<16xf32>
    %16 = vector.multi_reduction <add>, %15, %cst_11 [1] : vector<16x32xf32> to vector<16xf32>
    %17 = vector.shape_cast %16 : vector<16xf32> to vector<16x1xf32>
    %cst_12 = arith.constant 3.200000e+01 : f32
    %18 = vector.broadcast %cst_12 : f32 to vector<16x1xf32>
    %19 = arith.divf %17, %18 : vector<16x1xf32>
    %20 = vector.broadcast %19 : vector<16x1xf32> to vector<16x32xf32>
    %21 = arith.subf %15, %20 : vector<16x32xf32>
    %22 = arith.mulf %21, %21 : vector<16x32xf32>
    %cst_13 = arith.constant dense<0.000000e+00> : vector<16xf32>
    %23 = vector.multi_reduction <add>, %22, %cst_13 [1] : vector<16x32xf32> to vector<16xf32>
    %24 = vector.shape_cast %23 : vector<16xf32> to vector<16x1xf32>
    %cst_14 = arith.constant 3.200000e+01 : f32
    %25 = vector.broadcast %cst_14 : f32 to vector<16x1xf32>
    %26 = arith.divf %24, %25 : vector<16x1xf32>
    %27 = vector.broadcast %19 : vector<16x1xf32> to vector<16x32xf32>
    %28 = arith.subf %15, %27 : vector<16x32xf32>
    %cst_15 = arith.constant 9.99999974E-6 : f32
    %29 = vector.broadcast %cst_15 : f32 to vector<16x1xf32>
    %30 = arith.addf %26, %29 : vector<16x1xf32>
    %31 = math.rsqrt %30 : vector<16x1xf32>
    %32 = vector.broadcast %31 : vector<16x1xf32> to vector<16x32xf32>
    %33 = arith.mulf %28, %32 : vector<16x32xf32>
    %c0_16 = arith.constant 0 : index
    %c0_17 = arith.constant 0 : index
    %34 = vector.load %arg6[%c0_16, %c0_17] : memref<1x32xf32, #tpu.memory_space<vmem>>, vector<1x32xf32>
    %35 = vector.broadcast %34 : vector<1x32xf32> to vector<16x32xf32>
    %36 = arith.mulf %33, %35 : vector<16x32xf32>
    %c0_18 = arith.constant 0 : index
    %c0_19 = arith.constant 0 : index
    %37 = vector.load %arg7[%c0_18, %c0_19] : memref<1x32xf32, #tpu.memory_space<vmem>>, vector<1x32xf32>
    %38 = vector.broadcast %37 : vector<1x32xf32> to vector<16x32xf32>
    %39 = arith.addf %36, %38 : vector<16x32xf32>
    %c0_20 = arith.constant 0 : index
    %c0_21 = arith.constant 0 : index
    %40 = vector.load %arg8[%c0_20, %c0_21] : memref<16x32xf32, #tpu.memory_space<vmem>>, vector<16x32xf32>
    tpu.vector_store %arg8[%c0_20, %c0_21], %39 {strides = array<i32>} : memref<16x32xf32, #tpu.memory_space<vmem>>, vector<16x32xf32>,
    return
  }
  func.func @transform_0(%arg0: i32) -> (i32, i32) {
    %c0_i32 = arith.constant 0 : i32
    %c0_i32_0 = arith.constant 0 : i32
    return %arg0, %c0_i32 : i32, i32
  }
  func.func @transform_1(%arg0: i32) -> (i32, i32) {
    %c0_i32 = arith.constant 0 : i32
    %c0_i32_0 = arith.constant 0 : i32
    %c0_i32_1 = arith.constant 0 : i32
    return %c0_i32, %c0_i32_0 : i32, i32
  }
  func.func @transform_2(%arg0: i32) -> (i32, i32) {
    %c0_i32 = arith.constant 0 : i32
    %c0_i32_0 = arith.constant 0 : i32
    %c0_i32_1 = arith.constant 0 : i32
    return %c0_i32, %c0_i32_0 : i32, i32
  }
  func.func @transform_3(%arg0: i32) -> (i32, i32) {
    %c0_i32 = arith.constant 0 : i32
    %c0_i32_0 = arith.constant 0 : i32
    %c0_i32_1 = arith.constant 0 : i32
    return %c0_i32, %c0_i32_0 : i32, i32
  }
  func.func @transform_4(%arg0: i32) -> (i32, i32) {
    %c0_i32 = arith.constant 0 : i32
    %c0_i32_0 = arith.constant 0 : i32
    %c0_i32_1 = arith.constant 0 : i32
    return %c0_i32, %c0_i32_0 : i32, i32
  }
  func.func @transform_5(%arg0: i32) -> (i32, i32) {
    %c0_i32 = arith.constant 0 : i32
    %c0_i32_0 = arith.constant 0 : i32
    %c0_i32_1 = arith.constant 0 : i32
    return %c0_i32, %c0_i32_0 : i32, i32
  }
  func.func @transform_6(%arg0: i32) -> (i32, i32) {
    %c0_i32 = arith.constant 0 : i32
    %c0_i32_0 = arith.constant 0 : i32
    %c0_i32_1 = arith.constant 0 : i32
    return %c0_i32, %c0_i32_0 : i32, i32
  }
  func.func @transform_7(%arg0: i32) -> (i32, i32) {
    %c0_i32 = arith.constant 0 : i32
    %c0_i32_0 = arith.constant 0 : i32
    return %arg0, %c0_i32 : i32, i32
  }
}

module attributes {stable_mosaic.version = 11 : i64} {
  func.func @_multi_proj_kernel(%arg0: i32, %arg1: i32, %arg2: memref<16x32xf32, #tpu.memory_space<vmem>>, %arg3: memref<32x32xbf16, #tpu.memory_space<vmem>>, %arg4: memref<32x32xbf16, #tpu.memory_space<vmem>>, %arg5: memref<1x32xf32, #tpu.memory_space<vmem>>, %arg6: memref<1x32xf32, #tpu.memory_space<vmem>>, %arg7: memref<16x32xf32, #tpu.memory_space<vmem>>, %arg8: memref<16x32xf32, #tpu.memory_space<vmem>>, %arg9: memref<16x32xf32, #tpu.memory_space<vmem>>, %arg10: memref<16x32xf32, #tpu.memory_space<vmem>>) attributes {dimension_semantics = [#tpu.dimension_semantics<parallel>, #tpu.dimension_semantics<arbitrary>], iteration_bounds = array<i64: 1, 1>, scalar_prefetch = 0 : i64, scratch_operands = 2 : i64, tpu.core_type = #tpu.core_type<tc>, window_params = [{transform_indices = @transform_0, window_bounds = array<i64: 16, 32>}, {transform_indices = @transform_1, window_bounds = array<i64: 32, 32>}, {transform_indices = @transform_2, window_bounds = array<i64: 32, 32>}, {pipeline_mode = #tpu.pipeline_mode<synchronous>, transform_indices = @transform_3, window_bounds = array<i64: 1, 32>}, {pipeline_mode = #tpu.pipeline_mode<synchronous>, transform_indices = @transform_4, window_bounds = array<i64: 1, 32>}, {transform_indices = @transform_5, window_bounds = array<i64: 16, 32>}, {transform_indices = @transform_6, window_bounds = array<i64: 16, 32>}]} {
    %c0_i32 = arith.constant 0 : i32
    %0 = arith.cmpi eq, %arg1, %c0_i32 : i32
    %1 = arith.extui %0 : i1 to i32
    %c0_i32_0 = arith.constant 0 : i32
    %2 = arith.cmpi ne, %1, %c0_i32_0 : i32
    scf.if %2 {
      %cst_17 = arith.constant 0.000000e+00 : f32
      %18 = vector.broadcast %cst_17 : f32 to vector<16x32xf32>
      %c0_18 = arith.constant 0 : index
      %c0_19 = arith.constant 0 : index
      %19 = vector.load %arg9[%c0_18, %c0_19] : memref<16x32xf32, #tpu.memory_space<vmem>>, vector<16x32xf32>
      tpu.vector_store %arg9[%c0_18, %c0_19], %18 {strides = array<i32>} : memref<16x32xf32, #tpu.memory_space<vmem>>, vector<16x32xf32>,
      %cst_20 = arith.constant 0.000000e+00 : f32
      %20 = vector.broadcast %cst_20 : f32 to vector<16x32xf32>
      %c0_21 = arith.constant 0 : index
      %c0_22 = arith.constant 0 : index
      %21 = vector.load %arg10[%c0_21, %c0_22] : memref<16x32xf32, #tpu.memory_space<vmem>>, vector<16x32xf32>
      tpu.vector_store %arg10[%c0_21, %c0_22], %20 {strides = array<i32>} : memref<16x32xf32, #tpu.memory_space<vmem>>, vector<16x32xf32>,
    } else {
    }
    %c0 = arith.constant 0 : index
    %c0_1 = arith.constant 0 : index
    %3 = vector.load %arg2[%c0, %c0_1] : memref<16x32xf32, #tpu.memory_space<vmem>>, vector<16x32xf32>
    %4 = arith.truncf %3 : vector<16x32xf32> to vector<16x32xbf16>
    %c0_2 = arith.constant 0 : index
    %c0_3 = arith.constant 0 : index
    %5 = vector.load %arg9[%c0_2, %c0_3] : memref<16x32xf32, #tpu.memory_space<vmem>>, vector<16x32xf32>
    %c0_4 = arith.constant 0 : index
    %c0_5 = arith.constant 0 : index
    %6 = vector.load %arg3[%c0_4, %c0_5] : memref<32x32xbf16, #tpu.memory_space<vmem>>, vector<32x32xbf16>
    %cst = arith.constant dense<0.000000e+00> : vector<16x32xf32>
    %7 = tpu.matmul %4, %6, %cst {dimension_numbers = #tpu.dot_dimension_numbers<[1], [0], [0], [1], [0, 0, 1, 1], [], []>} : vector<16x32xbf16>, vector<32x32xbf16>, vector<16x32xf32> -> vector<16x32xf32>
    %8 = arith.addf %5, %7 : vector<16x32xf32>
    %c0_6 = arith.constant 0 : index
    %c0_7 = arith.constant 0 : index
    %9 = vector.load %arg9[%c0_6, %c0_7] : memref<16x32xf32, #tpu.memory_space<vmem>>, vector<16x32xf32>
    tpu.vector_store %arg9[%c0_6, %c0_7], %8 {strides = array<i32>} : memref<16x32xf32, #tpu.memory_space<vmem>>, vector<16x32xf32>,
    %c0_8 = arith.constant 0 : index
    %c0_9 = arith.constant 0 : index
    %10 = vector.load %arg10[%c0_8, %c0_9] : memref<16x32xf32, #tpu.memory_space<vmem>>, vector<16x32xf32>
    %c0_10 = arith.constant 0 : index
    %c0_11 = arith.constant 0 : index
    %11 = vector.load %arg4[%c0_10, %c0_11] : memref<32x32xbf16, #tpu.memory_space<vmem>>, vector<32x32xbf16>
    %cst_12 = arith.constant dense<0.000000e+00> : vector<16x32xf32>
    %12 = tpu.matmul %4, %11, %cst_12 {dimension_numbers = #tpu.dot_dimension_numbers<[1], [0], [0], [1], [0, 0, 1, 1], [], []>} : vector<16x32xbf16>, vector<32x32xbf16>, vector<16x32xf32> -> vector<16x32xf32>
    %13 = arith.addf %10, %12 : vector<16x32xf32>
    %c0_13 = arith.constant 0 : index
    %c0_14 = arith.constant 0 : index
    %14 = vector.load %arg10[%c0_13, %c0_14] : memref<16x32xf32, #tpu.memory_space<vmem>>, vector<16x32xf32>
    tpu.vector_store %arg10[%c0_13, %c0_14], %13 {strides = array<i32>} : memref<16x32xf32, #tpu.memory_space<vmem>>, vector<16x32xf32>,
    %c0_i32_15 = arith.constant 0 : i32
    %15 = arith.cmpi eq, %arg1, %c0_i32_15 : i32
    %16 = arith.extui %15 : i1 to i32
    %c0_i32_16 = arith.constant 0 : i32
    %17 = arith.cmpi ne, %16, %c0_i32_16 : i32
    scf.if %17 {
      %c0_17 = arith.constant 0 : index
      %c0_18 = arith.constant 0 : index
      %18 = vector.load %arg9[%c0_17, %c0_18] : memref<16x32xf32, #tpu.memory_space<vmem>>, vector<16x32xf32>
      %c0_19 = arith.constant 0 : index
      %c0_20 = arith.constant 0 : index
      %19 = vector.load %arg5[%c0_19, %c0_20] : memref<1x32xf32, #tpu.memory_space<vmem>>, vector<1x32xf32>
      %20 = vector.broadcast %19 : vector<1x32xf32> to vector<16x32xf32>
      %21 = arith.addf %18, %20 : vector<16x32xf32>
      %c0_21 = arith.constant 0 : index
      %c0_22 = arith.constant 0 : index
      %22 = vector.load %arg7[%c0_21, %c0_22] : memref<16x32xf32, #tpu.memory_space<vmem>>, vector<16x32xf32>
      tpu.vector_store %arg7[%c0_21, %c0_22], %21 {strides = array<i32>} : memref<16x32xf32, #tpu.memory_space<vmem>>, vector<16x32xf32>,
      %c0_23 = arith.constant 0 : index
      %c0_24 = arith.constant 0 : index
      %23 = vector.load %arg10[%c0_23, %c0_24] : memref<16x32xf32, #tpu.memory_space<vmem>>, vector<16x32xf32>
      %c0_25 = arith.constant 0 : index
      %c0_26 = arith.constant 0 : index
      %24 = vector.load %arg6[%c0_25, %c0_26] : memref<1x32xf32, #tpu.memory_space<vmem>>, vector<1x32xf32>
      %25 = vector.broadcast %24 : vector<1x32xf32> to vector<16x32xf32>
      %26 = arith.addf %23, %25 : vector<16x32xf32>
      %c0_27 = arith.constant 0 : index
      %c0_28 = arith.constant 0 : index
      %27 = vector.load %arg8[%c0_27, %c0_28] : memref<16x32xf32, #tpu.memory_space<vmem>>, vector<16x32xf32>
      tpu.vector_store %arg8[%c0_27, %c0_28], %26 {strides = array<i32>} : memref<16x32xf32, #tpu.memory_space<vmem>>, vector<16x32xf32>,
    } else {
    }
    return
  }
  func.func @transform_0(%arg0: i32, %arg1: i32) -> (i32, i32) {
    %c0_i32 = arith.constant 0 : i32
    return %arg0, %arg1 : i32, i32
  }
  func.func @transform_1(%arg0: i32, %arg1: i32) -> (i32, i32) {
    %c0_i32 = arith.constant 0 : i32
    %c0_i32_0 = arith.constant 0 : i32
    return %arg1, %c0_i32 : i32, i32
  }
  func.func @transform_2(%arg0: i32, %arg1: i32) -> (i32, i32) {
    %c0_i32 = arith.constant 0 : i32
    %c0_i32_0 = arith.constant 0 : i32
    return %arg1, %c0_i32 : i32, i32
  }
  func.func @transform_3(%arg0: i32, %arg1: i32) -> (i32, i32) {
    %c0_i32 = arith.constant 0 : i32
    %c0_i32_0 = arith.constant 0 : i32
    %c0_i32_1 = arith.constant 0 : i32
    return %c0_i32, %c0_i32_0 : i32, i32
  }
  func.func @transform_4(%arg0: i32, %arg1: i32) -> (i32, i32) {
    %c0_i32 = arith.constant 0 : i32
    %c0_i32_0 = arith.constant 0 : i32
    %c0_i32_1 = arith.constant 0 : i32
    return %c0_i32, %c0_i32_0 : i32, i32
  }
  func.func @transform_5(%arg0: i32, %arg1: i32) -> (i32, i32) {
    %c0_i32 = arith.constant 0 : i32
    %c0_i32_0 = arith.constant 0 : i32
    return %arg0, %c0_i32 : i32, i32
  }
  func.func @transform_6(%arg0: i32, %arg1: i32) -> (i32, i32) {
    %c0_i32 = arith.constant 0 : i32
    %c0_i32_0 = arith.constant 0 : i32
    return %arg0, %c0_i32 : i32, i32
  }
}

module attributes {stable_mosaic.version = 11 : i64} {
  func.func @_linear_kernel(%arg0: i32, %arg1: i32, %arg2: i32, %arg3: memref<16x32xf32, #tpu.memory_space<vmem>>, %arg4: memref<32x16xbf16, #tpu.memory_space<vmem>>, %arg5: memref<1x16xf32, #tpu.memory_space<vmem>>, %arg6: memref<16x16xf32, #tpu.memory_space<vmem>>, %arg7: memref<16x16xf32, #tpu.memory_space<vmem>>) attributes {dimension_semantics = [#tpu.dimension_semantics<parallel>, #tpu.dimension_semantics<parallel>, #tpu.dimension_semantics<arbitrary>], iteration_bounds = array<i64: 1, 1, 1>, scalar_prefetch = 0 : i64, scratch_operands = 1 : i64, tpu.core_type = #tpu.core_type<tc>, window_params = [{transform_indices = @transform_0, window_bounds = array<i64: 16, 32>}, {transform_indices = @transform_1, window_bounds = array<i64: 32, 16>}, {transform_indices = @transform_2, window_bounds = array<i64: 1, 16>}, {transform_indices = @transform_3, window_bounds = array<i64: 16, 16>}]} {
    %c0_i32 = arith.constant 0 : i32
    %0 = arith.cmpi eq, %arg2, %c0_i32 : i32
    %1 = arith.extui %0 : i1 to i32
    %c0_i32_0 = arith.constant 0 : i32
    %2 = arith.cmpi ne, %1, %c0_i32_0 : i32
    scf.if %2 {
      %cst_10 = arith.constant 0.000000e+00 : f32
      %13 = vector.broadcast %cst_10 : f32 to vector<16x16xf32>
      %c0_11 = arith.constant 0 : index
      %c0_12 = arith.constant 0 : index
      %14 = vector.load %arg7[%c0_11, %c0_12] : memref<16x16xf32, #tpu.memory_space<vmem>>, vector<16x16xf32>
      tpu.vector_store %arg7[%c0_11, %c0_12], %13 {strides = array<i32>} : memref<16x16xf32, #tpu.memory_space<vmem>>, vector<16x16xf32>,
    } else {
    }
    %c0 = arith.constant 0 : index
    %c0_1 = arith.constant 0 : index
    %3 = vector.load %arg7[%c0, %c0_1] : memref<16x16xf32, #tpu.memory_space<vmem>>, vector<16x16xf32>
    %c0_2 = arith.constant 0 : index
    %c0_3 = arith.constant 0 : index
    %4 = vector.load %arg3[%c0_2, %c0_3] : memref<16x32xf32, #tpu.memory_space<vmem>>, vector<16x32xf32>
    %5 = arith.truncf %4 : vector<16x32xf32> to vector<16x32xbf16>
    %c0_4 = arith.constant 0 : index
    %c0_5 = arith.constant 0 : index
    %6 = vector.load %arg4[%c0_4, %c0_5] : memref<32x16xbf16, #tpu.memory_space<vmem>>, vector<32x16xbf16>
    %cst = arith.constant dense<0.000000e+00> : vector<16x16xf32>
    %7 = tpu.matmul %5, %6, %cst {dimension_numbers = #tpu.dot_dimension_numbers<[1], [0], [0], [1], [0, 0, 1, 1], [], []>} : vector<16x32xbf16>, vector<32x16xbf16>, vector<16x16xf32> -> vector<16x16xf32>
    %8 = arith.addf %3, %7 : vector<16x16xf32>
    %c0_6 = arith.constant 0 : index
    %c0_7 = arith.constant 0 : index
    %9 = vector.load %arg7[%c0_6, %c0_7] : memref<16x16xf32, #tpu.memory_space<vmem>>, vector<16x16xf32>
    tpu.vector_store %arg7[%c0_6, %c0_7], %8 {strides = array<i32>} : memref<16x16xf32, #tpu.memory_space<vmem>>, vector<16x16xf32>,
    %c0_i32_8 = arith.constant 0 : i32
    %10 = arith.cmpi eq, %arg2, %c0_i32_8 : i32
    %11 = arith.extui %10 : i1 to i32
    %c0_i32_9 = arith.constant 0 : i32
    %12 = arith.cmpi ne, %11, %c0_i32_9 : i32
    scf.if %12 {
      %c0_10 = arith.constant 0 : index
      %c0_11 = arith.constant 0 : index
      %13 = vector.load %arg7[%c0_10, %c0_11] : memref<16x16xf32, #tpu.memory_space<vmem>>, vector<16x16xf32>
      %c0_12 = arith.constant 0 : index
      %c0_13 = arith.constant 0 : index
      %14 = vector.load %arg5[%c0_12, %c0_13] : memref<1x16xf32, #tpu.memory_space<vmem>>, vector<1x16xf32>
      %15 = vector.broadcast %14 : vector<1x16xf32> to vector<16x16xf32>
      %16 = arith.addf %13, %15 : vector<16x16xf32>
      %c0_14 = arith.constant 0 : index
      %c0_15 = arith.constant 0 : index
      %17 = vector.load %arg6[%c0_14, %c0_15] : memref<16x16xf32, #tpu.memory_space<vmem>>, vector<16x16xf32>
      tpu.vector_store %arg6[%c0_14, %c0_15], %16 {strides = array<i32>} : memref<16x16xf32, #tpu.memory_space<vmem>>, vector<16x16xf32>,
    } else {
    }
    return
  }
  func.func @transform_0(%arg0: i32, %arg1: i32, %arg2: i32) -> (i32, i32) {
    %c0_i32 = arith.constant 0 : i32
    return %arg0, %arg2 : i32, i32
  }
  func.func @transform_1(%arg0: i32, %arg1: i32, %arg2: i32) -> (i32, i32) {
    %c0_i32 = arith.constant 0 : i32
    return %arg2, %arg1 : i32, i32
  }
  func.func @transform_2(%arg0: i32, %arg1: i32, %arg2: i32) -> (i32, i32) {
    %c0_i32 = arith.constant 0 : i32
    %c0_i32_0 = arith.constant 0 : i32
    return %c0_i32, %arg1 : i32, i32
  }
  func.func @transform_3(%arg0: i32, %arg1: i32, %arg2: i32) -> (i32, i32) {
    %c0_i32 = arith.constant 0 : i32
    return %arg0, %arg1 : i32, i32
  }
}

</mosaic_0001>

<llo_original>
// kernel: tpu_custom_call.1
$region0: #{tpu_custom_call.1}
  #allocation0 [shape = 'u32[]', space=smem, size = 0x4, offset = 0x4, fixed_abs, tag = 'smem constant byte address 0x4 - core index']
  #allocation1 [shape = 'u32[72,128]{1,0:T(1,128)}', space=vmem, size = 0x9000, scoped, tag = 'internal scratch']
  %s0 = inlined_call_operand.hbm [shape: f32[8,128], index: 0, kind: input, shape index: {}]
  %s1 = inlined_call_operand.hbm [shape: f32[8,128], index: 1, kind: output, shape index: {}]
  %s2 = sld [smem:[#allocation0]]
  $region41: #{tpu_custom_call.1} parent=0
    _
  %s4 = ssub.s32 1, %s2
  %s5 = scalar_select 0, %s4, %s2
  $region1: #{tpu_custom_call.1} parent=0
    #allocation2 [shape = 'u8[4096]{0}', space=vmem, size = 0x1000, scoped, tag = 'input window, operand 0, single buffered']
    #allocation3 [shape = 's32[2]{0}', space=sflag, size = 0x8, scoped, tag = 'scoped memory for tpu_custom_call.1']
    #allocation4 [shape = 's32[2]{0}', space=sflag, size = 0x8, scoped, tag = 'scoped memory for tpu_custom_call.1']
    #allocation5 [shape = 'u8[4096]{0}', space=vmem, size = 0x1000, scoped, tag = 'output window, operand 0, single buffered']
    %6 = vsyncpa [#allocation3], 0
    %7 = vsyncpa [#allocation4], 0
    loop: start=0, step=1, limit=4
    $region2: #{tpu_custom_call.1} parent=1 // loop_pre_header
      _
    $region3: #{tpu_custom_call.1} parent=1 // loop_header
      %s9 = sphi 0, %s13
      %p10 = scmp.ge.s32.totalorder %s9, 4
      %s17 = sphi 0, %s17
      %s19 = sphi 0, %s17
      %s20 = sphi 0, %s19
      %s34 = sphi 0, %s20
      %s38 = sphi 0, %s38
      %s40 = sphi 0, %s38
      %s41 = sphi 0, %s40
      %s55 = sphi 0, %s41
    $region4: #{tpu_custom_call.1} parent=1 // loop_header_branch
      %12 = sbr.rel (%p10) target = $region8
    $region5: #{tpu_custom_call.1} parent=1 // loop_body
      %s14 = ssub.s32 %s9, 1
      %s15 = ssub.s32 %s9, 2
      %s16 = sadd.s32 %s9, 1
      %s18 = sadd.s32 %s17, 1
      %p21 = scmp.eq.s32.totalorder %s9, 1
      %p22 = scmp.ne.s32.totalorder %s17, %s19
      %p23 = scmp.eq.s32.totalorder %s9, 0
      %p24 = por %p22, %p23
      %p25 = scmp.ne.s32.totalorder %s17, %s19
      %p26 = scmp.eq.s32.totalorder %s14, 1
      %p27 = por %p25, %p26
      %p28 = scmp.ne.s32.totalorder %s19, %s20
      %p29 = scmp.eq.s32.totalorder %s14, 0
      %p30 = por %p28, %p29
      %p31 = scmp.ne.s32.totalorder %s19, %s20
      %p32 = scmp.eq.s32.totalorder %s15, 1
      %p33 = por %p31, %p32
      %p35 = scmp.ne.s32.totalorder %s20, %s34
      %p36 = scmp.eq.s32.totalorder %s15, 0
      %p37 = por %p35, %p36
      %s39 = sadd.s32 %s38, 1
      %p42 = scmp.eq.s32.totalorder %s9, 1
      %p43 = scmp.ne.s32.totalorder %s38, %s40
      %p44 = scmp.eq.s32.totalorder %s9, 0
      %p45 = por %p43, %p44
      %p46 = scmp.ne.s32.totalorder %s38, %s40
      %p47 = scmp.eq.s32.totalorder %s14, 1
      %p48 = por %p46, %p47
      %p49 = scmp.ne.s32.totalorder %s40, %s41
      %p50 = scmp.eq.s32.totalorder %s14, 0
      %p51 = por %p49, %p50
      %p52 = scmp.ne.s32.totalorder %s40, %s41
      %p53 = scmp.eq.s32.totalorder %s15, 1
      %p54 = por %p52, %p53
      %p56 = scmp.ne.s32.totalorder %s41, %s55
      %p57 = scmp.eq.s32.totalorder %s15, 0
      %p58 = por %p56, %p57
      %p59 = scmp.le.s32.totalorder 1, %s9
      %p60 = scmp.lt.s32.totalorder %s9, 3
      %p61 = pnand %p59, %p60
      %p62 = pneg %p61
      // Predicated region
      $region9: #{tpu_custom_call.1} parent=5 // pred_check
        _
      $region10: #{tpu_custom_call.1} parent=5 // pred_check_branch
        %64 = sbr.rel (%p61) target = $region12
      $region11: #{tpu_custom_call.1} parent=5 // pred_region
        %s65 = ssub.s32 %s9, 1
        // Predicated region
        $region13: #{tpu_custom_call.1} parent=11 // pred_check
          %p66 = pneg %p30
        $region14: #{tpu_custom_call.1} parent=11 // pred_check_branch
          %68 = sbr.rel (%p66) target = $region16
        $region15: #{tpu_custom_call.1} parent=11 // pred_region
          %70 = vsyncadd [#allocation3], 0
          %s72 = sshll.u32 %s0, 4
          %s73 = int_to_ptr.hbm [resolvable:$true] %s72
          %s74 = sshll.u32 [#allocation2], 4
          %s75 = int_to_ptr.vmem [resolvable:$true] %s74
          %77 = dma.hbm_to_vmem [thread:$0]  %s73, 128, %s75, [#allocation3]
        $region16: #{tpu_custom_call.1} parent=11 // pred_fallthru
          _
      $region12: #{tpu_custom_call.1} parent=5 // pred_fallthru
        _
      %p78 = scmp.lt.s32.totalorder %s9, 2
      // Predicated region
      $region17: #{tpu_custom_call.1} parent=5 // pred_check
        %p79 = pneg %p78
      $region18: #{tpu_custom_call.1} parent=5 // pred_check_branch
        %81 = sbr.rel (%p79) target = $region20
      $region19: #{tpu_custom_call.1} parent=5 // pred_region
        _
      $region20: #{tpu_custom_call.1} parent=5 // pred_fallthru
        _
      %p82 = scmp.le.s32.totalorder 1, %s9
      %p83 = scmp.lt.s32.totalorder %s9, 3
      %p84 = pnand %p82, %p83
      %p85 = pneg %p84
      // Predicated region
      $region21: #{tpu_custom_call.1} parent=5 // pred_check
        _
      $region22: #{tpu_custom_call.1} parent=5 // pred_check_branch
        %87 = sbr.rel (%p84) target = $region24
      $region23: #{tpu_custom_call.1} parent=5 // pred_region
        %s88 = ssub.s32 %s9, 1
        // Predicated region
        $region25: #{tpu_custom_call.1} parent=23 // pred_check
          %p89 = pneg %p30
        $region26: #{tpu_custom_call.1} parent=23 // pred_check_branch
          %91 = sbr.rel (%p89) target = $region28
        $region27: #{tpu_custom_call.1} parent=23 // pred_region
          %93 = dma.done [#allocation3], 128
        $region28: #{tpu_custom_call.1} parent=23 // pred_fallthru
          _
        %p94 = pneg %p30
        %p95 = pneg %p27
        %p96 = pneg %p51
        %p97 = pneg %p48
        %v98 = vld [vmem:[#allocation2] sm:$0xff]
        %v99 = vadd.f32 %v98, 1.0
        %100 = vst [vmem:[#allocation5] sm:$0xff] %v99
        // Predicated region
        $region29: #{tpu_custom_call.1} parent=23 // pred_check
          %p101 = pneg %p48
        $region30: #{tpu_custom_call.1} parent=23 // pred_check_branch
          %103 = sbr.rel (%p101) target = $region32
        $region31: #{tpu_custom_call.1} parent=23 // pred_region
          %105 = vsyncadd [#allocation4], 0
          %s107 = sshll.u32 [#allocation5], 4
          %s108 = int_to_ptr.vmem [resolvable:$true] %s107
          %s109 = sshll.u32 %s1, 4
          %s110 = int_to_ptr.hbm [resolvable:$true] %s109
          %112 = dma.vmem_to_hbm [thread:$0]  %s108, 128, %s110, [#allocation4]
        $region32: #{tpu_custom_call.1} parent=23 // pred_fallthru
          _
        // Predicated region
        $region33: #{tpu_custom_call.1} parent=23 // pred_check
          %p113 = pneg %p48
        $region34: #{tpu_custom_call.1} parent=23 // pred_check_branch
          %115 = sbr.rel (%p113) target = $region36
        $region35: #{tpu_custom_call.1} parent=23 // pred_region
          %117 = dma.done [#allocation4], 128
        $region36: #{tpu_custom_call.1} parent=23 // pred_fallthru
          _
      $region24: #{tpu_custom_call.1} parent=5 // pred_fallthru
        _
      %p118 = scmp.le.s32.totalorder 2, %s9
      // Predicated region
      $region37: #{tpu_custom_call.1} parent=5 // pred_check
        %p119 = pneg %p118
      $region38: #{tpu_custom_call.1} parent=5 // pred_check_branch
        %121 = sbr.rel (%p119) target = $region40
      $region39: #{tpu_custom_call.1} parent=5 // pred_region
        %s122 = ssub.s32 %s9, 2
      $region40: #{tpu_custom_call.1} parent=5 // pred_fallthru
        _
    $region6: #{tpu_custom_call.1} parent=1 // loop_footer
      %s13 = sadd.s32 1, %s9
    $region7: #{tpu_custom_call.1} parent=1 // loop_footer_branch
      %8 = sbr.rel target = $region3
    $region8: #{tpu_custom_call.1} parent=1 // loop_exit
      _
    %123 = vsyncpa [#allocation3], 1
    %s124 = scalar_lea.sflag [#allocation3], 1
    %125 = vsyncpa %s124, 1
    %126 = vsyncpa [#allocation4], 1
    %s127 = scalar_lea.sflag [#allocation4], 1
    %128 = vsyncpa %s127, 1

// kernel: transformer_forward.27
$region0: #{transformer_forward.27}
  #allocation0 [shape = 'u32[]', space=smem, size = 0x4, offset = 0x4, fixed_abs, tag = 'smem constant byte address 0x4 - core index']
  #allocation1 [shape = 'u32[72,128]{1,0:T(1,128)}', space=vmem, size = 0x9000, scoped, tag = 'internal scratch']
  #allocation2 [shape = 'f32[16,32]{1,0:T(8,128)}', space=vmem, size = 0x2000, scoped, tag = 'scratch operand']
  %s0 = inlined_call_operand.vmem [shape: f32[16,16], index: 0, kind: input, shape index: {}]
  %s1 = inlined_call_operand.vmem [shape: bf16[16,32], index: 1, kind: input, shape index: {}]
  %s2 = inlined_call_operand.vmem [shape: f32[1,32], index: 2, kind: input, shape index: {}]
  %s3 = inlined_call_operand.vmem [shape: f32[16,32], index: 3, kind: output, shape index: {}]
  %s4 = sld [smem:[#allocation0]]
  $region30: #{transformer_forward.27} parent=0
    _
  %s6 = ssub.s32 1, %s4
  %s7 = scalar_select 0, %s6, %s4
  // Predicated region
  $region2: #{transformer_forward.27} parent=0 // pred_check
    _
  $region3: #{transformer_forward.27} parent=0 // pred_check_branch
    %9 = sbr.rel (0) target = $region5
  $region4: #{transformer_forward.27} parent=0 // pred_region
    _
  $region5: #{transformer_forward.27} parent=0 // pred_fallthru
    _
  // Predicated region
  $region6: #{transformer_forward.27} parent=0 // pred_check
    _
  $region7: #{transformer_forward.27} parent=0 // pred_check_branch
    %11 = sbr.rel (0) target = $region9
  $region8: #{transformer_forward.27} parent=0 // pred_region
    _
  $region9: #{transformer_forward.27} parent=0 // pred_fallthru
    _
  // Predicated region
  $region10: #{transformer_forward.27} parent=0 // pred_check
    _
  $region11: #{transformer_forward.27} parent=0 // pred_check_branch
    %13 = sbr.rel (0) target = $region13
  $region12: #{transformer_forward.27} parent=0 // pred_region
    _
  $region13: #{transformer_forward.27} parent=0 // pred_fallthru
    _
  %p15 = scmp.eq.s32.totalorder 0, 0
  // Predicated region
  $region14: #{transformer_forward.27} parent=0 // pred_check
    %p16 = pneg %p15
  $region15: #{transformer_forward.27} parent=0 // pred_check_branch
    %18 = sbr.rel (%p16) target = $region17
  $region16: #{transformer_forward.27} parent=0 // pred_region
    %vm19 = vcmask 261120
    %20 = vst.msk [vmem:[#allocation2] sm:$0xff] %vm19, 0.0
    %21 = vst.msk [vmem:[#allocation2 + $0x8] sm:$0xff] %vm19, 0.0
  $region17: #{transformer_forward.27} parent=0 // pred_fallthru
    _
  %v22 = vld [vmem:[#allocation2] sm:$0xff]
  %v23 = vld [vmem:[#allocation2 + $0x8] sm:$0xff]
  %v24 = vld [vmem:[%s0] sm:$0xff]
  %v25 = vld [vmem:[%s0 + $0x8] sm:$0xff]
  %v26 = vpack.c.bf16 %v25, %v24
  %v27 = vld [vmem:[%s1] sm:$0xf]
  %v28 = vld [vmem:[%s1 + $0x4] sm:$0xf]
  %v31 = vunpack.c.l.b16 %v27
  %v32 = vunpack.c.l.b16 %v28
  %v33 = vpack.c.b16 %v32, %v31
  %vm35 = vcmask 130048
  %v37 = vsel %vm35, %v26, 0
  %39 = vmatpush.bf16.msra.mxu0 0
  %40 = vmatpush.bf16.msra.mxu0 0
  %41 = vmatpush.bf16.msra.mxu0 0
  %42 = vmatpush.bf16.msra.mxu0 0
  %43 = vmatpush.bf16.msra.mxu0 0
  %44 = vmatpush.bf16.msra.mxu0 0
  %45 = vmatpush.bf16.msra.mxu0 0
  %46 = vmatpush.bf16.msra.mxu0 %v33
  %47 = vmatmul.bf16.gmra.mxu0 %v37
  %v48 = vpop.f32.mrf.mxu0
  %v49 = vadd.f32 0.0, %v48
  %v50 = vpop.f32.mrf.mxu0
  %v51 = vadd.f32 0.0, %v50
  %52 = vdwg.mxu0
  %v53 = vadd.f32 %v22, %v49
  %v54 = vadd.f32 %v23, %v51
  %vm55 = vcmask 261120
  %56 = vst.msk [vmem:[#allocation2] sm:$0xff] %vm55, %v53
  %57 = vst.msk [vmem:[#allocation2 + $0x8] sm:$0xff] %vm55, %v54
  // Predicated region
  $region18: #{transformer_forward.27} parent=0 // pred_check
    %p58 = pneg %p15
  $region19: #{transformer_forward.27} parent=0 // pred_check_branch
    %60 = sbr.rel (%p58) target = $region21
  $region20: #{transformer_forward.27} parent=0 // pred_region
    %v61 = vld [vmem:[#allocation2] sm:$0xff]
    %v62 = vld [vmem:[#allocation2 + $0x8] sm:$0xff]
    %v63 = vld [vmem:[%s2] sm:$0x1]
    %v65 = vperm.slane %v63, 0
    %v67 = vadd.f32 %v61, %v65
    %v68 = vadd.f32 %v62, %v65
    %69 = vst.msk [vmem:[%s3] sm:$0xff] %vm55, %v67
    %70 = vst.msk [vmem:[%s3 + $0x8] sm:$0xff] %vm55, %v68
  $region21: #{transformer_forward.27} parent=0 // pred_fallthru
    _
  // Predicated region
  $region22: #{transformer_forward.27} parent=0 // pred_check
    _
  $region23: #{transformer_forward.27} parent=0 // pred_check_branch
    %72 = sbr.rel (0) target = $region25
  $region24: #{transformer_forward.27} parent=0 // pred_region
    _
  $region25: #{transformer_forward.27} parent=0 // pred_fallthru
    _
  // Predicated region
  $region26: #{transformer_forward.27} parent=0 // pred_check
    _
  $region27: #{transformer_forward.27} parent=0 // pred_check_branch
    %74 = sbr.rel (0) target = $region29
  $region28: #{transformer_forward.27} parent=0 // pred_region
    _
  $region29: #{transformer_forward.27} parent=0 // pred_fallthru
    _

// kernel: transformer_forward.37
$region0: #{transformer_forward.37}
  #allocation0 [shape = 'u32[]', space=smem, size = 0x4, offset = 0x4, fixed_abs, tag = 'smem constant byte address 0x4 - core index']
  #allocation1 [shape = 'u32[72,128]{1,0:T(1,128)}', space=vmem, size = 0x9000, scoped, tag = 'internal scratch']
  #allocation2 [shape = 'f32[16,32]{1,0:T(8,128)}', space=vmem, size = 0x2000, scoped, tag = 'scratch operand']
  #allocation3 [shape = 'f32[16,32]{1,0:T(8,128)}', space=vmem, size = 0x2000, scoped, tag = 'scratch operand']
  #allocation4 [shape = 'f32[16,32]{1,0:T(8,128)}', space=vmem, size = 0x2000, scoped, tag = 'scratch operand']
  %s0 = inlined_call_operand.vmem [shape: f32[16,32], index: 0, kind: input, shape index: {}]
  %s1 = inlined_call_operand.vmem [shape: bf16[32,32], index: 1, kind: input, shape index: {}]
  %s2 = inlined_call_operand.vmem [shape: bf16[32,32], index: 2, kind: input, shape index: {}]
  %s3 = inlined_call_operand.vmem [shape: bf16[32,32], index: 3, kind: input, shape index: {}]
  %s4 = inlined_call_operand.vmem [shape: f32[1,32], index: 4, kind: input, shape index: {}]
  %s5 = inlined_call_operand.vmem [shape: f32[1,32], index: 5, kind: input, shape index: {}]
  %s6 = inlined_call_operand.vmem [shape: f32[1,32], index: 6, kind: input, shape index: {}]
  %s7 = inlined_call_operand.vmem [shape: f32[16,32], index: 7, kind: output, shape index: {0}]
  %s8 = inlined_call_operand.vmem [shape: f32[16,32], index: 8, kind: output, shape index: {1}]
  %s9 = inlined_call_operand.vmem [shape: f32[16,32], index: 9, kind: output, shape index: {2}]
  %10 = xla_tuple %s7, %s8, %s9
  %s11 = sld [smem:[#allocation0]]
  $region62: #{transformer_forward.37} parent=0
    _
  %s13 = ssub.s32 1, %s11
  %s14 = scalar_select 0, %s13, %s11
  // Predicated region
  $region2: #{transformer_forward.37} parent=0 // pred_check
    _
  $region3: #{transformer_forward.37} parent=0 // pred_check_branch
    %16 = sbr.rel (0) target = $region5
  $region4: #{transformer_forward.37} parent=0 // pred_region
    _
  $region5: #{transformer_forward.37} parent=0 // pred_fallthru
    _
  // Predicated region
  $region6: #{transformer_forward.37} parent=0 // pred_check
    _
  $region7: #{transformer_forward.37} parent=0 // pred_check_branch
    %18 = sbr.rel (0) target = $region9
  $region8: #{transformer_forward.37} parent=0 // pred_region
    _
  $region9: #{transformer_forward.37} parent=0 // pred_fallthru
    _
  // Predicated region
  $region10: #{transformer_forward.37} parent=0 // pred_check
    _
  $region11: #{transformer_forward.37} parent=0 // pred_check_branch
    %20 = sbr.rel (0) target = $region13
  $region12: #{transformer_forward.37} parent=0 // pred_region
    _
  $region13: #{transformer_forward.37} parent=0 // pred_fallthru
    _
  // Predicated region
  $region14: #{transformer_forward.37} parent=0 // pred_check
    _
  $region15: #{transformer_forward.37} parent=0 // pred_check_branch
    %22 = sbr.rel (0) target = $region17
  $region16: #{transformer_forward.37} parent=0 // pred_region
    _
  $region17: #{transformer_forward.37} parent=0 // pred_fallthru
    _
  // Predicated region
  $region18: #{transformer_forward.37} parent=0 // pred_check
    _
  $region19: #{transformer_forward.37} parent=0 // pred_check_branch
    %24 = sbr.rel (0) target = $region21
  $region20: #{transformer_forward.37} parent=0 // pred_region
    _
  $region21: #{transformer_forward.37} parent=0 // pred_fallthru
    _
  // Predicated region
  $region22: #{transformer_forward.37} parent=0 // pred_check
    _
  $region23: #{transformer_forward.37} parent=0 // pred_check_branch
    %26 = sbr.rel (0) target = $region25
  $region24: #{transformer_forward.37} parent=0 // pred_region
    _
  $region25: #{transformer_forward.37} parent=0 // pred_fallthru
    _
  // Predicated region
  $region26: #{transformer_forward.37} parent=0 // pred_check
    _
  $region27: #{transformer_forward.37} parent=0 // pred_check_branch
    %28 = sbr.rel (0) target = $region29
  $region28: #{transformer_forward.37} parent=0 // pred_region
    _
  $region29: #{transformer_forward.37} parent=0 // pred_fallthru
    _
  %p30 = scmp.eq.s32.totalorder 0, 0
  // Predicated region
  $region30: #{transformer_forward.37} parent=0 // pred_check
    %p31 = pneg %p30
  $region31: #{transformer_forward.37} parent=0 // pred_check_branch
    %33 = sbr.rel (%p31) target = $region33
  $region32: #{transformer_forward.37} parent=0 // pred_region
    %vm34 = vcmask 261120
    %35 = vst.msk [vmem:[#allocation2] sm:$0xff] %vm34, 0.0
    %36 = vst.msk [vmem:[#allocation2 + $0x8] sm:$0xff] %vm34, 0.0
    %37 = vst.msk [vmem:[#allocation3] sm:$0xff] %vm34, 0.0
    %38 = vst.msk [vmem:[#allocation3 + $0x8] sm:$0xff] %vm34, 0.0
    %39 = vst.msk [vmem:[#allocation4] sm:$0xff] %vm34, 0.0
    %40 = vst.msk [vmem:[#allocation4 + $0x8] sm:$0xff] %vm34, 0.0
  $region33: #{transformer_forward.37} parent=0 // pred_fallthru
    _
  %v41 = vld [vmem:[%s0] sm:$0xff]
  %v42 = vld [vmem:[%s0 + $0x8] sm:$0xff]
  %v43 = vpack.c.bf16 %v42, %v41
  %v44 = vld [vmem:[#allocation2] sm:$0xff]
  %v45 = vld [vmem:[#allocation2 + $0x8] sm:$0xff]
  %v46 = vld [vmem:[%s1] sm:$0xf]
  %v47 = vld [vmem:[%s1 + $0x4] sm:$0xf]
  %v48 = vld [vmem:[%s1 + $0x8] sm:$0xf]
  %v49 = vld [vmem:[%s1 + $0xc] sm:$0xf]
  %v54 = vunpack.c.l.b16 %v46
  %v55 = vunpack.c.l.b16 %v47
  %v56 = vunpack.c.l.b16 %v48
  %v57 = vunpack.c.l.b16 %v49
  %v58 = vpack.c.b16 %v55, %v54
  %v59 = vpack.c.b16 %v57, %v56
  %vm62 = vcmask 261120
  %v64 = vsel %vm62, %v43, 0
  %66 = vmatpush.bf16.msra.mxu0 0
  %67 = vmatpush.bf16.msra.mxu0 0
  %68 = vmatpush.bf16.msra.mxu0 0
  %69 = vmatpush.bf16.msra.mxu0 0
  %70 = vmatpush.bf16.msra.mxu0 0
  %71 = vmatpush.bf16.msra.mxu0 0
  %72 = vmatpush.bf16.msra.mxu0 %v59
  %73 = vmatpush.bf16.msra.mxu0 %v58
  %74 = vmatmul.bf16.gmra.mxu0 %v64
  %v75 = vpop.f32.mrf.mxu0
  %v76 = vadd.f32 0.0, %v75
  %v77 = vpop.f32.mrf.mxu0
  %v78 = vadd.f32 0.0, %v77
  %79 = vdwg.mxu0
  %v80 = vadd.f32 %v44, %v76
  %v81 = vadd.f32 %v45, %v78
  %82 = vst.msk [vmem:[#allocation2] sm:$0xff] %vm62, %v80
  %83 = vst.msk [vmem:[#allocation2 + $0x8] sm:$0xff] %vm62, %v81
  %v84 = vld [vmem:[#allocation3] sm:$0xff]
  %v85 = vld [vmem:[#allocation3 + $0x8] sm:$0xff]
  %v86 = vld [vmem:[%s2] sm:$0xf]
  %v87 = vld [vmem:[%s2 + $0x4] sm:$0xf]
  %v88 = vld [vmem:[%s2 + $0x8] sm:$0xf]
  %v89 = vld [vmem:[%s2 + $0xc] sm:$0xf]
  %v94 = vunpack.c.l.b16 %v86
  %v95 = vunpack.c.l.b16 %v87
  %v96 = vunpack.c.l.b16 %v88
  %v97 = vunpack.c.l.b16 %v89
  %v98 = vpack.c.b16 %v95, %v94
  %v99 = vpack.c.b16 %v97, %v96
  %102 = vmatpush.bf16.msra.mxu0 0
  %103 = vmatpush.bf16.msra.mxu0 0
  %104 = vmatpush.bf16.msra.mxu0 0
  %105 = vmatpush.bf16.msra.mxu0 0
  %106 = vmatpush.bf16.msra.mxu0 0
  %107 = vmatpush.bf16.msra.mxu0 0
  %108 = vmatpush.bf16.msra.mxu0 %v99
  %109 = vmatpush.bf16.msra.mxu0 %v98
  %110 = vmatmul.bf16.gmra.mxu0 %v64
  %v111 = vpop.f32.mrf.mxu0
  %v112 = vadd.f32 0.0, %v111
  %v113 = vpop.f32.mrf.mxu0
  %v114 = vadd.f32 0.0, %v113
  %115 = vdwg.mxu0
  %v116 = vadd.f32 %v84, %v112
  %v117 = vadd.f32 %v85, %v114
  %118 = vst.msk [vmem:[#allocation3] sm:$0xff] %vm62, %v116
  %119 = vst.msk [vmem:[#allocation3 + $0x8] sm:$0xff] %vm62, %v117
  %v120 = vld [vmem:[#allocation4] sm:$0xff]
  %v121 = vld [vmem:[#allocation4 + $0x8] sm:$0xff]
  %v122 = vld [vmem:[%s3] sm:$0xf]
  %v123 = vld [vmem:[%s3 + $0x4] sm:$0xf]
  %v124 = vld [vmem:[%s3 + $0x8] sm:$0xf]
  %v125 = vld [vmem:[%s3 + $0xc] sm:$0xf]
  %v130 = vunpack.c.l.b16 %v122
  %v131 = vunpack.c.l.b16 %v123
  %v132 = vunpack.c.l.b16 %v124
  %v133 = vunpack.c.l.b16 %v125
  %v134 = vpack.c.b16 %v131, %v130
  %v135 = vpack.c.b16 %v133, %v132
  %138 = vmatpush.bf16.msra.mxu0 0
  %139 = vmatpush.bf16.msra.mxu0 0
  %140 = vmatpush.bf16.msra.mxu0 0
  %141 = vmatpush.bf16.msra.mxu0 0
  %142 = vmatpush.bf16.msra.mxu0 0
  %143 = vmatpush.bf16.msra.mxu0 0
  %144 = vmatpush.bf16.msra.mxu0 %v135
  %145 = vmatpush.bf16.msra.mxu0 %v134
  %146 = vmatmul.bf16.gmra.mxu0 %v64
  %v147 = vpop.f32.mrf.mxu0
  %v148 = vadd.f32 0.0, %v147
  %v149 = vpop.f32.mrf.mxu0
  %v150 = vadd.f32 0.0, %v149
  %151 = vdwg.mxu0
  %v152 = vadd.f32 %v120, %v148
  %v153 = vadd.f32 %v121, %v150
  %154 = vst.msk [vmem:[#allocation4] sm:$0xff] %vm62, %v152
  %155 = vst.msk [vmem:[#allocation4 + $0x8] sm:$0xff] %vm62, %v153
  // Predicated region
  $region34: #{transformer_forward.37} parent=0 // pred_check
    %p156 = pneg %p30
  $region35: #{transformer_forward.37} parent=0 // pred_check_branch
    %158 = sbr.rel (%p156) target = $region37
  $region36: #{transformer_forward.37} parent=0 // pred_region
    %v159 = vld [vmem:[#allocation2] sm:$0xff]
    %v160 = vld [vmem:[#allocation2 + $0x8] sm:$0xff]
    %v161 = vld [vmem:[%s4] sm:$0x1]
    %v163 = vperm.slane %v161, 0
    %v165 = vadd.f32 %v159, %v163
    %v166 = vadd.f32 %v160, %v163
    %167 = vst.msk [vmem:[%s7] sm:$0xff] %vm62, %v165
    %168 = vst.msk [vmem:[%s7 + $0x8] sm:$0xff] %vm62, %v166
    %v169 = vld [vmem:[#allocation3] sm:$0xff]
    %v170 = vld [vmem:[#allocation3 + $0x8] sm:$0xff]
    %v171 = vld [vmem:[%s5] sm:$0x1]
    %v173 = vperm.slane %v171, 0
    %v175 = vadd.f32 %v169, %v173
    %v176 = vadd.f32 %v170, %v173
    %177 = vst.msk [vmem:[%s8] sm:$0xff] %vm62, %v175
    %178 = vst.msk [vmem:[%s8 + $0x8] sm:$0xff] %vm62, %v176
    %v179 = vld [vmem:[#allocation4] sm:$0xff]
    %v180 = vld [vmem:[#allocation4 + $0x8] sm:$0xff]
    %v181 = vld [vmem:[%s6] sm:$0x1]
    %v183 = vperm.slane %v181, 0
    %v185 = vadd.f32 %v179, %v183
    %v186 = vadd.f32 %v180, %v183
    %187 = vst.msk [vmem:[%s9] sm:$0xff] %vm62, %v185
    %188 = vst.msk [vmem:[%s9 + $0x8] sm:$0xff] %vm62, %v186
  $region37: #{transformer_forward.37} parent=0 // pred_fallthru
    _
  // Predicated region
  $region38: #{transformer_forward.37} parent=0 // pred_check
    _
  $region39: #{transformer_forward.37} parent=0 // pred_check_branch
    %190 = sbr.rel (0) target = $region41
  $region40: #{transformer_forward.37} parent=0 // pred_region
    _
  $region41: #{transformer_forward.37} parent=0 // pred_fallthru
    _
  // Predicated region
  $region42: #{transformer_forward.37} parent=0 // pred_check
    _
  $region43: #{transformer_forward.37} parent=0 // pred_check_branch
    %192 = sbr.rel (0) target = $region45
  $region44: #{transformer_forward.37} parent=0 // pred_region
    _
  $region45: #{transformer_forward.37} parent=0 // pred_fallthru
    _
  // Predicated region
  $region46: #{transformer_forward.37} parent=0 // pred_check
    _
  $region47: #{transformer_forward.37} parent=0 // pred_check_branch
    %194 = sbr.rel (0) target = $region49
  $region48: #{transformer_forward.37} parent=0 // pred_region
    _
  $region49: #{transformer_forward.37} parent=0 // pred_fallthru
    _
  // Predicated region
  $region50: #{transformer_forward.37} parent=0 // pred_check
    _
  $region51: #{transformer_forward.37} parent=0 // pred_check_branch
    %196 = sbr.rel (0) target = $region53
  $region52: #{transformer_forward.37} parent=0 // pred_region
    _
  $region53: #{transformer_forward.37} parent=0 // pred_fallthru
    _
  // Predicated region
  $region54: #{transformer_forward.37} parent=0 // pred_check
    _
  $region55: #{transformer_forward.37} parent=0 // pred_check_branch
    %198 = sbr.rel (0) target = $region57
  $region56: #{transformer_forward.37} parent=0 // pred_region
    _
  $region57: #{transformer_forward.37} parent=0 // pred_fallthru
    _
  // Predicated region
  $region58: #{transformer_forward.37} parent=0 // pred_check
    _
  $region59: #{transformer_forward.37} parent=0 // pred_check_branch
    %200 = sbr.rel (0) target = $region61
  $region60: #{transformer_forward.37} parent=0 // pred_region
    _
  $region61: #{transformer_forward.37} parent=0 // pred_fallthru
    _

// kernel: transformer_forward.39
$region0: #{transformer_forward.39}
  #allocation0 [shape = 'u32[]', space=smem, size = 0x4, offset = 0x4, fixed_abs, tag = 'smem constant byte address 0x4 - core index']
  #allocation1 [shape = 'u32[72,128]{1,0:T(1,128)}', space=vmem, size = 0x9000, scoped, tag = 'internal scratch']
  #allocation2 [shape = 'f32[16,32]{1,0:T(8,128)}', space=vmem, size = 0x2000, scoped, tag = 'scratch operand']
  %s0 = inlined_call_operand.vmem [shape: f32[16,32], index: 0, kind: input, shape index: {}]
  %s1 = inlined_call_operand.vmem [shape: bf16[32,32], index: 1, kind: input, shape index: {}]
  %s2 = inlined_call_operand.vmem [shape: f32[1,32], index: 2, kind: input, shape index: {}]
  %s3 = inlined_call_operand.vmem [shape: f32[16,32], index: 3, kind: input, shape index: {}]
  %s4 = inlined_call_operand.vmem [shape: f32[1,32], index: 4, kind: input, shape index: {}]
  %s5 = inlined_call_operand.vmem [shape: f32[1,32], index: 5, kind: input, shape index: {}]
  %s6 = inlined_call_operand.vmem [shape: f32[16,32], index: 6, kind: output, shape index: {}]
  %s7 = sld [smem:[#allocation0]]
  $region42: #{transformer_forward.39} parent=0
    _
  %s9 = ssub.s32 1, %s7
  %s10 = scalar_select 0, %s9, %s7
  // Predicated region
  $region2: #{transformer_forward.39} parent=0 // pred_check
    _
  $region3: #{transformer_forward.39} parent=0 // pred_check_branch
    %12 = sbr.rel (0) target = $region5
  $region4: #{transformer_forward.39} parent=0 // pred_region
    _
  $region5: #{transformer_forward.39} parent=0 // pred_fallthru
    _
  // Predicated region
  $region6: #{transformer_forward.39} parent=0 // pred_check
    _
  $region7: #{transformer_forward.39} parent=0 // pred_check_branch
    %14 = sbr.rel (0) target = $region9
  $region8: #{transformer_forward.39} parent=0 // pred_region
    _
  $region9: #{transformer_forward.39} parent=0 // pred_fallthru
    _
  // Predicated region
  $region10: #{transformer_forward.39} parent=0 // pred_check
    _
  $region11: #{transformer_forward.39} parent=0 // pred_check_branch
    %16 = sbr.rel (0) target = $region13
  $region12: #{transformer_forward.39} parent=0 // pred_region
    _
  $region13: #{transformer_forward.39} parent=0 // pred_fallthru
    _
  // Predicated region
  $region14: #{transformer_forward.39} parent=0 // pred_check
    _
  $region15: #{transformer_forward.39} parent=0 // pred_check_branch
    %18 = sbr.rel (0) target = $region17
  $region16: #{transformer_forward.39} parent=0 // pred_region
    _
  $region17: #{transformer_forward.39} parent=0 // pred_fallthru
    _
  // Predicated region
  $region18: #{transformer_forward.39} parent=0 // pred_check
    _
  $region19: #{transformer_forward.39} parent=0 // pred_check_branch
    %20 = sbr.rel (0) target = $region21
  $region20: #{transformer_forward.39} parent=0 // pred_region
    _
  $region21: #{transformer_forward.39} parent=0 // pred_fallthru
    _
  // Predicated region
  $region22: #{transformer_forward.39} parent=0 // pred_check
    _
  $region23: #{transformer_forward.39} parent=0 // pred_check_branch
    %22 = sbr.rel (0) target = $region25
  $region24: #{transformer_forward.39} parent=0 // pred_region
    _
  $region25: #{transformer_forward.39} parent=0 // pred_fallthru
    _
  %p24 = scmp.eq.s32.totalorder 0, 0
  // Predicated region
  $region26: #{transformer_forward.39} parent=0 // pred_check
    %p25 = pneg %p24
  $region27: #{transformer_forward.39} parent=0 // pred_check_branch
    %27 = sbr.rel (%p25) target = $region29
  $region28: #{transformer_forward.39} parent=0 // pred_region
    %vm28 = vcmask 261120
    %29 = vst.msk [vmem:[#allocation2] sm:$0xff] %vm28, 0.0
    %30 = vst.msk [vmem:[#allocation2 + $0x8] sm:$0xff] %vm28, 0.0
  $region29: #{transformer_forward.39} parent=0 // pred_fallthru
    _
  %v31 = vld [vmem:[#allocation2] sm:$0xff]
  %v32 = vld [vmem:[#allocation2 + $0x8] sm:$0xff]
  %v33 = vld [vmem:[%s0] sm:$0xff]
  %v34 = vld [vmem:[%s0 + $0x8] sm:$0xff]
  %v35 = vpack.c.bf16 %v34, %v33
  %v36 = vld [vmem:[%s1] sm:$0xf]
  %v37 = vld [vmem:[%s1 + $0x4] sm:$0xf]
  %v38 = vld [vmem:[%s1 + $0x8] sm:$0xf]
  %v39 = vld [vmem:[%s1 + $0xc] sm:$0xf]
  %v44 = vunpack.c.l.b16 %v36
  %v45 = vunpack.c.l.b16 %v37
  %v46 = vunpack.c.l.b16 %v38
  %v47 = vunpack.c.l.b16 %v39
  %v48 = vpack.c.b16 %v45, %v44
  %v49 = vpack.c.b16 %v47, %v46
  %vm52 = vcmask 261120
  %v54 = vsel %vm52, %v35, 0
  %56 = vmatpush.bf16.msra.mxu0 0
  %57 = vmatpush.bf16.msra.mxu0 0
  %58 = vmatpush.bf16.msra.mxu0 0
  %59 = vmatpush.bf16.msra.mxu0 0
  %60 = vmatpush.bf16.msra.mxu0 0
  %61 = vmatpush.bf16.msra.mxu0 0
  %62 = vmatpush.bf16.msra.mxu0 %v49
  %63 = vmatpush.bf16.msra.mxu0 %v48
  %64 = vmatmul.bf16.gmra.mxu0 %v54
  %v65 = vpop.f32.mrf.mxu0
  %v66 = vadd.f32 0.0, %v65
  %v67 = vpop.f32.mrf.mxu0
  %v68 = vadd.f32 0.0, %v67
  %69 = vdwg.mxu0
  %v70 = vadd.f32 %v31, %v66
  %v71 = vadd.f32 %v32, %v68
  %72 = vst.msk [vmem:[#allocation2] sm:$0xff] %vm52, %v70
  %73 = vst.msk [vmem:[#allocation2 + $0x8] sm:$0xff] %vm52, %v71
  // Predicated region
  $region30: #{transformer_forward.39} parent=0 // pred_check
    %p74 = pneg %p24
  $region31: #{transformer_forward.39} parent=0 // pred_check_branch
    %76 = sbr.rel (%p74) target = $region33
  $region32: #{transformer_forward.39} parent=0 // pred_region
    %v77 = vld [vmem:[#allocation2] sm:$0xff]
    %v78 = vld [vmem:[#allocation2 + $0x8] sm:$0xff]
    %v79 = vld [vmem:[%s2] sm:$0x1]
    %v81 = vperm.slane %v79, 0
    %v83 = vadd.f32 %v77, %v81
    %v84 = vadd.f32 %v78, %v81
    %v85 = vld [vmem:[%s3] sm:$0xff]
    %v86 = vld [vmem:[%s3 + $0x8] sm:$0xff]
    %v87 = vadd.f32 %v83, %v85
    %v88 = vadd.f32 %v84, %v86
    %v89 = vsel %vm52, %v87, 0.0
    %90 = vadd.xlane.f32.xlu0 %v89
    %v91 = vpop.xlane.xlu0 %90
    %v92 = vsel %vm52, %v88, 0.0
    %93 = vadd.xlane.f32.xlu0 %v92
    %v94 = vpop.xlane.xlu0 %93
    %v95 = vrcp.pop 32.0
    %v96 = vmul.f32 32.0, %v95
    %v97 = vsub.f32 1.0, %v96
    %v98 = vmul.f32 %v95, %v97
    %v99 = vadd.f32 %v95, %v98
    %vm100 = vweird.f32 %v95
    %v101 = vsel %vm100, %v95, %v99
    %v102 = vmul.f32 %v91, %v101
    %v103 = vmul.f32 %v94, %v101
    %v104 = vsub.f32 %v87, %v102
    %v105 = vsub.f32 %v88, %v103
    %v106 = vmul.f32 %v104, %v104
    %v107 = vmul.f32 %v105, %v105
    %v108 = vsel %vm52, %v106, 0.0
    %109 = vadd.xlane.f32.xlu0 %v108
    %v110 = vpop.xlane.xlu0 %109
    %v111 = vsel %vm52, %v107, 0.0
    %112 = vadd.xlane.f32.xlu0 %v111
    %v113 = vpop.xlane.xlu0 %112
    %v114 = vmul.f32 %v110, %v101
    %v115 = vmul.f32 %v113, %v101
    %v116 = vadd.f32 %v114, 1e-05
    %v117 = vadd.f32 %v115, 1e-05
    %v118 = vrsqrt.pop %v116
    %v119 = vmul.f32 %v118, %v116
    %v120 = vmul.f32 %v119, %v118
    %v121 = vmul.f32 0.5, %v120
    %v122 = vsub.f32 1.5, %v121
    %v123 = vmul.f32 %v118, %v122
    %vm124 = vweird.f32 %v116
    %vm125 = vweird.f32 %v118
    %vm126 = vmor %vm124, %vm125
    %v127 = vsel %vm126, %v118, %v123
    %v128 = vrsqrt.pop %v117
    %v129 = vmul.f32 %v128, %v117
    %v130 = vmul.f32 %v129, %v128
    %v131 = vmul.f32 0.5, %v130
    %v132 = vsub.f32 1.5, %v131
    %v133 = vmul.f32 %v128, %v132
    %vm134 = vweird.f32 %v117
    %vm135 = vweird.f32 %v128
    %vm136 = vmor %vm134, %vm135
    %v137 = vsel %vm136, %v128, %v133
    %v138 = vmul.f32 %v104, %v127
    %v139 = vmul.f32 %v105, %v137
    %v140 = vld [vmem:[%s4] sm:$0x1]
    %v142 = vperm.slane %v140, 0
    %v144 = vmul.f32 %v138, %v142
    %v145 = vmul.f32 %v139, %v142
    %v146 = vld [vmem:[%s5] sm:$0x1]
    %v148 = vperm.slane %v146, 0
    %v150 = vadd.f32 %v144, %v148
    %v151 = vadd.f32 %v145, %v148
    %152 = vst.msk [vmem:[%s6] sm:$0xff] %vm52, %v150
    %153 = vst.msk [vmem:[%s6 + $0x8] sm:$0xff] %vm52, %v151
  $region33: #{transformer_forward.39} parent=0 // pred_fallthru
    _
  // Predicated region
  $region34: #{transformer_forward.39} parent=0 // pred_check
    _
  $region35: #{transformer_forward.39} parent=0 // pred_check_branch
    %155 = sbr.rel (0) target = $region37
  $region36: #{transformer_forward.39} parent=0 // pred_region
    _
  $region37: #{transformer_forward.39} parent=0 // pred_fallthru
    _
  // Predicated region
  $region38: #{transformer_forward.39} parent=0 // pred_check
    _
  $region39: #{transformer_forward.39} parent=0 // pred_check_branch
    %157 = sbr.rel (0) target = $region41
  $region40: #{transformer_forward.39} parent=0 // pred_region
    _
  $region41: #{transformer_forward.39} parent=0 // pred_fallthru
    _

// kernel: transformer_forward.38
$region0: #{transformer_forward.38}
  #allocation0 [shape = 'u32[]', space=smem, size = 0x4, offset = 0x4, fixed_abs, tag = 'smem constant byte address 0x4 - core index']
  #allocation1 [shape = 'u32[72,128]{1,0:T(1,128)}', space=vmem, size = 0x9000, scoped, tag = 'internal scratch']
  #allocation2 [shape = 'f32[8,1]{1,0:T(8,128)}', space=vmem, size = 0x1000, scoped, tag = 'scratch operand']
  #allocation3 [shape = 'f32[8,1]{1,0:T(8,128)}', space=vmem, size = 0x1000, scoped, tag = 'scratch operand']
  #allocation4 [shape = 'f32[8,8]{1,0:T(8,128)}', space=vmem, size = 0x1000, scoped, tag = 'scratch operand']
  %s0 = inlined_call_operand.vmem [shape: f32[2,8,1], index: 0, kind: input, shape index: {}]
  %s1 = inlined_call_operand.vmem [shape: f32[2,1,8], index: 1, kind: input, shape index: {}]
  %s2 = inlined_call_operand.vmem [shape: f32[2,4,8,8], index: 2, kind: input, shape index: {}]
  %s3 = inlined_call_operand.vmem [shape: f32[2,4,8,8], index: 3, kind: input, shape index: {}]
  %s4 = inlined_call_operand.vmem [shape: f32[2,4,8,8], index: 4, kind: input, shape index: {}]
  %s5 = inlined_call_operand.vmem [shape: f32[2,4,8,8], index: 5, kind: output, shape index: {}]
  %s6 = sld [smem:[#allocation0]]
  $region61: #{transformer_forward.38} parent=0
    _
  %s8 = ssub.s32 1, %s6
  %s9 = scalar_select 0, %s8, %s6
  loop: start=0, step=1, limit=10
  $region2: #{transformer_forward.38} parent=0 // loop_pre_header
    _
  $region3: #{transformer_forward.38} parent=0 // loop_header
    %s11 = sphi 0, %s15
    %p12 = scmp.ge.s32.totalorder %s11, 10
    %s18 = sphi 0, %s37
    %s19 = sphi 0, %s33
    %s20 = sphi 0, %s29
    %s21 = sphi 0, %s18
    %s22 = sphi 0, %s19
    %s23 = sphi 0, %s20
    %s24 = sphi 0, %s21
    %s25 = sphi 0, %s22
    %s26 = sphi 0, %s23
    %s40 = sphi 0, %s42
    %s43 = sphi 0, %s40
    %s44 = sphi 0, %s43
    %s60 = sphi 0, %s44
    %s68 = sphi 0, %s70
    %s71 = sphi 0, %s68
    %s72 = sphi 0, %s71
    %s88 = sphi 0, %s72
    %s96 = sphi 0, %s98
    %s99 = sphi 0, %s96
    %s100 = sphi 0, %s99
    %s116 = sphi 0, %s100
    %s126 = sphi 0, %s128
    %s129 = sphi 0, %s126
    %s130 = sphi 0, %s129
    %s146 = sphi 0, %s130
    %s156 = sphi 0, %s158
    %s159 = sphi 0, %s156
    %s160 = sphi 0, %s159
    %s176 = sphi 0, %s160
    %s184 = sphi 0, %s186
    %s187 = sphi 0, %s184
    %s188 = sphi 0, %s187
    %s204 = sphi 0, %s188
  $region4: #{transformer_forward.38} parent=0 // loop_header_branch
    %14 = sbr.rel (%p12) target = $region8
  $region5: #{transformer_forward.38} parent=0 // loop_body
    %s16 = ssub.s32 %s11, 1
    %s17 = ssub.s32 %s11, 2
    %s27 = sadd.s32 1, %s20
    %p28 = scmp.ge.s32.totalorder %s27, 1
    %s29 = scalar_select %p28, 0, %s27
    %s30 = sadd.s32 1, %s19
    %s31 = scalar_select %p28, %s30, %s19
    %p32 = scmp.ge.s32.totalorder %s31, 4
    %s33 = scalar_select %p32, 0, %s31
    %s34 = sadd.s32 1, %s18
    %s35 = scalar_select %p32, %s34, %s18
    %p36 = scmp.ge.s32.totalorder %s35, 2
    %s37 = scalar_select %p36, 0, %s35
    %s38 = ssub.s32 %s18, %s37
    %p39 = scmp.eq.s32.totalorder %s38, 0
    %s41 = sadd.s32 %s40, 1
    %s42 = scalar_select %p39, %s40, %s41
    %p45 = pneg %p39
    %p46 = scmp.eq.s32.totalorder %s11, 7
    %p47 = por %p45, %p46
    %p48 = scmp.ne.s32.totalorder %s40, %s43
    %p49 = scmp.eq.s32.totalorder %s11, 0
    %p50 = por %p48, %p49
    %p51 = scmp.ne.s32.totalorder %s40, %s43
    %p52 = scmp.eq.s32.totalorder %s16, 7
    %p53 = por %p51, %p52
    %p54 = scmp.ne.s32.totalorder %s43, %s44
    %p55 = scmp.eq.s32.totalorder %s16, 0
    %p56 = por %p54, %p55
    %p57 = scmp.ne.s32.totalorder %s43, %s44
    %p58 = scmp.eq.s32.totalorder %s17, 7
    %p59 = por %p57, %p58
    %p61 = scmp.ne.s32.totalorder %s44, %s60
    %p62 = scmp.eq.s32.totalorder %s17, 0
    %p63 = por %p61, %p62
    %s64 = ssub.s32 %s18, %s37
    %s65 = ssub.s32 %s20, %s29
    %s66 = sor.u32 %s64, %s65
    %p67 = scmp.eq.s32.totalorder %s66, 0
    %s69 = sadd.s32 %s68, 1
    %s70 = scalar_select %p67, %s68, %s69
    %p73 = pneg %p67
    %p74 = scmp.eq.s32.totalorder %s11, 7
    %p75 = por %p73, %p74
    %p76 = scmp.ne.s32.totalorder %s68, %s71
    %p77 = scmp.eq.s32.totalorder %s11, 0
    %p78 = por %p76, %p77
    %p79 = scmp.ne.s32.totalorder %s68, %s71
    %p80 = scmp.eq.s32.totalorder %s16, 7
    %p81 = por %p79, %p80
    %p82 = scmp.ne.s32.totalorder %s71, %s72
    %p83 = scmp.eq.s32.totalorder %s16, 0
    %p84 = por %p82, %p83
    %p85 = scmp.ne.s32.totalorder %s71, %s72
    %p86 = scmp.eq.s32.totalorder %s17, 7
    %p87 = por %p85, %p86
    %p89 = scmp.ne.s32.totalorder %s72, %s88
    %p90 = scmp.eq.s32.totalorder %s17, 0
    %p91 = por %p89, %p90
    %s92 = ssub.s32 %s18, %s37
    %s93 = ssub.s32 %s19, %s33
    %s94 = sor.u32 %s92, %s93
    %p95 = scmp.eq.s32.totalorder %s94, 0
    %s97 = sadd.s32 %s96, 1
    %s98 = scalar_select %p95, %s96, %s97
    %p101 = pneg %p95
    %p102 = scmp.eq.s32.totalorder %s11, 7
    %p103 = por %p101, %p102
    %p104 = scmp.ne.s32.totalorder %s96, %s99
    %p105 = scmp.eq.s32.totalorder %s11, 0
    %p106 = por %p104, %p105
    %p107 = scmp.ne.s32.totalorder %s96, %s99
    %p108 = scmp.eq.s32.totalorder %s16, 7
    %p109 = por %p107, %p108
    %p110 = scmp.ne.s32.totalorder %s99, %s100
    %p111 = scmp.eq.s32.totalorder %s16, 0
    %p112 = por %p110, %p111
    %p113 = scmp.ne.s32.totalorder %s99, %s100
    %p114 = scmp.eq.s32.totalorder %s17, 7
    %p115 = por %p113, %p114
    %p117 = scmp.ne.s32.totalorder %s100, %s116
    %p118 = scmp.eq.s32.totalorder %s17, 0
    %p119 = por %p117, %p118
    %s120 = ssub.s32 %s18, %s37
    %s121 = ssub.s32 %s19, %s33
    %s122 = sor.u32 %s120, %s121
    %s123 = ssub.s32 %s20, %s29
    %s124 = sor.u32 %s122, %s123
    %p125 = scmp.eq.s32.totalorder %s124, 0
    %s127 = sadd.s32 %s126, 1
    %s128 = scalar_select %p125, %s126, %s127
    %p131 = pneg %p125
    %p132 = scmp.eq.s32.totalorder %s11, 7
    %p133 = por %p131, %p132
    %p134 = scmp.ne.s32.totalorder %s126, %s129
    %p135 = scmp.eq.s32.totalorder %s11, 0
    %p136 = por %p134, %p135
    %p137 = scmp.ne.s32.totalorder %s126, %s129
    %p138 = scmp.eq.s32.totalorder %s16, 7
    %p139 = por %p137, %p138
    %p140 = scmp.ne.s32.totalorder %s129, %s130
    %p141 = scmp.eq.s32.totalorder %s16, 0
    %p142 = por %p140, %p141
    %p143 = scmp.ne.s32.totalorder %s129, %s130
    %p144 = scmp.eq.s32.totalorder %s17, 7
    %p145 = por %p143, %p144
    %p147 = scmp.ne.s32.totalorder %s130, %s146
    %p148 = scmp.eq.s32.totalorder %s17, 0
    %p149 = por %p147, %p148
    %s150 = ssub.s32 %s18, %s37
    %s151 = ssub.s32 %s19, %s33
    %s152 = sor.u32 %s150, %s151
    %s153 = ssub.s32 %s20, %s29
    %s154 = sor.u32 %s152, %s153
    %p155 = scmp.eq.s32.totalorder %s154, 0
    %s157 = sadd.s32 %s156, 1
    %s158 = scalar_select %p155, %s156, %s157
    %p161 = pneg %p155
    %p162 = scmp.eq.s32.totalorder %s11, 7
    %p163 = por %p161, %p162
    %p164 = scmp.ne.s32.totalorder %s156, %s159
    %p165 = scmp.eq.s32.totalorder %s11, 0
    %p166 = por %p164, %p165
    %p167 = scmp.ne.s32.totalorder %s156, %s159
    %p168 = scmp.eq.s32.totalorder %s16, 7
    %p169 = por %p167, %p168
    %p170 = scmp.ne.s32.totalorder %s159, %s160
    %p171 = scmp.eq.s32.totalorder %s16, 0
    %p172 = por %p170, %p171
    %p173 = scmp.ne.s32.totalorder %s159, %s160
    %p174 = scmp.eq.s32.totalorder %s17, 7
    %p175 = por %p173, %p174
    %p177 = scmp.ne.s32.totalorder %s160, %s176
    %p178 = scmp.eq.s32.totalorder %s17, 0
    %p179 = por %p177, %p178
    %s180 = ssub.s32 %s18, %s37
    %s181 = ssub.s32 %s19, %s33
    %s182 = sor.u32 %s180, %s181
    %p183 = scmp.eq.s32.totalorder %s182, 0
    %s185 = sadd.s32 %s184, 1
    %s186 = scalar_select %p183, %s184, %s185
    %p189 = pneg %p183
    %p190 = scmp.eq.s32.totalorder %s11, 7
    %p191 = por %p189, %p190
    %p192 = scmp.ne.s32.totalorder %s184, %s187
    %p193 = scmp.eq.s32.totalorder %s11, 0
    %p194 = por %p192, %p193
    %p195 = scmp.ne.s32.totalorder %s184, %s187
    %p196 = scmp.eq.s32.totalorder %s16, 7
    %p197 = por %p195, %p196
    %p198 = scmp.ne.s32.totalorder %s187, %s188
    %p199 = scmp.eq.s32.totalorder %s16, 0
    %p200 = por %p198, %p199
    %p201 = scmp.ne.s32.totalorder %s187, %s188
    %p202 = scmp.eq.s32.totalorder %s17, 7
    %p203 = por %p201, %p202
    %p205 = scmp.ne.s32.totalorder %s188, %s204
    %p206 = scmp.eq.s32.totalorder %s17, 0
    %p207 = por %p205, %p206
    %p208 = scmp.le.s32.totalorder 1, %s11
    %p209 = scmp.lt.s32.totalorder %s11, 9
    %p210 = pnand %p208, %p209
    %p211 = pneg %p210
    // Predicated region
    $region9: #{transformer_forward.38} parent=5 // pred_check
      _
    $region10: #{transformer_forward.38} parent=5 // pred_check_branch
      %213 = sbr.rel (%p210) target = $region12
    $region11: #{transformer_forward.38} parent=5 // pred_region
      %s214 = ssub.s32 %s11, 1
    $region12: #{transformer_forward.38} parent=5 // pred_fallthru
      _
    %p215 = scmp.lt.s32.totalorder %s11, 8
    // Predicated region
    $region13: #{transformer_forward.38} parent=5 // pred_check
      %p216 = pneg %p215
    $region14: #{transformer_forward.38} parent=5 // pred_check_branch
      %218 = sbr.rel (%p216) target = $region16
    $region15: #{transformer_forward.38} parent=5 // pred_region
      // Predicated region
      $region17: #{transformer_forward.38} parent=15 // pred_check
        %p219 = pneg %p50
      $region18: #{transformer_forward.38} parent=15 // pred_check_branch
        %221 = sbr.rel (%p219) target = $region20
      $region19: #{transformer_forward.38} parent=15 // pred_region
        %p222 = scmp.lt.s32.totalorder %s18, 1
        %s223 = scalar_select %p222, %s18, 1
        %s224 = smul.addr %s223, 8
        %s225 = scalar_lea.vmem %s0, %s224
      $region20: #{transformer_forward.38} parent=15 // pred_fallthru
        _
      // Predicated region
      $region21: #{transformer_forward.38} parent=15 // pred_check
        %p226 = pneg %p78
      $region22: #{transformer_forward.38} parent=15 // pred_check_branch
        %228 = sbr.rel (%p226) target = $region24
      $region23: #{transformer_forward.38} parent=15 // pred_region
        %p229 = scmp.lt.s32.totalorder %s18, 1
        %s230 = scalar_select %p229, %s18, 1
        %p231 = scmp.lt.s32.totalorder %s20, 0
        %s232 = scalar_select %p231, %s20, 0
        %s233 = sadd.s32 %s232, %s230
        %s234 = scalar_lea.vmem %s1, %s233
      $region24: #{transformer_forward.38} parent=15 // pred_fallthru
        _
      // Predicated region
      $region25: #{transformer_forward.38} parent=15 // pred_check
        %p235 = pneg %p106
      $region26: #{transformer_forward.38} parent=15 // pred_check_branch
        %237 = sbr.rel (%p235) target = $region28
      $region27: #{transformer_forward.38} parent=15 // pred_region
        %p238 = scmp.lt.s32.totalorder %s18, 1
        %s239 = scalar_select %p238, %s18, 1
        %p240 = scmp.lt.s32.totalorder %s19, 3
        %s241 = scalar_select %p240, %s19, 3
        %s242 = smul.addr %s239, 4
        %s243 = sadd.s32 %s241, %s242
        %s244 = smul.addr %s243, 8
        %s245 = scalar_lea.vmem %s2, %s244
      $region28: #{transformer_forward.38} parent=15 // pred_fallthru
        _
      // Predicated region
      $region29: #{transformer_forward.38} parent=15 // pred_check
        %p246 = pneg %p136
      $region30: #{transformer_forward.38} parent=15 // pred_check_branch
        %248 = sbr.rel (%p246) target = $region32
      $region31: #{transformer_forward.38} parent=15 // pred_region
        %p249 = scmp.lt.s32.totalorder %s18, 1
        %s250 = scalar_select %p249, %s18, 1
        %p251 = scmp.lt.s32.totalorder %s19, 3
        %s252 = scalar_select %p251, %s19, 3
        %p253 = scmp.lt.s32.totalorder %s20, 0
        %s254 = scalar_select %p253, %s20, 0
        %s255 = sadd.s32 %s254, %s252
        %s256 = smul.addr %s250, 4
        %s257 = sadd.s32 %s255, %s256
        %s258 = smul.addr %s257, 8
        %s259 = scalar_lea.vmem %s3, %s258
      $region32: #{transformer_forward.38} parent=15 // pred_fallthru
        _
      // Predicated region
      $region33: #{transformer_forward.38} parent=15 // pred_check
        %p260 = pneg %p166
      $region34: #{transformer_forward.38} parent=15 // pred_check_branch
        %262 = sbr.rel (%p260) target = $region36
      $region35: #{transformer_forward.38} parent=15 // pred_region
        %p263 = scmp.lt.s32.totalorder %s18, 1
        %s264 = scalar_select %p263, %s18, 1
        %p265 = scmp.lt.s32.totalorder %s19, 3
        %s266 = scalar_select %p265, %s19, 3
        %p267 = scmp.lt.s32.totalorder %s20, 0
        %s268 = scalar_select %p267, %s20, 0
        %s269 = sadd.s32 %s268, %s266
        %s270 = smul.addr %s264, 4
        %s271 = sadd.s32 %s269, %s270
        %s272 = smul.addr %s271, 8
        %s273 = scalar_lea.vmem %s4, %s272
      $region36: #{transformer_forward.38} parent=15 // pred_fallthru
        _
    $region16: #{transformer_forward.38} parent=5 // pred_fallthru
      _
    %p274 = scmp.le.s32.totalorder 1, %s11
    %p275 = scmp.lt.s32.totalorder %s11, 9
    %p276 = pnand %p274, %p275
    %p277 = pneg %p276
    // Predicated region
    $region37: #{transformer_forward.38} parent=5 // pred_check
      _
    $region38: #{transformer_forward.38} parent=5 // pred_check_branch
      %279 = sbr.rel (%p276) target = $region40
    $region39: #{transformer_forward.38} parent=5 // pred_region
      %s280 = ssub.s32 %s11, 1
      %p281 = scmp.lt.s32.totalorder %s21, 1
      %s282 = scalar_select %p281, %s21, 1
      %s283 = smul.addr %s282, 8
      %s284 = scalar_lea.vmem %s0, %s283
      %p285 = pneg %p56
      %p286 = pneg %p53
      %p287 = scmp.lt.s32.totalorder %s21, 1
      %s288 = scalar_select %p287, %s21, 1
      %p289 = scmp.lt.s32.totalorder %s23, 0
      %s290 = scalar_select %p289, %s23, 0
      %s291 = sadd.s32 %s290, %s288
      %s292 = scalar_lea.vmem %s1, %s291
      %p293 = pneg %p84
      %p294 = pneg %p81
      %p295 = scmp.lt.s32.totalorder %s21, 1
      %s296 = scalar_select %p295, %s21, 1
      %p297 = scmp.lt.s32.totalorder %s22, 3
      %s298 = scalar_select %p297, %s22, 3
      %s299 = smul.addr %s296, 4
      %s300 = sadd.s32 %s298, %s299
      %s301 = smul.addr %s300, 8
      %s302 = scalar_lea.vmem %s2, %s301
      %p303 = pneg %p112
      %p304 = pneg %p109
      %p305 = scmp.lt.s32.totalorder %s21, 1
      %s306 = scalar_select %p305, %s21, 1
      %p307 = scmp.lt.s32.totalorder %s22, 3
      %s308 = scalar_select %p307, %s22, 3
      %p309 = scmp.lt.s32.totalorder %s23, 0
      %s310 = scalar_select %p309, %s23, 0
      %s311 = sadd.s32 %s310, %s308
      %s312 = smul.addr %s306, 4
      %s313 = sadd.s32 %s311, %s312
      %s314 = smul.addr %s313, 8
      %s315 = scalar_lea.vmem %s3, %s314
      %p316 = pneg %p142
      %p317 = pneg %p139
      %p318 = scmp.lt.s32.totalorder %s21, 1
      %s319 = scalar_select %p318, %s21, 1
      %p320 = scmp.lt.s32.totalorder %s22, 3
      %s321 = scalar_select %p320, %s22, 3
      %p322 = scmp.lt.s32.totalorder %s23, 0
      %s323 = scalar_select %p322, %s23, 0
      %s324 = sadd.s32 %s323, %s321
      %s325 = smul.addr %s319, 4
      %s326 = sadd.s32 %s324, %s325
      %s327 = smul.addr %s326, 8
      %s328 = scalar_lea.vmem %s4, %s327
      %p329 = pneg %p172
      %p330 = pneg %p169
      %p331 = pneg %p200
      %p332 = pneg %p197
      %p333 = scmp.lt.s32.totalorder %s21, 1
      %s334 = scalar_select %p333, %s21, 1
      %p335 = scmp.lt.s32.totalorder %s22, 3
      %s336 = scalar_select %p335, %s22, 3
      %s337 = smul.addr %s334, 4
      %s338 = sadd.s32 %s336, %s337
      %s339 = smul.addr %s338, 8
      %s340 = scalar_lea.vmem %s5, %s339
      %p341 = scmp.lt.s32.totalorder %s21, 1
      %s342 = scalar_select %p341, %s21, 1
      %s343 = smul.addr %s342, 8
      %s344 = scalar_lea.vmem %s0, %s343
      %p345 = scmp.lt.s32.totalorder %s21, 1
      %s346 = scalar_select %p345, %s21, 1
      %p347 = scmp.lt.s32.totalorder %s23, 0
      %s348 = scalar_select %p347, %s23, 0
      %s349 = sadd.s32 %s348, %s346
      %s350 = scalar_lea.vmem %s1, %s349
      %p351 = scmp.lt.s32.totalorder %s21, 1
      %s352 = scalar_select %p351, %s21, 1
      %p353 = scmp.lt.s32.totalorder %s22, 3
      %s354 = scalar_select %p353, %s22, 3
      %s355 = smul.addr %s352, 4
      %s356 = sadd.s32 %s354, %s355
      %s357 = smul.addr %s356, 8
      %s358 = scalar_lea.vmem %s2, %s357
      %p359 = scmp.lt.s32.totalorder %s21, 1
      %s360 = scalar_select %p359, %s21, 1
      %p361 = scmp.lt.s32.totalorder %s22, 3
      %s362 = scalar_select %p361, %s22, 3
      %p363 = scmp.lt.s32.totalorder %s23, 0
      %s364 = scalar_select %p363, %s23, 0
      %s365 = sadd.s32 %s364, %s362
      %s366 = smul.addr %s360, 4
      %s367 = sadd.s32 %s365, %s366
      %s368 = smul.addr %s367, 8
      %s369 = scalar_lea.vmem %s3, %s368
      %p370 = scmp.lt.s32.totalorder %s21, 1
      %s371 = scalar_select %p370, %s21, 1
      %p372 = scmp.lt.s32.totalorder %s22, 3
      %s373 = scalar_select %p372, %s22, 3
      %p374 = scmp.lt.s32.totalorder %s23, 0
      %s375 = scalar_select %p374, %s23, 0
      %s376 = sadd.s32 %s375, %s373
      %s377 = smul.addr %s371, 4
      %s378 = sadd.s32 %s376, %s377
      %s379 = smul.addr %s378, 8
      %s380 = scalar_lea.vmem %s4, %s379
      %p381 = scmp.lt.s32.totalorder %s21, 1
      %s382 = scalar_select %p381, %s21, 1
      %p383 = scmp.lt.s32.totalorder %s22, 3
      %s384 = scalar_select %p383, %s22, 3
      %s385 = smul.addr %s382, 4
      %s386 = sadd.s32 %s384, %s385
      %s387 = smul.addr %s386, 8
      %s388 = scalar_lea.vmem %s5, %s387
      %p390 = scmp.eq.s32.totalorder %s23, 0
      // Predicated region
      $region41: #{transformer_forward.38} parent=39 // pred_check
        %p391 = pneg %p390
      $region42: #{transformer_forward.38} parent=39 // pred_check_branch
        %393 = sbr.rel (%p391) target = $region44
      $region43: #{transformer_forward.38} parent=39 // pred_region
        %vm394 = vcmask 7168
        %395 = vst.msk [vmem:[#allocation2] sm:$0xff] %vm394, -inf
        %396 = vst.msk [vmem:[#allocation3] sm:$0xff] %vm394, 0.0
        %vm397 = vcmask 64512
        %398 = vst.msk [vmem:[#allocation4] sm:$0xff] %vm397, 0.0
      $region44: #{transformer_forward.38} parent=39 // pred_fallthru
        _
      %v399 = vld [vmem:[%s358] sm:$0xff]
      %v400 = vpack.c.bf16 %v399, %v399
      %v401 = vld [vmem:[%s369] sm:$0xff]
      %v402 = vpack.c.bf16 %v401, %v401
      %vm403 = vcmask 64512
      %v405 = vsel %vm403, %v400, 0
      %v408 = vsel %vm403, %v402, 0
      %410 = vmatpush.bf16.xpose.msra.mxu0 0
      %411 = vmatpush.bf16.xpose.msra.mxu0 0
      %412 = vmatpush.bf16.xpose.msra.mxu0 0
      %413 = vmatpush.bf16.xpose.msra.mxu0 0
      %414 = vmatpush.bf16.xpose.msra.mxu0 0
      %415 = vmatpush.bf16.xpose.msra.mxu0 0
      %416 = vmatpush.bf16.xpose.msra.mxu0 0
      %417 = vmatpush.bf16.xpose.msra.mxu0 %v408
      %418 = vmatmul.bf16.gmra.mxu0 %v405
      %v419 = vpop.f32.mrf.mxu0
      %v420 = vadd.f32 0.0, %v419
      %v421 = vpop.f32.mrf.mxu0
      %422 = vdwg.mxu0
      %v423 = vmul.f32 %v420, 0.35355338
      %v424 = vld [vmem:[%s344] sm:$0xff]
      %v425 = vld [vmem:[%s350] sm:$0x1]
      %427 = vset.pattern.permute.xlu0 0
      %428 = vperm.xlu0 %427, %v424
      %v429 = vpop.permute.xlu0 %428
      %v432 = vperm.slane %v425, 0
      %v434 = vadd.f32 %v429, %v432
      %v435 = vlaneseq
      %v436 = vshrl.u32 %v435, 7
      %v437 = vlaneseq
      %v438 = vand.u32 %v437, 127
      %s439 = smul.u32 %s23, 8
      %v440 = vstv %s439
      %v441 = vadd.s32 %v438, %v440
      %vm442 = vcmp.le.s32.totalorder %v441, %v436
      %v443 = vsel %vm442, %v434, -1e+30
      %v444 = vadd.f32 %v423, %v443
      %v445 = vld [vmem:[#allocation2] sm:$0xff]
      %v446 = vsel %vm403, %v444, -inf
      %447 = vmax.xlane.f32.xlu0 %v446
      %v448 = vpop.xlane.xlu0 %447
      %v449 = vmax.f32 %v445, %v448
      %v450 = vsub.f32 %v445, %v449
      %v451 = vmul.f32 %v450, 1.442695
      %v452 = vpow.pop %v451
      %454 = vset.pattern.permute.xlu0 0
      %455 = vperm.xlu0 %454, %v449
      %v456 = vpop.permute.xlu0 %455
      %v458 = vsub.f32 %v444, %v456
      %v459 = vmul.f32 %v458, 1.442695
      %v460 = vpow.pop %v459
      %v461 = vld [vmem:[#allocation3] sm:$0xff]
      %v462 = vmul.f32 %v452, %v461
      %v463 = vsel %vm403, %v460, 0.0
      %464 = vadd.xlane.f32.xlu0 %v463
      %v465 = vpop.xlane.xlu0 %464
      %v466 = vadd.f32 %v462, %v465
      %vm467 = vcmask 7168
      %468 = vst.msk [vmem:[#allocation3] sm:$0xff] %vm467, %v466
      %v469 = vld [vmem:[#allocation4] sm:$0xff]
      %471 = vset.pattern.permute.xlu0 0
      %472 = vperm.xlu0 %471, %v452
      %v473 = vpop.permute.xlu0 %472
      %v475 = vmul.f32 %v473, %v469
      %v476 = vpack.c.bf16 %v460, %v460
      %v477 = vld [vmem:[%s380] sm:$0xff]
      %v478 = vpack.c.bf16 %v477, %v477
      %v480 = vsel %vm403, %v476, 0
      %vm482 = vcmask 1043456
      %v484 = vsel %vm482, %v478, 0
      %486 = vmatpush.bf16.msra.mxu0 0
      %487 = vmatpush.bf16.msra.mxu0 0
      %488 = vmatpush.bf16.msra.mxu0 0
      %489 = vmatpush.bf16.msra.mxu0 0
      %490 = vmatpush.bf16.msra.mxu0 0
      %491 = vmatpush.bf16.msra.mxu0 0
      %492 = vmatpush.bf16.msra.mxu0 0
      %493 = vmatpush.bf16.msra.mxu0 %v484
      %494 = vmatmul.bf16.gmra.mxu0 %v480
      %v495 = vpop.f32.mrf.mxu0
      %v496 = vadd.f32 0.0, %v495
      %v497 = vpop.f32.mrf.mxu0
      %498 = vdwg.mxu0
      %v499 = vadd.f32 %v475, %v496
      %500 = vst.msk [vmem:[#allocation4] sm:$0xff] %vm403, %v499
      %501 = vst.msk [vmem:[#allocation2] sm:$0xff] %vm467, %v449
      // Predicated region
      $region45: #{transformer_forward.38} parent=39 // pred_check
        %p502 = pneg %p390
      $region46: #{transformer_forward.38} parent=39 // pred_check_branch
        %504 = sbr.rel (%p502) target = $region48
      $region47: #{transformer_forward.38} parent=39 // pred_region
        %v505 = vld [vmem:[#allocation4] sm:$0xff]
        %v506 = vld [vmem:[#allocation3] sm:$0xff]
        %508 = vset.pattern.permute.xlu0 0
        %509 = vperm.xlu0 %508, %v506
        %v510 = vpop.permute.xlu0 %509
        %v512 = vrcp.pop %v510
        %v513 = vmul.f32 %v510, %v512
        %v514 = vsub.f32 1.0, %v513
        %v515 = vmul.f32 %v512, %v514
        %v516 = vadd.f32 %v512, %v515
        %vm517 = vweird.f32 %v510
        %vm518 = vweird.f32 %v512
        %vm519 = vmor %vm517, %vm518
        %v520 = vsel %vm519, %v512, %v516
        %v521 = vand.u32 2147483647, %v510
        %vm522 = vcmp.eq.f32.partialorder %v521, 8.507059e+37
        %v523 = vand.u32 %v510, 2147483648
        %v524 = vor.u32 1.1754944e-38, %v523
        %v525 = vsel %vm522, %v524, %v520
        %v526 = vmul.f32 %v505, %v525
        %527 = vst.msk [vmem:[%s388] sm:$0xff] %vm403, %v526
      $region48: #{transformer_forward.38} parent=39 // pred_fallthru
        _
      %p528 = scmp.lt.s32.totalorder %s21, 1
      %s529 = scalar_select %p528, %s21, 1
      %p530 = scmp.lt.s32.totalorder %s22, 3
      %s531 = scalar_select %p530, %s22, 3
      %s532 = smul.addr %s529, 4
      %s533 = sadd.s32 %s531, %s532
      %s534 = smul.addr %s533, 8
      %s535 = scalar_lea.vmem %s5, %s534
      // Predicated region
      $region49: #{transformer_forward.38} parent=39 // pred_check
        %p536 = pneg %p197
      $region50: #{transformer_forward.38} parent=39 // pred_check_branch
        %538 = sbr.rel (%p536) target = $region52
      $region51: #{transformer_forward.38} parent=39 // pred_region
        _
      $region52: #{transformer_forward.38} parent=39 // pred_fallthru
        _
    $region40: #{transformer_forward.38} parent=5 // pred_fallthru
      _
    %p539 = scmp.le.s32.totalorder 2, %s11
    // Predicated region
    $region53: #{transformer_forward.38} parent=5 // pred_check
      %p540 = pneg %p539
    $region54: #{transformer_forward.38} parent=5 // pred_check_branch
      %542 = sbr.rel (%p540) target = $region56
    $region55: #{transformer_forward.38} parent=5 // pred_region
      %s543 = ssub.s32 %s11, 2
      // Predicated region
      $region57: #{transformer_forward.38} parent=55 // pred_check
        %p544 = pneg %p203
      $region58: #{transformer_forward.38} parent=55 // pred_check_branch
        %546 = sbr.rel (%p544) target = $region60
      $region59: #{transformer_forward.38} parent=55 // pred_region
        %p547 = scmp.lt.s32.totalorder %s24, 1
        %s548 = scalar_select %p547, %s24, 1
        %p549 = scmp.lt.s32.totalorder %s25, 3
        %s550 = scalar_select %p549, %s25, 3
        %s551 = smul.addr %s548, 4
        %s552 = sadd.s32 %s550, %s551
        %s553 = smul.addr %s552, 8
        %s554 = scalar_lea.vmem %s5, %s553
      $region60: #{transformer_forward.38} parent=55 // pred_fallthru
        _
    $region56: #{transformer_forward.38} parent=5 // pred_fallthru
      _
  $region6: #{transformer_forward.38} parent=0 // loop_footer
    %s15 = sadd.s32 1, %s11
  $region7: #{transformer_forward.38} parent=0 // loop_footer_branch
    %10 = sbr.rel target = $region3
  $region8: #{transformer_forward.38} parent=0 // loop_exit
    _

// kernel: transformer_forward.40
$region0: #{transformer_forward.40}
  #allocation0 [shape = 'u32[]', space=smem, size = 0x4, offset = 0x4, fixed_abs, tag = 'smem constant byte address 0x4 - core index']
  #allocation1 [shape = 'u32[72,128]{1,0:T(1,128)}', space=vmem, size = 0x9000, scoped, tag = 'internal scratch']
  #allocation2 [shape = 'f32[16,32]{1,0:T(8,128)}', space=vmem, size = 0x2000, scoped, tag = 'scratch operand']
  %s0 = inlined_call_operand.vmem [shape: f32[16,32], index: 0, kind: input, shape index: {}]
  %s1 = inlined_call_operand.vmem [shape: bf16[32,32], index: 1, kind: input, shape index: {}]
  %s2 = inlined_call_operand.vmem [shape: f32[1,32], index: 2, kind: input, shape index: {}]
  %s3 = inlined_call_operand.vmem [shape: f32[16,32], index: 3, kind: output, shape index: {}]
  %s4 = sld [smem:[#allocation0]]
  $region30: #{transformer_forward.40} parent=0
    _
  %s6 = ssub.s32 1, %s4
  %s7 = scalar_select 0, %s6, %s4
  // Predicated region
  $region2: #{transformer_forward.40} parent=0 // pred_check
    _
  $region3: #{transformer_forward.40} parent=0 // pred_check_branch
    %9 = sbr.rel (0) target = $region5
  $region4: #{transformer_forward.40} parent=0 // pred_region
    _
  $region5: #{transformer_forward.40} parent=0 // pred_fallthru
    _
  // Predicated region
  $region6: #{transformer_forward.40} parent=0 // pred_check
    _
  $region7: #{transformer_forward.40} parent=0 // pred_check_branch
    %11 = sbr.rel (0) target = $region9
  $region8: #{transformer_forward.40} parent=0 // pred_region
    _
  $region9: #{transformer_forward.40} parent=0 // pred_fallthru
    _
  // Predicated region
  $region10: #{transformer_forward.40} parent=0 // pred_check
    _
  $region11: #{transformer_forward.40} parent=0 // pred_check_branch
    %13 = sbr.rel (0) target = $region13
  $region12: #{transformer_forward.40} parent=0 // pred_region
    _
  $region13: #{transformer_forward.40} parent=0 // pred_fallthru
    _
  %p15 = scmp.eq.s32.totalorder 0, 0
  // Predicated region
  $region14: #{transformer_forward.40} parent=0 // pred_check
    %p16 = pneg %p15
  $region15: #{transformer_forward.40} parent=0 // pred_check_branch
    %18 = sbr.rel (%p16) target = $region17
  $region16: #{transformer_forward.40} parent=0 // pred_region
    %vm19 = vcmask 261120
    %20 = vst.msk [vmem:[#allocation2] sm:$0xff] %vm19, 0.0
    %21 = vst.msk [vmem:[#allocation2 + $0x8] sm:$0xff] %vm19, 0.0
  $region17: #{transformer_forward.40} parent=0 // pred_fallthru
    _
  %v22 = vld [vmem:[#allocation2] sm:$0xff]
  %v23 = vld [vmem:[#allocation2 + $0x8] sm:$0xff]
  %v24 = vld [vmem:[%s0] sm:$0xff]
  %v25 = vld [vmem:[%s0 + $0x8] sm:$0xff]
  %v26 = vpack.c.bf16 %v25, %v24
  %v27 = vld [vmem:[%s1] sm:$0xf]
  %v28 = vld [vmem:[%s1 + $0x4] sm:$0xf]
  %v29 = vld [vmem:[%s1 + $0x8] sm:$0xf]
  %v30 = vld [vmem:[%s1 + $0xc] sm:$0xf]
  %v35 = vunpack.c.l.b16 %v27
  %v36 = vunpack.c.l.b16 %v28
  %v37 = vunpack.c.l.b16 %v29
  %v38 = vunpack.c.l.b16 %v30
  %v39 = vpack.c.b16 %v36, %v35
  %v40 = vpack.c.b16 %v38, %v37
  %vm43 = vcmask 261120
  %v45 = vsel %vm43, %v26, 0
  %47 = vmatpush.bf16.msra.mxu0 0
  %48 = vmatpush.bf16.msra.mxu0 0
  %49 = vmatpush.bf16.msra.mxu0 0
  %50 = vmatpush.bf16.msra.mxu0 0
  %51 = vmatpush.bf16.msra.mxu0 0
  %52 = vmatpush.bf16.msra.mxu0 0
  %53 = vmatpush.bf16.msra.mxu0 %v40
  %54 = vmatpush.bf16.msra.mxu0 %v39
  %55 = vmatmul.bf16.gmra.mxu0 %v45
  %v56 = vpop.f32.mrf.mxu0
  %v57 = vadd.f32 0.0, %v56
  %v58 = vpop.f32.mrf.mxu0
  %v59 = vadd.f32 0.0, %v58
  %60 = vdwg.mxu0
  %v61 = vadd.f32 %v22, %v57
  %v62 = vadd.f32 %v23, %v59
  %63 = vst.msk [vmem:[#allocation2] sm:$0xff] %vm43, %v61
  %64 = vst.msk [vmem:[#allocation2 + $0x8] sm:$0xff] %vm43, %v62
  // Predicated region
  $region18: #{transformer_forward.40} parent=0 // pred_check
    %p65 = pneg %p15
  $region19: #{transformer_forward.40} parent=0 // pred_check_branch
    %67 = sbr.rel (%p65) target = $region21
  $region20: #{transformer_forward.40} parent=0 // pred_region
    %v68 = vld [vmem:[#allocation2] sm:$0xff]
    %v69 = vld [vmem:[#allocation2 + $0x8] sm:$0xff]
    %v70 = vld [vmem:[%s2] sm:$0x1]
    %v72 = vperm.slane %v70, 0
    %v74 = vadd.f32 %v68, %v72
    %v75 = vadd.f32 %v69, %v72
    %76 = vst.msk [vmem:[%s3] sm:$0xff] %vm43, %v74
    %77 = vst.msk [vmem:[%s3 + $0x8] sm:$0xff] %vm43, %v75
  $region21: #{transformer_forward.40} parent=0 // pred_fallthru
    _
  // Predicated region
  $region22: #{transformer_forward.40} parent=0 // pred_check
    _
  $region23: #{transformer_forward.40} parent=0 // pred_check_branch
    %79 = sbr.rel (0) target = $region25
  $region24: #{transformer_forward.40} parent=0 // pred_region
    _
  $region25: #{transformer_forward.40} parent=0 // pred_fallthru
    _
  // Predicated region
  $region26: #{transformer_forward.40} parent=0 // pred_check
    _
  $region27: #{transformer_forward.40} parent=0 // pred_check_branch
    %81 = sbr.rel (0) target = $region29
  $region28: #{transformer_forward.40} parent=0 // pred_region
    _
  $region29: #{transformer_forward.40} parent=0 // pred_fallthru
    _

// kernel: transformer_forward.30
$region0: #{transformer_forward.30}
  #allocation0 [shape = 'u32[]', space=smem, size = 0x4, offset = 0x4, fixed_abs, tag = 'smem constant byte address 0x4 - core index']
  #allocation1 [shape = 'u32[72,128]{1,0:T(1,128)}', space=vmem, size = 0x9000, scoped, tag = 'internal scratch']
  #allocation2 [shape = 'f32[8,1]{1,0:T(8,128)}', space=vmem, size = 0x1000, scoped, tag = 'scratch operand']
  #allocation3 [shape = 'f32[8,1]{1,0:T(8,128)}', space=vmem, size = 0x1000, scoped, tag = 'scratch operand']
  #allocation4 [shape = 'f32[8,8]{1,0:T(8,128)}', space=vmem, size = 0x1000, scoped, tag = 'scratch operand']
  %s0 = inlined_call_operand.vmem [shape: f32[2,8,1], index: 0, kind: input, shape index: {}]
  %s1 = inlined_call_operand.vmem [shape: f32[2,1,8], index: 1, kind: input, shape index: {}]
  %s2 = inlined_call_operand.vmem [shape: f32[2,4,8,8], index: 2, kind: input, shape index: {}]
  %s3 = inlined_call_operand.vmem [shape: f32[2,4,8,8], index: 3, kind: input, shape index: {}]
  %s4 = inlined_call_operand.vmem [shape: f32[2,4,8,8], index: 4, kind: input, shape index: {}]
  %s5 = inlined_call_operand.vmem [shape: f32[2,4,8,8], index: 5, kind: output, shape index: {}]
  %s6 = sld [smem:[#allocation0]]
  $region61: #{transformer_forward.30} parent=0
    _
  %s8 = ssub.s32 1, %s6
  %s9 = scalar_select 0, %s8, %s6
  loop: start=0, step=1, limit=10
  $region2: #{transformer_forward.30} parent=0 // loop_pre_header
    _
  $region3: #{transformer_forward.30} parent=0 // loop_header
    %s11 = sphi 0, %s15
    %p12 = scmp.ge.s32.totalorder %s11, 10
    %s18 = sphi 0, %s37
    %s19 = sphi 0, %s33
    %s20 = sphi 0, %s29
    %s21 = sphi 0, %s18
    %s22 = sphi 0, %s19
    %s23 = sphi 0, %s20
    %s24 = sphi 0, %s21
    %s25 = sphi 0, %s22
    %s26 = sphi 0, %s23
    %s40 = sphi 0, %s42
    %s43 = sphi 0, %s40
    %s44 = sphi 0, %s43
    %s60 = sphi 0, %s44
    %s68 = sphi 0, %s70
    %s71 = sphi 0, %s68
    %s72 = sphi 0, %s71
    %s88 = sphi 0, %s72
    %s96 = sphi 0, %s98
    %s99 = sphi 0, %s96
    %s100 = sphi 0, %s99
    %s116 = sphi 0, %s100
    %s126 = sphi 0, %s128
    %s129 = sphi 0, %s126
    %s130 = sphi 0, %s129
    %s146 = sphi 0, %s130
    %s156 = sphi 0, %s158
    %s159 = sphi 0, %s156
    %s160 = sphi 0, %s159
    %s176 = sphi 0, %s160
    %s184 = sphi 0, %s186
    %s187 = sphi 0, %s184
    %s188 = sphi 0, %s187
    %s204 = sphi 0, %s188
  $region4: #{transformer_forward.30} parent=0 // loop_header_branch
    %14 = sbr.rel (%p12) target = $region8
  $region5: #{transformer_forward.30} parent=0 // loop_body
    %s16 = ssub.s32 %s11, 1
    %s17 = ssub.s32 %s11, 2
    %s27 = sadd.s32 1, %s20
    %p28 = scmp.ge.s32.totalorder %s27, 1
    %s29 = scalar_select %p28, 0, %s27
    %s30 = sadd.s32 1, %s19
    %s31 = scalar_select %p28, %s30, %s19
    %p32 = scmp.ge.s32.totalorder %s31, 4
    %s33 = scalar_select %p32, 0, %s31
    %s34 = sadd.s32 1, %s18
    %s35 = scalar_select %p32, %s34, %s18
    %p36 = scmp.ge.s32.totalorder %s35, 2
    %s37 = scalar_select %p36, 0, %s35
    %s38 = ssub.s32 %s18, %s37
    %p39 = scmp.eq.s32.totalorder %s38, 0
    %s41 = sadd.s32 %s40, 1
    %s42 = scalar_select %p39, %s40, %s41
    %p45 = pneg %p39
    %p46 = scmp.eq.s32.totalorder %s11, 7
    %p47 = por %p45, %p46
    %p48 = scmp.ne.s32.totalorder %s40, %s43
    %p49 = scmp.eq.s32.totalorder %s11, 0
    %p50 = por %p48, %p49
    %p51 = scmp.ne.s32.totalorder %s40, %s43
    %p52 = scmp.eq.s32.totalorder %s16, 7
    %p53 = por %p51, %p52
    %p54 = scmp.ne.s32.totalorder %s43, %s44
    %p55 = scmp.eq.s32.totalorder %s16, 0
    %p56 = por %p54, %p55
    %p57 = scmp.ne.s32.totalorder %s43, %s44
    %p58 = scmp.eq.s32.totalorder %s17, 7
    %p59 = por %p57, %p58
    %p61 = scmp.ne.s32.totalorder %s44, %s60
    %p62 = scmp.eq.s32.totalorder %s17, 0
    %p63 = por %p61, %p62
    %s64 = ssub.s32 %s18, %s37
    %s65 = ssub.s32 %s20, %s29
    %s66 = sor.u32 %s64, %s65
    %p67 = scmp.eq.s32.totalorder %s66, 0
    %s69 = sadd.s32 %s68, 1
    %s70 = scalar_select %p67, %s68, %s69
    %p73 = pneg %p67
    %p74 = scmp.eq.s32.totalorder %s11, 7
    %p75 = por %p73, %p74
    %p76 = scmp.ne.s32.totalorder %s68, %s71
    %p77 = scmp.eq.s32.totalorder %s11, 0
    %p78 = por %p76, %p77
    %p79 = scmp.ne.s32.totalorder %s68, %s71
    %p80 = scmp.eq.s32.totalorder %s16, 7
    %p81 = por %p79, %p80
    %p82 = scmp.ne.s32.totalorder %s71, %s72
    %p83 = scmp.eq.s32.totalorder %s16, 0
    %p84 = por %p82, %p83
    %p85 = scmp.ne.s32.totalorder %s71, %s72
    %p86 = scmp.eq.s32.totalorder %s17, 7
    %p87 = por %p85, %p86
    %p89 = scmp.ne.s32.totalorder %s72, %s88
    %p90 = scmp.eq.s32.totalorder %s17, 0
    %p91 = por %p89, %p90
    %s92 = ssub.s32 %s18, %s37
    %s93 = ssub.s32 %s19, %s33
    %s94 = sor.u32 %s92, %s93
    %p95 = scmp.eq.s32.totalorder %s94, 0
    %s97 = sadd.s32 %s96, 1
    %s98 = scalar_select %p95, %s96, %s97
    %p101 = pneg %p95
    %p102 = scmp.eq.s32.totalorder %s11, 7
    %p103 = por %p101, %p102
    %p104 = scmp.ne.s32.totalorder %s96, %s99
    %p105 = scmp.eq.s32.totalorder %s11, 0
    %p106 = por %p104, %p105
    %p107 = scmp.ne.s32.totalorder %s96, %s99
    %p108 = scmp.eq.s32.totalorder %s16, 7
    %p109 = por %p107, %p108
    %p110 = scmp.ne.s32.totalorder %s99, %s100
    %p111 = scmp.eq.s32.totalorder %s16, 0
    %p112 = por %p110, %p111
    %p113 = scmp.ne.s32.totalorder %s99, %s100
    %p114 = scmp.eq.s32.totalorder %s17, 7
    %p115 = por %p113, %p114
    %p117 = scmp.ne.s32.totalorder %s100, %s116
    %p118 = scmp.eq.s32.totalorder %s17, 0
    %p119 = por %p117, %p118
    %s120 = ssub.s32 %s18, %s37
    %s121 = ssub.s32 %s19, %s33
    %s122 = sor.u32 %s120, %s121
    %s123 = ssub.s32 %s20, %s29
    %s124 = sor.u32 %s122, %s123
    %p125 = scmp.eq.s32.totalorder %s124, 0
    %s127 = sadd.s32 %s126, 1
    %s128 = scalar_select %p125, %s126, %s127
    %p131 = pneg %p125
    %p132 = scmp.eq.s32.totalorder %s11, 7
    %p133 = por %p131, %p132
    %p134 = scmp.ne.s32.totalorder %s126, %s129
    %p135 = scmp.eq.s32.totalorder %s11, 0
    %p136 = por %p134, %p135
    %p137 = scmp.ne.s32.totalorder %s126, %s129
    %p138 = scmp.eq.s32.totalorder %s16, 7
    %p139 = por %p137, %p138
    %p140 = scmp.ne.s32.totalorder %s129, %s130
    %p141 = scmp.eq.s32.totalorder %s16, 0
    %p142 = por %p140, %p141
    %p143 = scmp.ne.s32.totalorder %s129, %s130
    %p144 = scmp.eq.s32.totalorder %s17, 7
    %p145 = por %p143, %p144
    %p147 = scmp.ne.s32.totalorder %s130, %s146
    %p148 = scmp.eq.s32.totalorder %s17, 0
    %p149 = por %p147, %p148
    %s150 = ssub.s32 %s18, %s37
    %s151 = ssub.s32 %s19, %s33
    %s152 = sor.u32 %s150, %s151
    %s153 = ssub.s32 %s20, %s29
    %s154 = sor.u32 %s152, %s153
    %p155 = scmp.eq.s32.totalorder %s154, 0
    %s157 = sadd.s32 %s156, 1
    %s158 = scalar_select %p155, %s156, %s157
    %p161 = pneg %p155
    %p162 = scmp.eq.s32.totalorder %s11, 7
    %p163 = por %p161, %p162
    %p164 = scmp.ne.s32.totalorder %s156, %s159
    %p165 = scmp.eq.s32.totalorder %s11, 0
    %p166 = por %p164, %p165
    %p167 = scmp.ne.s32.totalorder %s156, %s159
    %p168 = scmp.eq.s32.totalorder %s16, 7
    %p169 = por %p167, %p168
    %p170 = scmp.ne.s32.totalorder %s159, %s160
    %p171 = scmp.eq.s32.totalorder %s16, 0
    %p172 = por %p170, %p171
    %p173 = scmp.ne.s32.totalorder %s159, %s160
    %p174 = scmp.eq.s32.totalorder %s17, 7
    %p175 = por %p173, %p174
    %p177 = scmp.ne.s32.totalorder %s160, %s176
    %p178 = scmp.eq.s32.totalorder %s17, 0
    %p179 = por %p177, %p178
    %s180 = ssub.s32 %s18, %s37
    %s181 = ssub.s32 %s19, %s33
    %s182 = sor.u32 %s180, %s181
    %p183 = scmp.eq.s32.totalorder %s182, 0
    %s185 = sadd.s32 %s184, 1
    %s186 = scalar_select %p183, %s184, %s185
    %p189 = pneg %p183
    %p190 = scmp.eq.s32.totalorder %s11, 7
    %p191 = por %p189, %p190
    %p192 = scmp.ne.s32.totalorder %s184, %s187
    %p193 = scmp.eq.s32.totalorder %s11, 0
    %p194 = por %p192, %p193
    %p195 = scmp.ne.s32.totalorder %s184, %s187
    %p196 = scmp.eq.s32.totalorder %s16, 7
    %p197 = por %p195, %p196
    %p198 = scmp.ne.s32.totalorder %s187, %s188
    %p199 = scmp.eq.s32.totalorder %s16, 0
    %p200 = por %p198, %p199
    %p201 = scmp.ne.s32.totalorder %s187, %s188
    %p202 = scmp.eq.s32.totalorder %s17, 7
    %p203 = por %p201, %p202
    %p205 = scmp.ne.s32.totalorder %s188, %s204
    %p206 = scmp.eq.s32.totalorder %s17, 0
    %p207 = por %p205, %p206
    %p208 = scmp.le.s32.totalorder 1, %s11
    %p209 = scmp.lt.s32.totalorder %s11, 9
    %p210 = pnand %p208, %p209
    %p211 = pneg %p210
    // Predicated region
    $region9: #{transformer_forward.30} parent=5 // pred_check
      _
    $region10: #{transformer_forward.30} parent=5 // pred_check_branch
      %213 = sbr.rel (%p210) target = $region12
    $region11: #{transformer_forward.30} parent=5 // pred_region
      %s214 = ssub.s32 %s11, 1
    $region12: #{transformer_forward.30} parent=5 // pred_fallthru
      _
    %p215 = scmp.lt.s32.totalorder %s11, 8
    // Predicated region
    $region13: #{transformer_forward.30} parent=5 // pred_check
      %p216 = pneg %p215
    $region14: #{transformer_forward.30} parent=5 // pred_check_branch
      %218 = sbr.rel (%p216) target = $region16
    $region15: #{transformer_forward.30} parent=5 // pred_region
      // Predicated region
      $region17: #{transformer_forward.30} parent=15 // pred_check
        %p219 = pneg %p50
      $region18: #{transformer_forward.30} parent=15 // pred_check_branch
        %221 = sbr.rel (%p219) target = $region20
      $region19: #{transformer_forward.30} parent=15 // pred_region
        %p222 = scmp.lt.s32.totalorder %s18, 1
        %s223 = scalar_select %p222, %s18, 1
        %s224 = smul.addr %s223, 8
        %s225 = scalar_lea.vmem %s0, %s224
      $region20: #{transformer_forward.30} parent=15 // pred_fallthru
        _
      // Predicated region
      $region21: #{transformer_forward.30} parent=15 // pred_check
        %p226 = pneg %p78
      $region22: #{transformer_forward.30} parent=15 // pred_check_branch
        %228 = sbr.rel (%p226) target = $region24
      $region23: #{transformer_forward.30} parent=15 // pred_region
        %p229 = scmp.lt.s32.totalorder %s18, 1
        %s230 = scalar_select %p229, %s18, 1
        %p231 = scmp.lt.s32.totalorder %s20, 0
        %s232 = scalar_select %p231, %s20, 0
        %s233 = sadd.s32 %s232, %s230
        %s234 = scalar_lea.vmem %s1, %s233
      $region24: #{transformer_forward.30} parent=15 // pred_fallthru
        _
      // Predicated region
      $region25: #{transformer_forward.30} parent=15 // pred_check
        %p235 = pneg %p106
      $region26: #{transformer_forward.30} parent=15 // pred_check_branch
        %237 = sbr.rel (%p235) target = $region28
      $region27: #{transformer_forward.30} parent=15 // pred_region
        %p238 = scmp.lt.s32.totalorder %s18, 1
        %s239 = scalar_select %p238, %s18, 1
        %p240 = scmp.lt.s32.totalorder %s19, 3
        %s241 = scalar_select %p240, %s19, 3
        %s242 = smul.addr %s239, 4
        %s243 = sadd.s32 %s241, %s242
        %s244 = smul.addr %s243, 8
        %s245 = scalar_lea.vmem %s2, %s244
      $region28: #{transformer_forward.30} parent=15 // pred_fallthru
        _
      // Predicated region
      $region29: #{transformer_forward.30} parent=15 // pred_check
        %p246 = pneg %p136
      $region30: #{transformer_forward.30} parent=15 // pred_check_branch
        %248 = sbr.rel (%p246) target = $region32
      $region31: #{transformer_forward.30} parent=15 // pred_region
        %p249 = scmp.lt.s32.totalorder %s18, 1
        %s250 = scalar_select %p249, %s18, 1
        %p251 = scmp.lt.s32.totalorder %s19, 3
        %s252 = scalar_select %p251, %s19, 3
        %p253 = scmp.lt.s32.totalorder %s20, 0
        %s254 = scalar_select %p253, %s20, 0
        %s255 = sadd.s32 %s254, %s252
        %s256 = smul.addr %s250, 4
        %s257 = sadd.s32 %s255, %s256
        %s258 = smul.addr %s257, 8
        %s259 = scalar_lea.vmem %s3, %s258
      $region32: #{transformer_forward.30} parent=15 // pred_fallthru
        _
      // Predicated region
      $region33: #{transformer_forward.30} parent=15 // pred_check
        %p260 = pneg %p166
      $region34: #{transformer_forward.30} parent=15 // pred_check_branch
        %262 = sbr.rel (%p260) target = $region36
      $region35: #{transformer_forward.30} parent=15 // pred_region
        %p263 = scmp.lt.s32.totalorder %s18, 1
        %s264 = scalar_select %p263, %s18, 1
        %p265 = scmp.lt.s32.totalorder %s19, 3
        %s266 = scalar_select %p265, %s19, 3
        %p267 = scmp.lt.s32.totalorder %s20, 0
        %s268 = scalar_select %p267, %s20, 0
        %s269 = sadd.s32 %s268, %s266
        %s270 = smul.addr %s264, 4
        %s271 = sadd.s32 %s269, %s270
        %s272 = smul.addr %s271, 8
        %s273 = scalar_lea.vmem %s4, %s272
      $region36: #{transformer_forward.30} parent=15 // pred_fallthru
        _
    $region16: #{transformer_forward.30} parent=5 // pred_fallthru
      _
    %p274 = scmp.le.s32.totalorder 1, %s11
    %p275 = scmp.lt.s32.totalorder %s11, 9
    %p276 = pnand %p274, %p275
    %p277 = pneg %p276
    // Predicated region
    $region37: #{transformer_forward.30} parent=5 // pred_check
      _
    $region38: #{transformer_forward.30} parent=5 // pred_check_branch
      %279 = sbr.rel (%p276) target = $region40
    $region39: #{transformer_forward.30} parent=5 // pred_region
      %s280 = ssub.s32 %s11, 1
      %p281 = scmp.lt.s32.totalorder %s21, 1
      %s282 = scalar_select %p281, %s21, 1
      %s283 = smul.addr %s282, 8
      %s284 = scalar_lea.vmem %s0, %s283
      %p285 = pneg %p56
      %p286 = pneg %p53
      %p287 = scmp.lt.s32.totalorder %s21, 1
      %s288 = scalar_select %p287, %s21, 1
      %p289 = scmp.lt.s32.totalorder %s23, 0
      %s290 = scalar_select %p289, %s23, 0
      %s291 = sadd.s32 %s290, %s288
      %s292 = scalar_lea.vmem %s1, %s291
      %p293 = pneg %p84
      %p294 = pneg %p81
      %p295 = scmp.lt.s32.totalorder %s21, 1
      %s296 = scalar_select %p295, %s21, 1
      %p297 = scmp.lt.s32.totalorder %s22, 3
      %s298 = scalar_select %p297, %s22, 3
      %s299 = smul.addr %s296, 4
      %s300 = sadd.s32 %s298, %s299
      %s301 = smul.addr %s300, 8
      %s302 = scalar_lea.vmem %s2, %s301
      %p303 = pneg %p112
      %p304 = pneg %p109
      %p305 = scmp.lt.s32.totalorder %s21, 1
      %s306 = scalar_select %p305, %s21, 1
      %p307 = scmp.lt.s32.totalorder %s22, 3
      %s308 = scalar_select %p307, %s22, 3
      %p309 = scmp.lt.s32.totalorder %s23, 0
      %s310 = scalar_select %p309, %s23, 0
      %s311 = sadd.s32 %s310, %s308
      %s312 = smul.addr %s306, 4
      %s313 = sadd.s32 %s311, %s312
      %s314 = smul.addr %s313, 8
      %s315 = scalar_lea.vmem %s3, %s314
      %p316 = pneg %p142
      %p317 = pneg %p139
      %p318 = scmp.lt.s32.totalorder %s21, 1
      %s319 = scalar_select %p318, %s21, 1
      %p320 = scmp.lt.s32.totalorder %s22, 3
      %s321 = scalar_select %p320, %s22, 3
      %p322 = scmp.lt.s32.totalorder %s23, 0
      %s323 = scalar_select %p322, %s23, 0
      %s324 = sadd.s32 %s323, %s321
      %s325 = smul.addr %s319, 4
      %s326 = sadd.s32 %s324, %s325
      %s327 = smul.addr %s326, 8
      %s328 = scalar_lea.vmem %s4, %s327
      %p329 = pneg %p172
      %p330 = pneg %p169
      %p331 = pneg %p200
      %p332 = pneg %p197
      %p333 = scmp.lt.s32.totalorder %s21, 1
      %s334 = scalar_select %p333, %s21, 1
      %p335 = scmp.lt.s32.totalorder %s22, 3
      %s336 = scalar_select %p335, %s22, 3
      %s337 = smul.addr %s334, 4
      %s338 = sadd.s32 %s336, %s337
      %s339 = smul.addr %s338, 8
      %s340 = scalar_lea.vmem %s5, %s339
      %p341 = scmp.lt.s32.totalorder %s21, 1
      %s342 = scalar_select %p341, %s21, 1
      %s343 = smul.addr %s342, 8
      %s344 = scalar_lea.vmem %s0, %s343
      %p345 = scmp.lt.s32.totalorder %s21, 1
      %s346 = scalar_select %p345, %s21, 1
      %p347 = scmp.lt.s32.totalorder %s23, 0
      %s348 = scalar_select %p347, %s23, 0
      %s349 = sadd.s32 %s348, %s346
      %s350 = scalar_lea.vmem %s1, %s349
      %p351 = scmp.lt.s32.totalorder %s21, 1
      %s352 = scalar_select %p351, %s21, 1
      %p353 = scmp.lt.s32.totalorder %s22, 3
      %s354 = scalar_select %p353, %s22, 3
      %s355 = smul.addr %s352, 4
      %s356 = sadd.s32 %s354, %s355
      %s357 = smul.addr %s356, 8
      %s358 = scalar_lea.vmem %s2, %s357
      %p359 = scmp.lt.s32.totalorder %s21, 1
      %s360 = scalar_select %p359, %s21, 1
      %p361 = scmp.lt.s32.totalorder %s22, 3
      %s362 = scalar_select %p361, %s22, 3
      %p363 = scmp.lt.s32.totalorder %s23, 0
      %s364 = scalar_select %p363, %s23, 0
      %s365 = sadd.s32 %s364, %s362
      %s366 = smul.addr %s360, 4
      %s367 = sadd.s32 %s365, %s366
      %s368 = smul.addr %s367, 8
      %s369 = scalar_lea.vmem %s3, %s368
      %p370 = scmp.lt.s32.totalorder %s21, 1
      %s371 = scalar_select %p370, %s21, 1
      %p372 = scmp.lt.s32.totalorder %s22, 3
      %s373 = scalar_select %p372, %s22, 3
      %p374 = scmp.lt.s32.totalorder %s23, 0
      %s375 = scalar_select %p374, %s23, 0
      %s376 = sadd.s32 %s375, %s373
      %s377 = smul.addr %s371, 4
      %s378 = sadd.s32 %s376, %s377
      %s379 = smul.addr %s378, 8
      %s380 = scalar_lea.vmem %s4, %s379
      %p381 = scmp.lt.s32.totalorder %s21, 1
      %s382 = scalar_select %p381, %s21, 1
      %p383 = scmp.lt.s32.totalorder %s22, 3
      %s384 = scalar_select %p383, %s22, 3
      %s385 = smul.addr %s382, 4
      %s386 = sadd.s32 %s384, %s385
      %s387 = smul.addr %s386, 8
      %s388 = scalar_lea.vmem %s5, %s387
      %p390 = scmp.eq.s32.totalorder %s23, 0
      // Predicated region
      $region41: #{transformer_forward.30} parent=39 // pred_check
        %p391 = pneg %p390
      $region42: #{transformer_forward.30} parent=39 // pred_check_branch
        %393 = sbr.rel (%p391) target = $region44
      $region43: #{transformer_forward.30} parent=39 // pred_region
        %vm394 = vcmask 7168
        %395 = vst.msk [vmem:[#allocation2] sm:$0xff] %vm394, -inf
        %396 = vst.msk [vmem:[#allocation3] sm:$0xff] %vm394, 0.0
        %vm397 = vcmask 64512
        %398 = vst.msk [vmem:[#allocation4] sm:$0xff] %vm397, 0.0
      $region44: #{transformer_forward.30} parent=39 // pred_fallthru
        _
      %v399 = vld [vmem:[%s358] sm:$0xff]
      %v400 = vpack.c.bf16 %v399, %v399
      %v401 = vld [vmem:[%s369] sm:$0xff]
      %v402 = vpack.c.bf16 %v401, %v401
      %vm403 = vcmask 64512
      %v405 = vsel %vm403, %v400, 0
      %v408 = vsel %vm403, %v402, 0
      %410 = vmatpush.bf16.xpose.msra.mxu0 0
      %411 = vmatpush.bf16.xpose.msra.mxu0 0
      %412 = vmatpush.bf16.xpose.msra.mxu0 0
      %413 = vmatpush.bf16.xpose.msra.mxu0 0
      %414 = vmatpush.bf16.xpose.msra.mxu0 0
      %415 = vmatpush.bf16.xpose.msra.mxu0 0
      %416 = vmatpush.bf16.xpose.msra.mxu0 0
      %417 = vmatpush.bf16.xpose.msra.mxu0 %v408
      %418 = vmatmul.bf16.gmra.mxu0 %v405
      %v419 = vpop.f32.mrf.mxu0
      %v420 = vadd.f32 0.0, %v419
      %v421 = vpop.f32.mrf.mxu0
      %422 = vdwg.mxu0
      %v423 = vmul.f32 %v420, 0.35355338
      %v424 = vld [vmem:[%s344] sm:$0xff]
      %v425 = vld [vmem:[%s350] sm:$0x1]
      %427 = vset.pattern.permute.xlu0 0
      %428 = vperm.xlu0 %427, %v424
      %v429 = vpop.permute.xlu0 %428
      %v432 = vperm.slane %v425, 0
      %v434 = vadd.f32 %v429, %v432
      %v435 = vadd.f32 %v423, %v434
      %v436 = vld [vmem:[#allocation2] sm:$0xff]
      %v437 = vsel %vm403, %v435, -inf
      %438 = vmax.xlane.f32.xlu0 %v437
      %v439 = vpop.xlane.xlu0 %438
      %v440 = vmax.f32 %v436, %v439
      %v441 = vsub.f32 %v436, %v440
      %v442 = vmul.f32 %v441, 1.442695
      %v443 = vpow.pop %v442
      %445 = vset.pattern.permute.xlu0 0
      %446 = vperm.xlu0 %445, %v440
      %v447 = vpop.permute.xlu0 %446
      %v449 = vsub.f32 %v435, %v447
      %v450 = vmul.f32 %v449, 1.442695
      %v451 = vpow.pop %v450
      %v452 = vld [vmem:[#allocation3] sm:$0xff]
      %v453 = vmul.f32 %v443, %v452
      %v454 = vsel %vm403, %v451, 0.0
      %455 = vadd.xlane.f32.xlu0 %v454
      %v456 = vpop.xlane.xlu0 %455
      %v457 = vadd.f32 %v453, %v456
      %vm458 = vcmask 7168
      %459 = vst.msk [vmem:[#allocation3] sm:$0xff] %vm458, %v457
      %v460 = vld [vmem:[#allocation4] sm:$0xff]
      %462 = vset.pattern.permute.xlu0 0
      %463 = vperm.xlu0 %462, %v443
      %v464 = vpop.permute.xlu0 %463
      %v466 = vmul.f32 %v464, %v460
      %v467 = vpack.c.bf16 %v451, %v451
      %v468 = vld [vmem:[%s380] sm:$0xff]
      %v469 = vpack.c.bf16 %v468, %v468
      %v471 = vsel %vm403, %v467, 0
      %vm473 = vcmask 1043456
      %v475 = vsel %vm473, %v469, 0
      %477 = vmatpush.bf16.msra.mxu0 0
      %478 = vmatpush.bf16.msra.mxu0 0
      %479 = vmatpush.bf16.msra.mxu0 0
      %480 = vmatpush.bf16.msra.mxu0 0
      %481 = vmatpush.bf16.msra.mxu0 0
      %482 = vmatpush.bf16.msra.mxu0 0
      %483 = vmatpush.bf16.msra.mxu0 0
      %484 = vmatpush.bf16.msra.mxu0 %v475
      %485 = vmatmul.bf16.gmra.mxu0 %v471
      %v486 = vpop.f32.mrf.mxu0
      %v487 = vadd.f32 0.0, %v486
      %v488 = vpop.f32.mrf.mxu0
      %489 = vdwg.mxu0
      %v490 = vadd.f32 %v466, %v487
      %491 = vst.msk [vmem:[#allocation4] sm:$0xff] %vm403, %v490
      %492 = vst.msk [vmem:[#allocation2] sm:$0xff] %vm458, %v440
      // Predicated region
      $region45: #{transformer_forward.30} parent=39 // pred_check
        %p493 = pneg %p390
      $region46: #{transformer_forward.30} parent=39 // pred_check_branch
        %495 = sbr.rel (%p493) target = $region48
      $region47: #{transformer_forward.30} parent=39 // pred_region
        %v496 = vld [vmem:[#allocation4] sm:$0xff]
        %v497 = vld [vmem:[#allocation3] sm:$0xff]
        %499 = vset.pattern.permute.xlu0 0
        %500 = vperm.xlu0 %499, %v497
        %v501 = vpop.permute.xlu0 %500
        %v503 = vrcp.pop %v501
        %v504 = vmul.f32 %v501, %v503
        %v505 = vsub.f32 1.0, %v504
        %v506 = vmul.f32 %v503, %v505
        %v507 = vadd.f32 %v503, %v506
        %vm508 = vweird.f32 %v501
        %vm509 = vweird.f32 %v503
        %vm510 = vmor %vm508, %vm509
        %v511 = vsel %vm510, %v503, %v507
        %v512 = vand.u32 2147483647, %v501
        %vm513 = vcmp.eq.f32.partialorder %v512, 8.507059e+37
        %v514 = vand.u32 %v501, 2147483648
        %v515 = vor.u32 1.1754944e-38, %v514
        %v516 = vsel %vm513, %v515, %v511
        %v517 = vmul.f32 %v496, %v516
        %518 = vst.msk [vmem:[%s388] sm:$0xff] %vm403, %v517
      $region48: #{transformer_forward.30} parent=39 // pred_fallthru
        _
      %p519 = scmp.lt.s32.totalorder %s21, 1
      %s520 = scalar_select %p519, %s21, 1
      %p521 = scmp.lt.s32.totalorder %s22, 3
      %s522 = scalar_select %p521, %s22, 3
      %s523 = smul.addr %s520, 4
      %s524 = sadd.s32 %s522, %s523
      %s525 = smul.addr %s524, 8
      %s526 = scalar_lea.vmem %s5, %s525
      // Predicated region
      $region49: #{transformer_forward.30} parent=39 // pred_check
        %p527 = pneg %p197
      $region50: #{transformer_forward.30} parent=39 // pred_check_branch
        %529 = sbr.rel (%p527) target = $region52
      $region51: #{transformer_forward.30} parent=39 // pred_region
        _
      $region52: #{transformer_forward.30} parent=39 // pred_fallthru
        _
    $region40: #{transformer_forward.30} parent=5 // pred_fallthru
      _
    %p530 = scmp.le.s32.totalorder 2, %s11
    // Predicated region
    $region53: #{transformer_forward.30} parent=5 // pred_check
      %p531 = pneg %p530
    $region54: #{transformer_forward.30} parent=5 // pred_check_branch
      %533 = sbr.rel (%p531) target = $region56
    $region55: #{transformer_forward.30} parent=5 // pred_region
      %s534 = ssub.s32 %s11, 2
      // Predicated region
      $region57: #{transformer_forward.30} parent=55 // pred_check
        %p535 = pneg %p203
      $region58: #{transformer_forward.30} parent=55 // pred_check_branch
        %537 = sbr.rel (%p535) target = $region60
      $region59: #{transformer_forward.30} parent=55 // pred_region
        %p538 = scmp.lt.s32.totalorder %s24, 1
        %s539 = scalar_select %p538, %s24, 1
        %p540 = scmp.lt.s32.totalorder %s25, 3
        %s541 = scalar_select %p540, %s25, 3
        %s542 = smul.addr %s539, 4
        %s543 = sadd.s32 %s541, %s542
        %s544 = smul.addr %s543, 8
        %s545 = scalar_lea.vmem %s5, %s544
      $region60: #{transformer_forward.30} parent=55 // pred_fallthru
        _
    $region56: #{transformer_forward.30} parent=5 // pred_fallthru
      _
  $region6: #{transformer_forward.30} parent=0 // loop_footer
    %s15 = sadd.s32 1, %s11
  $region7: #{transformer_forward.30} parent=0 // loop_footer_branch
    %10 = sbr.rel target = $region3
  $region8: #{transformer_forward.30} parent=0 // loop_exit
    _

// kernel: transformer_forward.53
$region0: #{transformer_forward.53}
  #allocation0 [shape = 'u32[]', space=smem, size = 0x4, offset = 0x4, fixed_abs, tag = 'smem constant byte address 0x4 - core index']
  #allocation1 [shape = 'u32[72,128]{1,0:T(1,128)}', space=vmem, size = 0x9000, scoped, tag = 'internal scratch']
  #allocation2 [shape = 'f32[16,16]{1,0:T(8,128)}', space=vmem, size = 0x2000, scoped, tag = 'scratch operand']
  %s0 = inlined_call_operand.vmem [shape: f32[16,32], index: 0, kind: input, shape index: {}]
  %s1 = inlined_call_operand.vmem [shape: bf16[32,16], index: 1, kind: input, shape index: {}]
  %s2 = inlined_call_operand.vmem [shape: f32[1,16], index: 2, kind: input, shape index: {}]
  %s3 = inlined_call_operand.hbm [shape: f32[16,16], index: 3, kind: output, shape index: {}]
  %s4 = sld [smem:[#allocation0]]
  $region30: #{transformer_forward.53} parent=0
    _
  %s6 = ssub.s32 1, %s4
  %s7 = scalar_select 0, %s6, %s4
  $region1: #{transformer_forward.53} parent=0
    #allocation3 [shape = 'u8[8192]{0}', space=vmem, size = 0x2000, scoped, tag = 'output window, operand 0, single buffered']
    #allocation4 [shape = 's32[1]{0}', space=sflag, size = 0x4, scoped, tag = 'scoped memory for transformer_forward.53']
    %8 = vsyncpa [#allocation4], 0
    // Predicated region
    $region2: #{transformer_forward.53} parent=1 // pred_check
      _
    $region3: #{transformer_forward.53} parent=1 // pred_check_branch
      %10 = sbr.rel (0) target = $region5
    $region4: #{transformer_forward.53} parent=1 // pred_region
      _
    $region5: #{transformer_forward.53} parent=1 // pred_fallthru
      _
    // Predicated region
    $region6: #{transformer_forward.53} parent=1 // pred_check
      _
    $region7: #{transformer_forward.53} parent=1 // pred_check_branch
      %12 = sbr.rel (0) target = $region9
    $region8: #{transformer_forward.53} parent=1 // pred_region
      _
    $region9: #{transformer_forward.53} parent=1 // pred_fallthru
      _
    // Predicated region
    $region10: #{transformer_forward.53} parent=1 // pred_check
      _
    $region11: #{transformer_forward.53} parent=1 // pred_check_branch
      %14 = sbr.rel (0) target = $region13
    $region12: #{transformer_forward.53} parent=1 // pred_region
      _
    $region13: #{transformer_forward.53} parent=1 // pred_fallthru
      _
    %p16 = scmp.eq.s32.totalorder 0, 0
    // Predicated region
    $region14: #{transformer_forward.53} parent=1 // pred_check
      %p17 = pneg %p16
    $region15: #{transformer_forward.53} parent=1 // pred_check_branch
      %19 = sbr.rel (%p17) target = $region17
    $region16: #{transformer_forward.53} parent=1 // pred_region
      %vm20 = vcmask 130048
      %21 = vst.msk [vmem:[#allocation2] sm:$0xff] %vm20, 0.0
      %22 = vst.msk [vmem:[#allocation2 + $0x8] sm:$0xff] %vm20, 0.0
    $region17: #{transformer_forward.53} parent=1 // pred_fallthru
      _
    %v23 = vld [vmem:[#allocation2] sm:$0xff]
    %v24 = vld [vmem:[#allocation2 + $0x8] sm:$0xff]
    %v25 = vld [vmem:[%s0] sm:$0xff]
    %v26 = vld [vmem:[%s0 + $0x8] sm:$0xff]
    %v27 = vpack.c.bf16 %v26, %v25
    %v28 = vld [vmem:[%s1] sm:$0xf]
    %v29 = vld [vmem:[%s1 + $0x4] sm:$0xf]
    %v30 = vld [vmem:[%s1 + $0x8] sm:$0xf]
    %v31 = vld [vmem:[%s1 + $0xc] sm:$0xf]
    %v36 = vunpack.c.l.b16 %v28
    %v37 = vunpack.c.l.b16 %v29
    %v38 = vunpack.c.l.b16 %v30
    %v39 = vunpack.c.l.b16 %v31
    %v40 = vpack.c.b16 %v37, %v36
    %v41 = vpack.c.b16 %v39, %v38
    %vm44 = vcmask 261120
    %v46 = vsel %vm44, %v27, 0
    %48 = vmatpush.bf16.msra.mxu0 0
    %49 = vmatpush.bf16.msra.mxu0 0
    %50 = vmatpush.bf16.msra.mxu0 0
    %51 = vmatpush.bf16.msra.mxu0 0
    %52 = vmatpush.bf16.msra.mxu0 0
    %53 = vmatpush.bf16.msra.mxu0 0
    %54 = vmatpush.bf16.msra.mxu0 %v41
    %55 = vmatpush.bf16.msra.mxu0 %v40
    %56 = vmatmul.bf16.gmra.mxu0 %v46
    %v57 = vpop.f32.mrf.mxu0
    %v58 = vadd.f32 0.0, %v57
    %v59 = vpop.f32.mrf.mxu0
    %v60 = vadd.f32 0.0, %v59
    %61 = vdwg.mxu0
    %v62 = vadd.f32 %v23, %v58
    %v63 = vadd.f32 %v24, %v60
    %vm64 = vcmask 130048
    %65 = vst.msk [vmem:[#allocation2] sm:$0xff] %vm64, %v62
    %66 = vst.msk [vmem:[#allocation2 + $0x8] sm:$0xff] %vm64, %v63
    // Predicated region
    $region18: #{transformer_forward.53} parent=1 // pred_check
      %p67 = pneg %p16
    $region19: #{transformer_forward.53} parent=1 // pred_check_branch
      %69 = sbr.rel (%p67) target = $region21
    $region20: #{transformer_forward.53} parent=1 // pred_region
      %v70 = vld [vmem:[#allocation2] sm:$0xff]
      %v71 = vld [vmem:[#allocation2 + $0x8] sm:$0xff]
      %v72 = vld [vmem:[%s2] sm:$0x1]
      %v74 = vperm.slane %v72, 0
      %v76 = vadd.f32 %v70, %v74
      %v77 = vadd.f32 %v71, %v74
      %78 = vst.msk [vmem:[#allocation3] sm:$0xff] %vm64, %v76
      %79 = vst.msk [vmem:[#allocation3 + $0x8] sm:$0xff] %vm64, %v77
    $region21: #{transformer_forward.53} parent=1 // pred_fallthru
      _
    // Predicated region
    $region22: #{transformer_forward.53} parent=1 // pred_check
      _
    $region23: #{transformer_forward.53} parent=1 // pred_check_branch
      %81 = sbr.rel (0) target = $region25
    $region24: #{transformer_forward.53} parent=1 // pred_region
      %83 = vsyncadd [#allocation4], 0
      %s84 = sshll.u32 [#allocation3], 4
      %s85 = int_to_ptr.vmem [resolvable:$true] %s84
      %s86 = sshll.u32 %s3, 4
      %s87 = int_to_ptr.hbm [resolvable:$true] %s86
      %92 = dma.vmem_to_hbm [thread:$0]  %s85, 256, %s87, [#allocation4], 128, 128, 8
    $region25: #{transformer_forward.53} parent=1 // pred_fallthru
      _
    // Predicated region
    $region26: #{transformer_forward.53} parent=1 // pred_check
      _
    $region27: #{transformer_forward.53} parent=1 // pred_check_branch
      %94 = sbr.rel (0) target = $region29
    $region28: #{transformer_forward.53} parent=1 // pred_region
      %96 = dma.done [#allocation4], 256
    $region29: #{transformer_forward.53} parent=1 // pred_fallthru
      _
    %97 = vsyncpa [#allocation4], 1

// kernel: transformer_forward.32
$region0: #{transformer_forward.32}
  #allocation0 [shape = 'u32[]', space=smem, size = 0x4, offset = 0x4, fixed_abs, tag = 'smem constant byte address 0x4 - core index']
  #allocation1 [shape = 'u32[72,128]{1,0:T(1,128)}', space=vmem, size = 0x9000, scoped, tag = 'internal scratch']
  %s0 = inlined_call_operand.vmem [shape: f32[16,32], index: 0, kind: input, shape index: {}]
  %s1 = inlined_call_operand.vmem [shape: bf16[32,64], index: 1, kind: input, shape index: {}]
  %s2 = inlined_call_operand.vmem [shape: f32[1,64], index: 2, kind: input, shape index: {}]
  %s3 = inlined_call_operand.vmem [shape: bf16[64,32], index: 3, kind: input, shape index: {}]
  %s4 = inlined_call_operand.vmem [shape: f32[1,32], index: 4, kind: input, shape index: {}]
  %s5 = inlined_call_operand.vmem [shape: f32[1,32], index: 5, kind: input, shape index: {}]
  %s6 = inlined_call_operand.vmem [shape: f32[1,32], index: 6, kind: input, shape index: {}]
  %s7 = inlined_call_operand.vmem [shape: f32[16,32], index: 7, kind: output, shape index: {}]
  %s8 = sld [smem:[#allocation0]]
  $region38: #{transformer_forward.32} parent=0
    _
  %s10 = ssub.s32 1, %s8
  %s11 = scalar_select 0, %s10, %s8
  // Predicated region
  $region2: #{transformer_forward.32} parent=0 // pred_check
    _
  $region3: #{transformer_forward.32} parent=0 // pred_check_branch
    %13 = sbr.rel (0) target = $region5
  $region4: #{transformer_forward.32} parent=0 // pred_region
    _
  $region5: #{transformer_forward.32} parent=0 // pred_fallthru
    _
  // Predicated region
  $region6: #{transformer_forward.32} parent=0 // pred_check
    _
  $region7: #{transformer_forward.32} parent=0 // pred_check_branch
    %15 = sbr.rel (0) target = $region9
  $region8: #{transformer_forward.32} parent=0 // pred_region
    _
  $region9: #{transformer_forward.32} parent=0 // pred_fallthru
    _
  // Predicated region
  $region10: #{transformer_forward.32} parent=0 // pred_check
    _
  $region11: #{transformer_forward.32} parent=0 // pred_check_branch
    %17 = sbr.rel (0) target = $region13
  $region12: #{transformer_forward.32} parent=0 // pred_region
    _
  $region13: #{transformer_forward.32} parent=0 // pred_fallthru
    _
  // Predicated region
  $region14: #{transformer_forward.32} parent=0 // pred_check
    _
  $region15: #{transformer_forward.32} parent=0 // pred_check_branch
    %19 = sbr.rel (0) target = $region17
  $region16: #{transformer_forward.32} parent=0 // pred_region
    _
  $region17: #{transformer_forward.32} parent=0 // pred_fallthru
    _
  // Predicated region
  $region18: #{transformer_forward.32} parent=0 // pred_check
    _
  $region19: #{transformer_forward.32} parent=0 // pred_check_branch
    %21 = sbr.rel (0) target = $region21
  $region20: #{transformer_forward.32} parent=0 // pred_region
    _
  $region21: #{transformer_forward.32} parent=0 // pred_fallthru
    _
  // Predicated region
  $region22: #{transformer_forward.32} parent=0 // pred_check
    _
  $region23: #{transformer_forward.32} parent=0 // pred_check_branch
    %23 = sbr.rel (0) target = $region25
  $region24: #{transformer_forward.32} parent=0 // pred_region
    _
  $region25: #{transformer_forward.32} parent=0 // pred_fallthru
    _
  // Predicated region
  $region26: #{transformer_forward.32} parent=0 // pred_check
    _
  $region27: #{transformer_forward.32} parent=0 // pred_check_branch
    %25 = sbr.rel (0) target = $region29
  $region28: #{transformer_forward.32} parent=0 // pred_region
    _
  $region29: #{transformer_forward.32} parent=0 // pred_fallthru
    _
  %v27 = vld [vmem:[%s0] sm:$0xff]
  %v28 = vld [vmem:[%s0 + $0x8] sm:$0xff]
  %v29 = vpack.c.bf16 %v28, %v27
  %v30 = vld [vmem:[%s1] sm:$0xf]
  %v31 = vld [vmem:[%s1 + $0x4] sm:$0xf]
  %v32 = vld [vmem:[%s1 + $0x8] sm:$0xf]
  %v33 = vld [vmem:[%s1 + $0xc] sm:$0xf]
  %v34 = vld [vmem:[%s2] sm:$0x1]
  %v36 = vperm.slane %v34, 0
  %v42 = vunpack.c.l.b16 %v30
  %v43 = vunpack.c.l.b16 %v31
  %v44 = vunpack.c.l.b16 %v32
  %v45 = vunpack.c.l.b16 %v33
  %v46 = vpack.c.b16 %v43, %v42
  %v47 = vpack.c.b16 %v45, %v44
  %vm50 = vcmask 261120
  %v52 = vsel %vm50, %v29, 0
  %54 = vmatpush.bf16.msra.mxu0 0
  %55 = vmatpush.bf16.msra.mxu0 0
  %56 = vmatpush.bf16.msra.mxu0 0
  %57 = vmatpush.bf16.msra.mxu0 0
  %58 = vmatpush.bf16.msra.mxu0 0
  %59 = vmatpush.bf16.msra.mxu0 0
  %60 = vmatpush.bf16.msra.mxu0 %v47
  %61 = vmatpush.bf16.msra.mxu0 %v46
  %62 = vmatmul.bf16.gmra.mxu0 %v52
  %v63 = vpop.f32.mrf.mxu0
  %v64 = vadd.f32 %v36, %v63
  %v65 = vpop.f32.mrf.mxu0
  %v66 = vadd.f32 %v36, %v65
  %67 = vdwg.mxu0
  %v68 = vmax.f32 %v64, 0.0
  %v69 = vmax.f32 %v66, 0.0
  %v70 = vpack.c.bf16 %v69, %v68
  %v71 = vld [vmem:[%s3] sm:$0xf]
  %v72 = vld [vmem:[%s3 + $0x4] sm:$0xf]
  %v73 = vld [vmem:[%s3 + $0x8] sm:$0xf]
  %v74 = vld [vmem:[%s3 + $0xc] sm:$0xf]
  %v75 = vld [vmem:[%s3 + $0x10] sm:$0xf]
  %v76 = vld [vmem:[%s3 + $0x14] sm:$0xf]
  %v77 = vld [vmem:[%s3 + $0x18] sm:$0xf]
  %v78 = vld [vmem:[%s3 + $0x1c] sm:$0xf]
  %v79 = vld [vmem:[%s4] sm:$0x1]
  %v81 = vperm.slane %v79, 0
  %v91 = vunpack.c.l.b16 %v71
  %v92 = vunpack.c.l.b16 %v72
  %v93 = vunpack.c.l.b16 %v73
  %v94 = vunpack.c.l.b16 %v74
  %v95 = vunpack.c.l.b16 %v75
  %v96 = vunpack.c.l.b16 %v76
  %v97 = vunpack.c.l.b16 %v77
  %v98 = vunpack.c.l.b16 %v78
  %v99 = vpack.c.b16 %v92, %v91
  %v100 = vpack.c.b16 %v94, %v93
  %v101 = vpack.c.b16 %v96, %v95
  %v102 = vpack.c.b16 %v98, %v97
  %vm107 = vcmask 523264
  %v109 = vsel %vm107, %v70, 0
  %111 = vmatpush.bf16.msra.mxu0 0
  %112 = vmatpush.bf16.msra.mxu0 0
  %113 = vmatpush.bf16.msra.mxu0 0
  %114 = vmatpush.bf16.msra.mxu0 0
  %115 = vmatpush.bf16.msra.mxu0 %v102
  %116 = vmatpush.bf16.msra.mxu0 %v101
  %117 = vmatpush.bf16.msra.mxu0 %v100
  %118 = vmatpush.bf16.msra.mxu0 %v99
  %119 = vmatmul.bf16.gmra.mxu0 %v109
  %v120 = vpop.f32.mrf.mxu0
  %v121 = vadd.f32 %v81, %v120
  %v122 = vpop.f32.mrf.mxu0
  %v123 = vadd.f32 %v81, %v122
  %124 = vdwg.mxu0
  %v125 = vadd.f32 %v27, %v121
  %v126 = vadd.f32 %v28, %v123
  %v127 = vsel %vm50, %v125, 0.0
  %128 = vadd.xlane.f32.xlu0 %v127
  %v129 = vpop.xlane.xlu0 %128
  %v130 = vsel %vm50, %v126, 0.0
  %131 = vadd.xlane.f32.xlu0 %v130
  %v132 = vpop.xlane.xlu0 %131
  %v133 = vrcp.pop 32.0
  %v134 = vmul.f32 32.0, %v133
  %v135 = vsub.f32 1.0, %v134
  %v136 = vmul.f32 %v133, %v135
  %v137 = vadd.f32 %v133, %v136
  %vm138 = vweird.f32 %v133
  %v139 = vsel %vm138, %v133, %v137
  %v140 = vmul.f32 %v129, %v139
  %v141 = vmul.f32 %v132, %v139
  %v142 = vsub.f32 %v125, %v140
  %v143 = vsub.f32 %v126, %v141
  %v144 = vmul.f32 %v142, %v142
  %v145 = vmul.f32 %v143, %v143
  %v146 = vsel %vm50, %v144, 0.0
  %147 = vadd.xlane.f32.xlu0 %v146
  %v148 = vpop.xlane.xlu0 %147
  %v149 = vsel %vm50, %v145, 0.0
  %150 = vadd.xlane.f32.xlu0 %v149
  %v151 = vpop.xlane.xlu0 %150
  %v152 = vmul.f32 %v148, %v139
  %v153 = vmul.f32 %v151, %v139
  %v154 = vadd.f32 %v152, 1e-05
  %v155 = vadd.f32 %v153, 1e-05
  %v156 = vrsqrt.pop %v154
  %v157 = vmul.f32 %v156, %v154
  %v158 = vmul.f32 %v157, %v156
  %v159 = vmul.f32 0.5, %v158
  %v160 = vsub.f32 1.5, %v159
  %v161 = vmul.f32 %v156, %v160
  %vm162 = vweird.f32 %v154
  %vm163 = vweird.f32 %v156
  %vm164 = vmor %vm162, %vm163
  %v165 = vsel %vm164, %v156, %v161
  %v166 = vrsqrt.pop %v155
  %v167 = vmul.f32 %v166, %v155
  %v168 = vmul.f32 %v167, %v166
  %v169 = vmul.f32 0.5, %v168
  %v170 = vsub.f32 1.5, %v169
  %v171 = vmul.f32 %v166, %v170
  %vm172 = vweird.f32 %v155
  %vm173 = vweird.f32 %v166
  %vm174 = vmor %vm172, %vm173
  %v175 = vsel %vm174, %v166, %v171
  %v176 = vmul.f32 %v142, %v165
  %v177 = vmul.f32 %v143, %v175
  %v178 = vld [vmem:[%s5] sm:$0x1]
  %v180 = vperm.slane %v178, 0
  %v182 = vmul.f32 %v176, %v180
  %v183 = vmul.f32 %v177, %v180
  %v184 = vld [vmem:[%s6] sm:$0x1]
  %v186 = vperm.slane %v184, 0
  %v188 = vadd.f32 %v182, %v186
  %v189 = vadd.f32 %v183, %v186
  %190 = vst.msk [vmem:[%s7] sm:$0xff] %vm50, %v188
  %191 = vst.msk [vmem:[%s7 + $0x8] sm:$0xff] %vm50, %v189
  // Predicated region
  $region30: #{transformer_forward.32} parent=0 // pred_check
    _
  $region31: #{transformer_forward.32} parent=0 // pred_check_branch
    %193 = sbr.rel (0) target = $region33
  $region32: #{transformer_forward.32} parent=0 // pred_region
    _
  $region33: #{transformer_forward.32} parent=0 // pred_fallthru
    _
  // Predicated region
  $region34: #{transformer_forward.32} parent=0 // pred_check
    _
  $region35: #{transformer_forward.32} parent=0 // pred_check_branch
    %195 = sbr.rel (0) target = $region37
  $region36: #{transformer_forward.32} parent=0 // pred_region
    _
  $region37: #{transformer_forward.32} parent=0 // pred_fallthru
    _

// kernel: transformer_forward.41
$region0: #{transformer_forward.41}
  #allocation0 [shape = 'u32[]', space=smem, size = 0x4, offset = 0x4, fixed_abs, tag = 'smem constant byte address 0x4 - core index']
  #allocation1 [shape = 'u32[72,128]{1,0:T(1,128)}', space=vmem, size = 0x9000, scoped, tag = 'internal scratch']
  #allocation2 [shape = 'f32[16,32]{1,0:T(8,128)}', space=vmem, size = 0x2000, scoped, tag = 'scratch operand']
  #allocation3 [shape = 'f32[16,32]{1,0:T(8,128)}', space=vmem, size = 0x2000, scoped, tag = 'scratch operand']
  %s0 = inlined_call_operand.vmem [shape: f32[16,32], index: 0, kind: input, shape index: {}]
  %s1 = inlined_call_operand.vmem [shape: bf16[32,32], index: 1, kind: input, shape index: {}]
  %s2 = inlined_call_operand.vmem [shape: bf16[32,32], index: 2, kind: input, shape index: {}]
  %s3 = inlined_call_operand.vmem [shape: f32[1,32], index: 3, kind: input, shape index: {}]
  %s4 = inlined_call_operand.vmem [shape: f32[1,32], index: 4, kind: input, shape index: {}]
  %s5 = inlined_call_operand.vmem [shape: f32[16,32], index: 5, kind: output, shape index: {0}]
  %s6 = inlined_call_operand.vmem [shape: f32[16,32], index: 6, kind: output, shape index: {1}]
  %7 = xla_tuple %s5, %s6
  %s8 = sld [smem:[#allocation0]]
  $region46: #{transformer_forward.41} parent=0
    _
  %s10 = ssub.s32 1, %s8
  %s11 = scalar_select 0, %s10, %s8
  // Predicated region
  $region2: #{transformer_forward.41} parent=0 // pred_check
    _
  $region3: #{transformer_forward.41} parent=0 // pred_check_branch
    %13 = sbr.rel (0) target = $region5
  $region4: #{transformer_forward.41} parent=0 // pred_region
    _
  $region5: #{transformer_forward.41} parent=0 // pred_fallthru
    _
  // Predicated region
  $region6: #{transformer_forward.41} parent=0 // pred_check
    _
  $region7: #{transformer_forward.41} parent=0 // pred_check_branch
    %15 = sbr.rel (0) target = $region9
  $region8: #{transformer_forward.41} parent=0 // pred_region
    _
  $region9: #{transformer_forward.41} parent=0 // pred_fallthru
    _
  // Predicated region
  $region10: #{transformer_forward.41} parent=0 // pred_check
    _
  $region11: #{transformer_forward.41} parent=0 // pred_check_branch
    %17 = sbr.rel (0) target = $region13
  $region12: #{transformer_forward.41} parent=0 // pred_region
    _
  $region13: #{transformer_forward.41} parent=0 // pred_fallthru
    _
  // Predicated region
  $region14: #{transformer_forward.41} parent=0 // pred_check
    _
  $region15: #{transformer_forward.41} parent=0 // pred_check_branch
    %19 = sbr.rel (0) target = $region17
  $region16: #{transformer_forward.41} parent=0 // pred_region
    _
  $region17: #{transformer_forward.41} parent=0 // pred_fallthru
    _
  // Predicated region
  $region18: #{transformer_forward.41} parent=0 // pred_check
    _
  $region19: #{transformer_forward.41} parent=0 // pred_check_branch
    %21 = sbr.rel (0) target = $region21
  $region20: #{transformer_forward.41} parent=0 // pred_region
    _
  $region21: #{transformer_forward.41} parent=0 // pred_fallthru
    _
  %p23 = scmp.eq.s32.totalorder 0, 0
  // Predicated region
  $region22: #{transformer_forward.41} parent=0 // pred_check
    %p24 = pneg %p23
  $region23: #{transformer_forward.41} parent=0 // pred_check_branch
    %26 = sbr.rel (%p24) target = $region25
  $region24: #{transformer_forward.41} parent=0 // pred_region
    %vm27 = vcmask 261120
    %28 = vst.msk [vmem:[#allocation2] sm:$0xff] %vm27, 0.0
    %29 = vst.msk [vmem:[#allocation2 + $0x8] sm:$0xff] %vm27, 0.0
    %30 = vst.msk [vmem:[#allocation3] sm:$0xff] %vm27, 0.0
    %31 = vst.msk [vmem:[#allocation3 + $0x8] sm:$0xff] %vm27, 0.0
  $region25: #{transformer_forward.41} parent=0 // pred_fallthru
    _
  %v32 = vld [vmem:[%s0] sm:$0xff]
  %v33 = vld [vmem:[%s0 + $0x8] sm:$0xff]
  %v34 = vpack.c.bf16 %v33, %v32
  %v35 = vld [vmem:[#allocation2] sm:$0xff]
  %v36 = vld [vmem:[#allocation2 + $0x8] sm:$0xff]
  %v37 = vld [vmem:[%s1] sm:$0xf]
  %v38 = vld [vmem:[%s1 + $0x4] sm:$0xf]
  %v39 = vld [vmem:[%s1 + $0x8] sm:$0xf]
  %v40 = vld [vmem:[%s1 + $0xc] sm:$0xf]
  %v45 = vunpack.c.l.b16 %v37
  %v46 = vunpack.c.l.b16 %v38
  %v47 = vunpack.c.l.b16 %v39
  %v48 = vunpack.c.l.b16 %v40
  %v49 = vpack.c.b16 %v46, %v45
  %v50 = vpack.c.b16 %v48, %v47
  %vm53 = vcmask 261120
  %v55 = vsel %vm53, %v34, 0
  %57 = vmatpush.bf16.msra.mxu0 0
  %58 = vmatpush.bf16.msra.mxu0 0
  %59 = vmatpush.bf16.msra.mxu0 0
  %60 = vmatpush.bf16.msra.mxu0 0
  %61 = vmatpush.bf16.msra.mxu0 0
  %62 = vmatpush.bf16.msra.mxu0 0
  %63 = vmatpush.bf16.msra.mxu0 %v50
  %64 = vmatpush.bf16.msra.mxu0 %v49
  %65 = vmatmul.bf16.gmra.mxu0 %v55
  %v66 = vpop.f32.mrf.mxu0
  %v67 = vadd.f32 0.0, %v66
  %v68 = vpop.f32.mrf.mxu0
  %v69 = vadd.f32 0.0, %v68
  %70 = vdwg.mxu0
  %v71 = vadd.f32 %v35, %v67
  %v72 = vadd.f32 %v36, %v69
  %73 = vst.msk [vmem:[#allocation2] sm:$0xff] %vm53, %v71
  %74 = vst.msk [vmem:[#allocation2 + $0x8] sm:$0xff] %vm53, %v72
  %v75 = vld [vmem:[#allocation3] sm:$0xff]
  %v76 = vld [vmem:[#allocation3 + $0x8] sm:$0xff]
  %v77 = vld [vmem:[%s2] sm:$0xf]
  %v78 = vld [vmem:[%s2 + $0x4] sm:$0xf]
  %v79 = vld [vmem:[%s2 + $0x8] sm:$0xf]
  %v80 = vld [vmem:[%s2 + $0xc] sm:$0xf]
  %v85 = vunpack.c.l.b16 %v77
  %v86 = vunpack.c.l.b16 %v78
  %v87 = vunpack.c.l.b16 %v79
  %v88 = vunpack.c.l.b16 %v80
  %v89 = vpack.c.b16 %v86, %v85
  %v90 = vpack.c.b16 %v88, %v87
  %93 = vmatpush.bf16.msra.mxu0 0
  %94 = vmatpush.bf16.msra.mxu0 0
  %95 = vmatpush.bf16.msra.mxu0 0
  %96 = vmatpush.bf16.msra.mxu0 0
  %97 = vmatpush.bf16.msra.mxu0 0
  %98 = vmatpush.bf16.msra.mxu0 0
  %99 = vmatpush.bf16.msra.mxu0 %v90
  %100 = vmatpush.bf16.msra.mxu0 %v89
  %101 = vmatmul.bf16.gmra.mxu0 %v55
  %v102 = vpop.f32.mrf.mxu0
  %v103 = vadd.f32 0.0, %v102
  %v104 = vpop.f32.mrf.mxu0
  %v105 = vadd.f32 0.0, %v104
  %106 = vdwg.mxu0
  %v107 = vadd.f32 %v75, %v103
  %v108 = vadd.f32 %v76, %v105
  %109 = vst.msk [vmem:[#allocation3] sm:$0xff] %vm53, %v107
  %110 = vst.msk [vmem:[#allocation3 + $0x8] sm:$0xff] %vm53, %v108
  // Predicated region
  $region26: #{transformer_forward.41} parent=0 // pred_check
    %p111 = pneg %p23
  $region27: #{transformer_forward.41} parent=0 // pred_check_branch
    %113 = sbr.rel (%p111) target = $region29
  $region28: #{transformer_forward.41} parent=0 // pred_region
    %v114 = vld [vmem:[#allocation2] sm:$0xff]
    %v115 = vld [vmem:[#allocation2 + $0x8] sm:$0xff]
    %v116 = vld [vmem:[%s3] sm:$0x1]
    %v118 = vperm.slane %v116, 0
    %v120 = vadd.f32 %v114, %v118
    %v121 = vadd.f32 %v115, %v118
    %122 = vst.msk [vmem:[%s5] sm:$0xff] %vm53, %v120
    %123 = vst.msk [vmem:[%s5 + $0x8] sm:$0xff] %vm53, %v121
    %v124 = vld [vmem:[#allocation3] sm:$0xff]
    %v125 = vld [vmem:[#allocation3 + $0x8] sm:$0xff]
    %v126 = vld [vmem:[%s4] sm:$0x1]
    %v128 = vperm.slane %v126, 0
    %v130 = vadd.f32 %v124, %v128
    %v131 = vadd.f32 %v125, %v128
    %132 = vst.msk [vmem:[%s6] sm:$0xff] %vm53, %v130
    %133 = vst.msk [vmem:[%s6 + $0x8] sm:$0xff] %vm53, %v131
  $region29: #{transformer_forward.41} parent=0 // pred_fallthru
    _
  // Predicated region
  $region30: #{transformer_forward.41} parent=0 // pred_check
    _
  $region31: #{transformer_forward.41} parent=0 // pred_check_branch
    %135 = sbr.rel (0) target = $region33
  $region32: #{transformer_forward.41} parent=0 // pred_region
    _
  $region33: #{transformer_forward.41} parent=0 // pred_fallthru
    _
  // Predicated region
  $region34: #{transformer_forward.41} parent=0 // pred_check
    _
  $region35: #{transformer_forward.41} parent=0 // pred_check_branch
    %137 = sbr.rel (0) target = $region37
  $region36: #{transformer_forward.41} parent=0 // pred_region
    _
  $region37: #{transformer_forward.41} parent=0 // pred_fallthru
    _
  // Predicated region
  $region38: #{transformer_forward.41} parent=0 // pred_check
    _
  $region39: #{transformer_forward.41} parent=0 // pred_check_branch
    %139 = sbr.rel (0) target = $region41
  $region40: #{transformer_forward.41} parent=0 // pred_region
    _
  $region41: #{transformer_forward.41} parent=0 // pred_fallthru
    _
  // Predicated region
  $region42: #{transformer_forward.41} parent=0 // pred_check
    _
  $region43: #{transformer_forward.41} parent=0 // pred_check_branch
    %141 = sbr.rel (0) target = $region45
  $region44: #{transformer_forward.41} parent=0 // pred_region
    _
  $region45: #{transformer_forward.41} parent=0 // pred_fallthru
    _

</llo_original>
